<compile_context>
chip_gen: v7x
topology: tpu7x:2x2x1
jax: 0.10.0
libtpu: 0.0.40
codegen_flags: <defaults>
</compile_context>

<pallas_src>
import functools

import jax
import jax.numpy as jnp
from jax import lax
from jax.experimental import pallas as pl
from jax.experimental.pallas import tpu as pltpu


def _attention_kernel(x_ref, y_ref, wqkv_ref, wdw_ref, wproj_ref, temp_ref,
                      hmask_ref, border_ref, o_ref, *, H, W, C):
    HW = H * W

    # ---- fused q/kv 1x1 convs: one block-diagonal MXU matmul -----------------
    # rows [0,C) of wqkv read x, rows [C,3C) read y.
    xy = jnp.concatenate([x_ref[0], y_ref[0]], axis=0)                    # (2C, HW)
    qkv = jnp.dot(wqkv_ref[...], xy, preferred_element_type=jnp.float32)  # (3C, HW)

    # ---- fused 3x3 depthwise conv (padding=1) via XLU lane rolls --------------
    # border_ref rows (0/1 floats): 0:(w-1 valid) 1:(w+1 valid) 2:(h-1 valid) 3:(h+1 valid)
    wdw = wdw_ref[...]                                                    # (3C, 9)

    cols = [
        pltpu.roll(qkv, shift=1, axis=1) * border_ref[0:1],       # in[.., w-1]
        qkv,                                                       # in[.., w  ]
        pltpu.roll(qkv, shift=HW - 1, axis=1) * border_ref[1:2],   # in[.., w+1]
    ]

    acc = None
    for kh, dh in enumerate((-1, 0, 1)):
        # combine the 3 kw taps of this kernel row first (per-channel weights on
        # sublanes), then a single h-roll + h-mask per row -> only 2 extra rolls.
        combo = (cols[0] * wdw[:, kh * 3 + 0:kh * 3 + 1]
                 + cols[1] * wdw[:, kh * 3 + 1:kh * 3 + 2]
                 + cols[2] * wdw[:, kh * 3 + 2:kh * 3 + 3])
        if dh == -1:
            combo = pltpu.roll(combo, shift=W, axis=1) * border_ref[2:3]
        elif dh == 1:
            combo = pltpu.roll(combo, shift=HW - W, axis=1) * border_ref[3:4]
        acc = combo if acc is None else acc + combo                       # (3C, HW)

    q2 = acc[0:C]            # (C, HW)
    k2 = acc[C:2 * C]        # (C, HW)
    v2 = acc[2 * C:3 * C]    # (C, HW)

    # ---- L2-normalize q, k along the spatial (lane) axis ----------------------
    qn = q2 / jnp.maximum(jnp.sqrt(jnp.sum(q2 * q2, axis=1, keepdims=True)), 1e-12)
    kn = k2 / jnp.maximum(jnp.sqrt(jnp.sum(k2 * k2, axis=1, keepdims=True)), 1e-12)

    # ---- channel attention, all heads at once (block-diagonal softmax) --------
    s = lax.dot_general(qn, kn, (((1,), (1,)), ((), ())),
                        preferred_element_type=jnp.float32)               # (C, C) = qn @ kn^T
    s = s * temp_ref[...]                                                  # per-head row scale
    neg = float(jnp.finfo(jnp.float32).min)
    s = jnp.where(hmask_ref[...] != 0.0, s, neg)                           # keep heads independent
    s = s - jnp.max(s, axis=-1, keepdims=True)
    p = jnp.exp(s)
    attn = p / jnp.sum(p, axis=-1, keepdims=True)                          # (C, C)

    # ---- project_out fused:  Wproj @ (attn @ v) == (Wproj @ attn) @ v ---------
    pw = jnp.dot(wproj_ref[...], attn, preferred_element_type=jnp.float32)  # (C, C)
    o = jnp.dot(pw, v2, preferred_element_type=jnp.float32)                 # (C, HW) lane-dense
    o_ref[0] = o.astype(o_ref.dtype)


def attention_pallas(x, y, wq, wq_dw, wkv, wkv_dw, wproj, temperature, num_heads):
    """Attention.forward(x, y).

    x, y      : (B, C, H, W) float32 (PyTorch NCHW layout)
    wq, wproj : (C, C, 1, 1);  wkv : (2C, C, 1, 1)    (OIHW 1x1 conv weights, bias=False)
    wq_dw     : (C, 1, 3, 3);  wkv_dw : (2C, 1, 3, 3) (depthwise conv weights)
    temperature: (num_heads, 1, 1)
    returns (B, C, H, W) float32
    """
    B, C, H, W = x.shape
    HW = H * W
    ch = C // num_heads

    # lane-dense (B, C, HW): free reshapes, no transposes, no extra HBM traffic.
    x2 = x.reshape(B, C, HW)
    y2 = y.reshape(B, C, HW)

    # fused block-diagonal pointwise weight (3C, 2C): [[Wq, 0], [0, Wkv]]
    wq_oi = wq[:, :, 0, 0]                # (C, C)   (out, in)
    wkv_oi = wkv[:, :, 0, 0]              # (2C, C)
    w_qkv = jnp.zeros((3 * C, 2 * C), x.dtype)
    w_qkv = w_qkv.at[:C, :C].set(wq_oi)
    w_qkv = w_qkv.at[C:, C:].set(wkv_oi)

    # fused depthwise weights, tap-minor: (3C, 9), tap = kh*3 + kw
    w_dw = jnp.concatenate([wq_dw.reshape(C, 9), wkv_dw.reshape(2 * C, 9)], axis=0)

    wproj_oi = wproj[:, :, 0, 0]          # (C, C)

    temp_col = jnp.repeat(temperature.reshape(num_heads), ch)[:, None]     # (C, 1)
    cid = jnp.arange(C) // ch
    head_mask = (cid[:, None] == cid[None, :]).astype(jnp.float32)         # (C, C)

    sidx = jnp.arange(HW)
    w_idx, h_idx = sidx % W, sidx // W
    border = jnp.stack([w_idx >= 1, w_idx <= W - 2, h_idx >= 1, h_idx <= H - 2],
                       axis=0).astype(jnp.float32)                         # (4, HW)

    kern = functools.partial(_attention_kernel, H=H, W=W, C=C)
    out = pl.pallas_call(
        kern,
        out_shape=jax.ShapeDtypeStruct((B, C, HW), x.dtype),
        grid=(B,),
        in_specs=[
            pl.BlockSpec((1, C, HW), lambda b: (b, 0, 0)),       # x  (lane-dense)
            pl.BlockSpec((1, C, HW), lambda b: (b, 0, 0)),       # y  (lane-dense)
            pl.BlockSpec((3 * C, 2 * C), lambda b: (0, 0)),      # fused 1x1 weight
            pl.BlockSpec((3 * C, 9), lambda b: (0, 0)),          # fused dw weight
            pl.BlockSpec((C, C), lambda b: (0, 0)),              # projection weight
            pl.BlockSpec((C, 1), lambda b: (0, 0)),              # per-row temperature
            pl.BlockSpec((C, C), lambda b: (0, 0)),              # block-diag head mask
            pl.BlockSpec((4, HW), lambda b: (0, 0)),             # border masks
        ],
        out_specs=pl.BlockSpec((1, C, HW), lambda b: (b, 0, 0)),
        compiler_params=pltpu.CompilerParams(dimension_semantics=("parallel",)),
    )(x2, y2, w_qkv, w_dw, wproj_oi, temp_col, head_mask, border)

    return out.reshape(B, C, H, W)


def _reference(x, y, wq, wq_dw, wkv, wkv_dw, wproj, temperature, num_heads):
    dn = ("NCHW", "OIHW", "NCHW")
    prec = lax.Precision.HIGHEST

    def conv1x1(inp, w):
        return lax.conv_general_dilated(inp, w, (1, 1), "VALID",
                                        dimension_numbers=dn, precision=prec)

    def dwconv(inp, w):
        return lax.conv_general_dilated(inp, w, (1, 1), "SAME",
                                        dimension_numbers=dn,
                                        feature_group_count=inp.shape[1],
                                        precision=prec)

    B, C, H, W = x.shape
    ch = C // num_heads
    kv = dwconv(conv1x1(y, wkv), wkv_dw)
    k, v = jnp.split(kv, 2, axis=1)
    q = dwconv(conv1x1(x, wq), wq_dw)

    def to_heads(t):
        return t.reshape(B, num_heads, ch, H * W)

    q, k, v = to_heads(q), to_heads(k), to_heads(v)
    qn = q / jnp.maximum(jnp.linalg.norm(q, axis=-1, keepdims=True), 1e-12)
    kn = k / jnp.maximum(jnp.linalg.norm(k, axis=-1, keepdims=True), 1e-12)
    attn = jnp.einsum("bhcs,bhds->bhcd", qn, kn, precision=prec)
    attn = attn * temperature.reshape(1, num_heads, 1, 1)
    attn = jax.nn.softmax(attn, axis=-1)
    out = jnp.einsum("bhcd,bhds->bhcs", attn, v, precision=prec)
    out = out.reshape(B, C, H, W)
    return conv1x1(out, wproj)


if __name__ == "__main__":
    B, dim, num_heads, H, W = 2, 64, 8, 16, 16  # module defaults: dim=64, heads=8, bias=False

    key = jax.random.PRNGKey(0)
    ks = jax.random.split(key, 8)
    x = jax.random.normal(ks[0], (B, dim, H, W), jnp.float32)
    y = jax.random.normal(ks[1], (B, dim, H, W), jnp.float32)
    s_pw = 1.0 / dim ** 0.5
    s_dw = 1.0 / 3.0
    wq = jax.random.normal(ks[2], (dim, dim, 1, 1), jnp.float32) * s_pw
    wkv = jax.random.normal(ks[3], (2 * dim, dim, 1, 1), jnp.float32) * s_pw
    wq_dw = jax.random.normal(ks[4], (dim, 1, 3, 3), jnp.float32) * s_dw
    wkv_dw = jax.random.normal(ks[5], (2 * dim, 1, 3, 3), jnp.float32) * s_dw
    wproj = jax.random.normal(ks[6], (dim, dim, 1, 1), jnp.float32) * s_pw
    temperature = jax.random.uniform(ks[7], (num_heads, 1, 1), jnp.float32,
                                     minval=0.5, maxval=1.5)

    out = attention_pallas(x, y, wq, wq_dw, wkv, wkv_dw, wproj, temperature, num_heads)
    out = jax.block_until_ready(out)

    ref = _reference(x, y, wq, wq_dw, wkv, wkv_dw, wproj, temperature, num_heads)
    assert out.shape == (B, dim, H, W), out.shape
    max_err = float(jnp.max(jnp.abs(out - ref)))
    assert jnp.allclose(out, ref, atol=1e-2, rtol=1e-2), f"mismatch, max abs err {max_err}"

    print("KERNEL_OK")
</pallas_src>

<mosaic_0001>
module attributes {stable_mosaic.version = 11 : i64} {
  func.func @_attention_kernel(%arg0: i32, %arg1: memref<1x64x256xf32, #tpu.memory_space<vmem>>, %arg2: memref<1x64x256xf32, #tpu.memory_space<vmem>>, %arg3: memref<192x128xf32, #tpu.memory_space<vmem>>, %arg4: memref<192x9xf32, #tpu.memory_space<vmem>>, %arg5: memref<64x64xf32, #tpu.memory_space<vmem>>, %arg6: memref<64x1xf32, #tpu.memory_space<vmem>>, %arg7: memref<64x64xf32, #tpu.memory_space<vmem>>, %arg8: memref<4x256xf32, #tpu.memory_space<vmem>>, %arg9: memref<1x64x256xf32, #tpu.memory_space<vmem>>) attributes {dimension_semantics = [#tpu.dimension_semantics<parallel>], iteration_bounds = array<i64: 2>, scalar_prefetch = 0 : i64, scratch_operands = 0 : i64, tpu.core_type = #tpu.core_type<tc>, window_params = [{transform_indices = @transform_0, window_bounds = array<i64: 1, 64, 256>}, {transform_indices = @transform_1, window_bounds = array<i64: 1, 64, 256>}, {pipeline_mode = #tpu.pipeline_mode<synchronous>, transform_indices = @transform_2, window_bounds = array<i64: 192, 128>}, {pipeline_mode = #tpu.pipeline_mode<synchronous>, transform_indices = @transform_3, window_bounds = array<i64: 192, 9>}, {pipeline_mode = #tpu.pipeline_mode<synchronous>, transform_indices = @transform_4, window_bounds = array<i64: 64, 64>}, {pipeline_mode = #tpu.pipeline_mode<synchronous>, transform_indices = @transform_5, window_bounds = array<i64: 64, 1>}, {pipeline_mode = #tpu.pipeline_mode<synchronous>, transform_indices = @transform_6, window_bounds = array<i64: 64, 64>}, {pipeline_mode = #tpu.pipeline_mode<synchronous>, transform_indices = @transform_7, window_bounds = array<i64: 4, 256>}, {transform_indices = @transform_8, window_bounds = array<i64: 1, 64, 256>}]} {
    %c0 = arith.constant 0 : index
    %c0_0 = arith.constant 0 : index
    %c0_1 = arith.constant 0 : index
    %0 = vector.load %arg1[%c0, %c0_0, %c0_1] : memref<1x64x256xf32, #tpu.memory_space<vmem>>, vector<1x64x256xf32>
    %1 = vector.shape_cast %0 : vector<1x64x256xf32> to vector<64x256xf32>
    %c0_2 = arith.constant 0 : index
    %c0_3 = arith.constant 0 : index
    %c0_4 = arith.constant 0 : index
    %2 = vector.load %arg2[%c0_2, %c0_3, %c0_4] : memref<1x64x256xf32, #tpu.memory_space<vmem>>, vector<1x64x256xf32>
    %3 = vector.shape_cast %2 : vector<1x64x256xf32> to vector<64x256xf32>
    %4 = tpu.concatenate %1, %3 in 0 : vector<64x256xf32>, vector<64x256xf32> -> vector<128x256xf32>
    %c0_5 = arith.constant 0 : index
    %c0_6 = arith.constant 0 : index
    %5 = vector.load %arg3[%c0_5, %c0_6] : memref<192x128xf32, #tpu.memory_space<vmem>>, vector<192x128xf32>
    %cst = arith.constant dense<0.000000e+00> : vector<192x256xf32>
    %6 = tpu.matmul %5, %4, %cst {dimension_numbers = #tpu.dot_dimension_numbers<[1], [0], [0], [1], [0, 0, 1, 1], [], []>} : vector<192x128xf32>, vector<128x256xf32>, vector<192x256xf32> -> vector<192x256xf32>
    %c0_7 = arith.constant 0 : index
    %c0_8 = arith.constant 0 : index
    %7 = vector.load %arg4[%c0_7, %c0_8] : memref<192x9xf32, #tpu.memory_space<vmem>>, vector<192x9xf32>
    %c1_i32 = arith.constant 1 : i32
    %8 = tpu.dynamic_rotate %6 by %c1_i32 dim 1 : vector<192x256xf32>, i32 -> vector<192x256xf32>
    %c0_9 = arith.constant 0 : index
    %c0_10 = arith.constant 0 : index
    %9 = vector.load %arg8[%c0_9, %c0_10] : memref<4x256xf32, #tpu.memory_space<vmem>>, vector<1x256xf32>
    %10 = vector.broadcast %9 : vector<1x256xf32> to vector<192x256xf32>
    %11 = arith.mulf %8, %10 : vector<192x256xf32>
    %c255_i32 = arith.constant 255 : i32
    %12 = tpu.dynamic_rotate %6 by %c255_i32 dim 1 : vector<192x256xf32>, i32 -> vector<192x256xf32>
    %c1 = arith.constant 1 : index
    %c0_11 = arith.constant 0 : index
    %13 = vector.load %arg8[%c1, %c0_11] : memref<4x256xf32, #tpu.memory_space<vmem>>, vector<1x256xf32>
    %14 = vector.broadcast %13 : vector<1x256xf32> to vector<192x256xf32>
    %15 = arith.mulf %12, %14 : vector<192x256xf32>
    %16 = vector.extract_strided_slice %7 {offsets = [0, 0], sizes = [192, 1], strides = [1, 1]} : vector<192x9xf32> to vector<192x1xf32>
    %17 = vector.broadcast %16 : vector<192x1xf32> to vector<192x256xf32>
    %18 = arith.mulf %11, %17 : vector<192x256xf32>
    %19 = vector.extract_strided_slice %7 {offsets = [0, 1], sizes = [192, 1], strides = [1, 1]} : vector<192x9xf32> to vector<192x1xf32>
    %20 = vector.broadcast %19 : vector<192x1xf32> to vector<192x256xf32>
    %21 = arith.mulf %6, %20 : vector<192x256xf32>
    %22 = arith.addf %18, %21 : vector<192x256xf32>
    %23 = vector.extract_strided_slice %7 {offsets = [0, 2], sizes = [192, 1], strides = [1, 1]} : vector<192x9xf32> to vector<192x1xf32>
    %24 = vector.broadcast %23 : vector<192x1xf32> to vector<192x256xf32>
    %25 = arith.mulf %15, %24 : vector<192x256xf32>
    %26 = arith.addf %22, %25 : vector<192x256xf32>
    %c16_i32 = arith.constant 16 : i32
    %27 = tpu.dynamic_rotate %26 by %c16_i32 dim 1 : vector<192x256xf32>, i32 -> vector<192x256xf32>
    %c2 = arith.constant 2 : index
    %c0_12 = arith.constant 0 : index
    %28 = vector.load %arg8[%c2, %c0_12] : memref<4x256xf32, #tpu.memory_space<vmem>>, vector<1x256xf32>
    %29 = vector.broadcast %28 : vector<1x256xf32> to vector<192x256xf32>
    %30 = arith.mulf %27, %29 : vector<192x256xf32>
    %31 = vector.extract_strided_slice %7 {offsets = [0, 3], sizes = [192, 1], strides = [1, 1]} : vector<192x9xf32> to vector<192x1xf32>
    %32 = vector.broadcast %31 : vector<192x1xf32> to vector<192x256xf32>
    %33 = arith.mulf %11, %32 : vector<192x256xf32>
    %34 = vector.extract_strided_slice %7 {offsets = [0, 4], sizes = [192, 1], strides = [1, 1]} : vector<192x9xf32> to vector<192x1xf32>
    %35 = vector.broadcast %34 : vector<192x1xf32> to vector<192x256xf32>
    %36 = arith.mulf %6, %35 : vector<192x256xf32>
    %37 = arith.addf %33, %36 : vector<192x256xf32>
    %38 = vector.extract_strided_slice %7 {offsets = [0, 5], sizes = [192, 1], strides = [1, 1]} : vector<192x9xf32> to vector<192x1xf32>
    %39 = vector.broadcast %38 : vector<192x1xf32> to vector<192x256xf32>
    %40 = arith.mulf %15, %39 : vector<192x256xf32>
    %41 = arith.addf %37, %40 : vector<192x256xf32>
    %42 = arith.addf %30, %41 : vector<192x256xf32>
    %43 = vector.extract_strided_slice %7 {offsets = [0, 6], sizes = [192, 1], strides = [1, 1]} : vector<192x9xf32> to vector<192x1xf32>
    %44 = vector.broadcast %43 : vector<192x1xf32> to vector<192x256xf32>
    %45 = arith.mulf %11, %44 : vector<192x256xf32>
    %46 = vector.extract_strided_slice %7 {offsets = [0, 7], sizes = [192, 1], strides = [1, 1]} : vector<192x9xf32> to vector<192x1xf32>
    %47 = vector.broadcast %46 : vector<192x1xf32> to vector<192x256xf32>
    %48 = arith.mulf %6, %47 : vector<192x256xf32>
    %49 = arith.addf %45, %48 : vector<192x256xf32>
    %50 = vector.extract_strided_slice %7 {offsets = [0, 8], sizes = [192, 1], strides = [1, 1]} : vector<192x9xf32> to vector<192x1xf32>
    %51 = vector.broadcast %50 : vector<192x1xf32> to vector<192x256xf32>
    %52 = arith.mulf %15, %51 : vector<192x256xf32>
    %53 = arith.addf %49, %52 : vector<192x256xf32>
    %c240_i32 = arith.constant 240 : i32
    %54 = tpu.dynamic_rotate %53 by %c240_i32 dim 1 : vector<192x256xf32>, i32 -> vector<192x256xf32>
    %c3 = arith.constant 3 : index
    %c0_13 = arith.constant 0 : index
    %55 = vector.load %arg8[%c3, %c0_13] : memref<4x256xf32, #tpu.memory_space<vmem>>, vector<1x256xf32>
    %56 = vector.broadcast %55 : vector<1x256xf32> to vector<192x256xf32>
    %57 = arith.mulf %54, %56 : vector<192x256xf32>
    %58 = arith.addf %42, %57 : vector<192x256xf32>
    %59 = vector.extract_strided_slice %58 {offsets = [0, 0], sizes = [64, 256], strides = [1, 1]} : vector<192x256xf32> to vector<64x256xf32>
    %60 = vector.extract_strided_slice %58 {offsets = [64, 0], sizes = [64, 256], strides = [1, 1]} : vector<192x256xf32> to vector<64x256xf32>
    %61 = vector.extract_strided_slice %58 {offsets = [128, 0], sizes = [64, 256], strides = [1, 1]} : vector<192x256xf32> to vector<64x256xf32>
    %62 = arith.mulf %59, %59 : vector<64x256xf32>
    %cst_14 = arith.constant dense<0.000000e+00> : vector<64xf32>
    %63 = vector.multi_reduction <add>, %62, %cst_14 [1] : vector<64x256xf32> to vector<64xf32>
    %64 = vector.shape_cast %63 : vector<64xf32> to vector<64x1xf32>
    %65 = math.sqrt %64 : vector<64x1xf32>
    %cst_15 = arith.constant 9.99999996E-13 : f32
    %66 = vector.broadcast %cst_15 : f32 to vector<64x1xf32>
    %67 = arith.maximumf %65, %66 : vector<64x1xf32>
    %68 = vector.broadcast %67 : vector<64x1xf32> to vector<64x256xf32>
    %69 = arith.divf %59, %68 : vector<64x256xf32>
    %70 = arith.mulf %60, %60 : vector<64x256xf32>
    %cst_16 = arith.constant dense<0.000000e+00> : vector<64xf32>
    %71 = vector.multi_reduction <add>, %70, %cst_16 [1] : vector<64x256xf32> to vector<64xf32>
    %72 = vector.shape_cast %71 : vector<64xf32> to vector<64x1xf32>
    %73 = math.sqrt %72 : vector<64x1xf32>
    %cst_17 = arith.constant 9.99999996E-13 : f32
    %74 = vector.broadcast %cst_17 : f32 to vector<64x1xf32>
    %75 = arith.maximumf %73, %74 : vector<64x1xf32>
    %76 = vector.broadcast %75 : vector<64x1xf32> to vector<64x256xf32>
    %77 = arith.divf %60, %76 : vector<64x256xf32>
    %cst_18 = arith.constant dense<0.000000e+00> : vector<64x64xf32>
    %78 = tpu.matmul %69, %77, %cst_18 {dimension_numbers = #tpu.dot_dimension_numbers<[1], [1], [0], [0], [0, 0, 1, 0], [], []>} : vector<64x256xf32>, vector<64x256xf32>, vector<64x64xf32> -> vector<64x64xf32>
    %c0_19 = arith.constant 0 : index
    %c0_20 = arith.constant 0 : index
    %79 = vector.load %arg6[%c0_19, %c0_20] : memref<64x1xf32, #tpu.memory_space<vmem>>, vector<64x1xf32>
    %80 = vector.broadcast %79 : vector<64x1xf32> to vector<64x64xf32>
    %81 = arith.mulf %78, %80 : vector<64x64xf32>
    %c0_21 = arith.constant 0 : index
    %c0_22 = arith.constant 0 : index
    %82 = vector.load %arg7[%c0_21, %c0_22] : memref<64x64xf32, #tpu.memory_space<vmem>>, vector<64x64xf32>
    %cst_23 = arith.constant 0.000000e+00 : f32
    %83 = vector.broadcast %cst_23 : f32 to vector<64x64xf32>
    %84 = arith.cmpf one, %82, %83 : vector<64x64xf32>
    %cst_24 = arith.constant -3.40282347E+38 : f32
    %85 = vector.broadcast %cst_24 : f32 to vector<64x64xf32>
    %86 = arith.select %84, %81, %85 : vector<64x64xi1>, vector<64x64xf32>
    %cst_25 = arith.constant dense<0xFF800000> : vector<64xf32>
    %87 = vector.multi_reduction <maximumf>, %86, %cst_25 [1] : vector<64x64xf32> to vector<64xf32>
    %88 = vector.shape_cast %87 : vector<64xf32> to vector<64x1xf32>
    %89 = vector.broadcast %88 : vector<64x1xf32> to vector<64x64xf32>
    %90 = arith.subf %86, %89 : vector<64x64xf32>
    %91 = math.exp %90 : vector<64x64xf32>
    %cst_26 = arith.constant dense<0.000000e+00> : vector<64xf32>
    %92 = vector.multi_reduction <add>, %91, %cst_26 [1] : vector<64x64xf32> to vector<64xf32>
    %93 = vector.shape_cast %92 : vector<64xf32> to vector<64x1xf32>
    %94 = vector.broadcast %93 : vector<64x1xf32> to vector<64x64xf32>
    %95 = arith.divf %91, %94 : vector<64x64xf32>
    %c0_27 = arith.constant 0 : index
    %c0_28 = arith.constant 0 : index
    %96 = vector.load %arg5[%c0_27, %c0_28] : memref<64x64xf32, #tpu.memory_space<vmem>>, vector<64x64xf32>
    %cst_29 = arith.constant dense<0.000000e+00> : vector<64x64xf32>
    %97 = tpu.matmul %96, %95, %cst_29 {dimension_numbers = #tpu.dot_dimension_numbers<[1], [0], [0], [1], [0, 0, 1, 1], [], []>} : vector<64x64xf32>, vector<64x64xf32>, vector<64x64xf32> -> vector<64x64xf32>
    %cst_30 = arith.constant dense<0.000000e+00> : vector<64x256xf32>
    %98 = tpu.matmul %97, %61, %cst_30 {dimension_numbers = #tpu.dot_dimension_numbers<[1], [0], [0], [1], [0, 0, 1, 1], [], []>} : vector<64x64xf32>, vector<64x256xf32>, vector<64x256xf32> -> vector<64x256xf32>
    %c0_31 = arith.constant 0 : index
    %c0_32 = arith.constant 0 : index
    %c0_33 = arith.constant 0 : index
    %99 = vector.load %arg9[%c0_31, %c0_32, %c0_33] : memref<1x64x256xf32, #tpu.memory_space<vmem>>, vector<1x64x256xf32>
    %100 = vector.shape_cast %99 : vector<1x64x256xf32> to vector<64x256xf32>
    %101 = vector.shape_cast %98 : vector<64x256xf32> to vector<1x64x256xf32>
    tpu.vector_store %arg9[%c0_31, %c0_32, %c0_33], %101 {strides = array<i32>} : memref<1x64x256xf32, #tpu.memory_space<vmem>>, vector<1x64x256xf32>,
    return
  }
  func.func @transform_0(%arg0: i32) -> (i32, i32, i32) {
    %c0_i32 = arith.constant 0 : i32
    %c0_i32_0 = arith.constant 0 : i32
    %c0_i32_1 = arith.constant 0 : i32
    return %arg0, %c0_i32, %c0_i32_0 : i32, i32, i32
  }
  func.func @transform_1(%arg0: i32) -> (i32, i32, i32) {
    %c0_i32 = arith.constant 0 : i32
    %c0_i32_0 = arith.constant 0 : i32
    %c0_i32_1 = arith.constant 0 : i32
    return %arg0, %c0_i32, %c0_i32_0 : i32, i32, i32
  }
  func.func @transform_2(%arg0: i32) -> (i32, i32) {
    %c0_i32 = arith.constant 0 : i32
    %c0_i32_0 = arith.constant 0 : i32
    %c0_i32_1 = arith.constant 0 : i32
    return %c0_i32, %c0_i32_0 : i32, i32
  }
  func.func @transform_3(%arg0: i32) -> (i32, i32) {
    %c0_i32 = arith.constant 0 : i32
    %c0_i32_0 = arith.constant 0 : i32
    %c0_i32_1 = arith.constant 0 : i32
    return %c0_i32, %c0_i32_0 : i32, i32
  }
  func.func @transform_4(%arg0: i32) -> (i32, i32) {
    %c0_i32 = arith.constant 0 : i32
    %c0_i32_0 = arith.constant 0 : i32
    %c0_i32_1 = arith.constant 0 : i32
    return %c0_i32, %c0_i32_0 : i32, i32
  }
  func.func @transform_5(%arg0: i32) -> (i32, i32) {
    %c0_i32 = arith.constant 0 : i32
    %c0_i32_0 = arith.constant 0 : i32
    %c0_i32_1 = arith.constant 0 : i32
    return %c0_i32, %c0_i32_0 : i32, i32
  }
  func.func @transform_6(%arg0: i32) -> (i32, i32) {
    %c0_i32 = arith.constant 0 : i32
    %c0_i32_0 = arith.constant 0 : i32
    %c0_i32_1 = arith.constant 0 : i32
    return %c0_i32, %c0_i32_0 : i32, i32
  }
  func.func @transform_7(%arg0: i32) -> (i32, i32) {
    %c0_i32 = arith.constant 0 : i32
    %c0_i32_0 = arith.constant 0 : i32
    %c0_i32_1 = arith.constant 0 : i32
    return %c0_i32, %c0_i32_0 : i32, i32
  }
  func.func @transform_8(%arg0: i32) -> (i32, i32, i32) {
    %c0_i32 = arith.constant 0 : i32
    %c0_i32_0 = arith.constant 0 : i32
    %c0_i32_1 = arith.constant 0 : i32
    return %arg0, %c0_i32, %c0_i32_0 : i32, i32, i32
  }
}

</mosaic_0001>

<llo_original>
// kernel: tpu_custom_call.1
$region0: #{tpu_custom_call.1}
  #allocation0 [shape = 'u32[]', space=smem, size = 0x4, offset = 0x4, fixed_abs, tag = 'smem constant byte address 0x4 - core index']
  #allocation1 [shape = 'u32[144,128]{1,0:T(1,128)}', space=vmem, size = 0x12000, scoped, tag = 'internal scratch']
  %s0 = inlined_call_operand.vmem [shape: f32[2,64,256], index: 0, kind: input, shape index: {}]
  %s1 = inlined_call_operand.hbm [shape: f32[2,64,256], index: 1, kind: input, shape index: {}]
  %s2 = inlined_call_operand.hbm [shape: f32[192,128], index: 2, kind: input, shape index: {}]
  %s3 = inlined_call_operand.vmem [shape: f32[192,9], index: 3, kind: input, shape index: {}]
  %s4 = inlined_call_operand.hbm [shape: f32[64,64], index: 4, kind: input, shape index: {}]
  %s5 = inlined_call_operand.vmem [shape: f32[64,1], index: 5, kind: input, shape index: {}]
  %s6 = inlined_call_operand.hbm [shape: f32[64,64], index: 6, kind: input, shape index: {}]
  %s7 = inlined_call_operand.vmem [shape: f32[4,256], index: 7, kind: input, shape index: {}]
  %s8 = inlined_call_operand.hbm [shape: f32[2,64,256], index: 8, kind: output, shape index: {}]
  %s9 = sld [smem:[#allocation0]]
  $region81: #{tpu_custom_call.1} parent=0
    _
  %s11 = ssub.s32 1, %s9
  %s12 = scalar_select 0, %s11, %s9
  $region1: #{tpu_custom_call.1} parent=0
    #allocation2 [shape = 'u8[131072]{0}', space=vmem, size = 0x20000, scoped, tag = 'input window, operand 1']
    #allocation3 [shape = 's32[2]{0}', space=sflag, size = 0x8, scoped, tag = 'scoped memory for tpu_custom_call.1']
    #allocation4 [shape = 's32[2]{0}', space=sflag, size = 0x8, scoped, tag = 'scoped memory for tpu_custom_call.1']
    #allocation5 [shape = 'u8[98304]{0}', space=vmem, size = 0x18000, scoped, tag = 'input window, operand 2, single buffered']
    #allocation6 [shape = 's32[1]{0}', space=sflag, size = 0x4, scoped, tag = 'scoped memory for tpu_custom_call.1']
    #allocation7 [shape = 'u8[32768]{0}', space=vmem, size = 0x8000, scoped, tag = 'input window, operand 4, single buffered']
    #allocation8 [shape = 'u8[32768]{0}', space=vmem, size = 0x8000, scoped, tag = 'input window, operand 6, single buffered']
    #allocation9 [shape = 's32[1]{0}', space=sflag, size = 0x4, scoped, tag = 'scoped memory for tpu_custom_call.1']
    #allocation10 [shape = 'u8[131072]{0}', space=vmem, size = 0x20000, scoped, tag = 'output window, operand 0']
    %13 = vsyncpa [#allocation3], 0
    %s14 = scalar_lea.sflag [#allocation3], 1
    %15 = vsyncpa %s14, 0
    %16 = vsyncpa [#allocation6], 0
    %17 = vsyncpa [#allocation9], 0
    %18 = vsyncpa [#allocation4], 0
    %s19 = scalar_lea.sflag [#allocation4], 1
    %20 = vsyncpa %s19, 0
    loop: start=0, step=1, limit=4
    $region2: #{tpu_custom_call.1} parent=1 // loop_pre_header
      _
    $region3: #{tpu_custom_call.1} parent=1 // loop_header
      %s22 = sphi 0, %s26
      %p23 = scmp.ge.s32.totalorder %s22, 4
      %s32 = sphi 0, %s34
      %s35 = sphi 0, %s32
      %s36 = sphi 0, %s35
      %s52 = sphi 0, %s36
      %s58 = sphi 0, %s60
      %s61 = sphi 0, %s58
      %s62 = sphi 0, %s61
      %s78 = sphi 0, %s62
      %s82 = sphi 0, %s82
      %s84 = sphi 0, %s82
      %s85 = sphi 0, %s84
      %s99 = sphi 0, %s85
      %s103 = sphi 0, %s103
      %s105 = sphi 0, %s103
      %s106 = sphi 0, %s105
      %s120 = sphi 0, %s106
      %s124 = sphi 0, %s124
      %s126 = sphi 0, %s124
      %s127 = sphi 0, %s126
      %s141 = sphi 0, %s127
      %s145 = sphi 0, %s145
      %s147 = sphi 0, %s145
      %s148 = sphi 0, %s147
      %s162 = sphi 0, %s148
      %s166 = sphi 0, %s166
      %s168 = sphi 0, %s166
      %s169 = sphi 0, %s168
      %s183 = sphi 0, %s169
      %s187 = sphi 0, %s187
      %s189 = sphi 0, %s187
      %s190 = sphi 0, %s189
      %s204 = sphi 0, %s190
      %s210 = sphi 0, %s212
      %s213 = sphi 0, %s210
      %s214 = sphi 0, %s213
      %s230 = sphi 0, %s214
    $region4: #{tpu_custom_call.1} parent=1 // loop_header_branch
      %25 = sbr.rel (%p23) target = $region8
    $region5: #{tpu_custom_call.1} parent=1 // loop_body
      %s27 = ssub.s32 %s22, 1
      %s28 = ssub.s32 %s22, 2
      %s29 = sadd.s32 %s22, 1
      %s30 = ssub.s32 %s22, %s29
      %p31 = scmp.eq.s32.totalorder %s30, 0
      %s33 = sadd.s32 %s32, 1
      %s34 = scalar_select %p31, %s32, %s33
      %p37 = pneg %p31
      %p38 = scmp.eq.s32.totalorder %s22, 1
      %p39 = por %p37, %p38
      %p40 = scmp.ne.s32.totalorder %s32, %s35
      %p41 = scmp.eq.s32.totalorder %s22, 0
      %p42 = por %p40, %p41
      %p43 = scmp.ne.s32.totalorder %s32, %s35
      %p44 = scmp.eq.s32.totalorder %s27, 1
      %p45 = por %p43, %p44
      %p46 = scmp.ne.s32.totalorder %s35, %s36
      %p47 = scmp.eq.s32.totalorder %s27, 0
      %p48 = por %p46, %p47
      %p49 = scmp.ne.s32.totalorder %s35, %s36
      %p50 = scmp.eq.s32.totalorder %s28, 1
      %p51 = por %p49, %p50
      %p53 = scmp.ne.s32.totalorder %s36, %s52
      %p54 = scmp.eq.s32.totalorder %s28, 0
      %p55 = por %p53, %p54
      %s56 = ssub.s32 %s22, %s29
      %p57 = scmp.eq.s32.totalorder %s56, 0
      %s59 = sadd.s32 %s58, 1
      %s60 = scalar_select %p57, %s58, %s59
      %p63 = pneg %p57
      %p64 = scmp.eq.s32.totalorder %s22, 1
      %p65 = por %p63, %p64
      %p66 = scmp.ne.s32.totalorder %s58, %s61
      %p67 = scmp.eq.s32.totalorder %s22, 0
      %p68 = por %p66, %p67
      %p69 = scmp.ne.s32.totalorder %s58, %s61
      %p70 = scmp.eq.s32.totalorder %s27, 1
      %p71 = por %p69, %p70
      %p72 = scmp.ne.s32.totalorder %s61, %s62
      %p73 = scmp.eq.s32.totalorder %s27, 0
      %p74 = por %p72, %p73
      %p75 = scmp.ne.s32.totalorder %s61, %s62
      %p76 = scmp.eq.s32.totalorder %s28, 1
      %p77 = por %p75, %p76
      %p79 = scmp.ne.s32.totalorder %s62, %s78
      %p80 = scmp.eq.s32.totalorder %s28, 0
      %p81 = por %p79, %p80
      %s83 = sadd.s32 %s82, 1
      %p86 = scmp.eq.s32.totalorder %s22, 1
      %p87 = scmp.ne.s32.totalorder %s82, %s84
      %p88 = scmp.eq.s32.totalorder %s22, 0
      %p89 = por %p87, %p88
      %p90 = scmp.ne.s32.totalorder %s82, %s84
      %p91 = scmp.eq.s32.totalorder %s27, 1
      %p92 = por %p90, %p91
      %p93 = scmp.ne.s32.totalorder %s84, %s85
      %p94 = scmp.eq.s32.totalorder %s27, 0
      %p95 = por %p93, %p94
      %p96 = scmp.ne.s32.totalorder %s84, %s85
      %p97 = scmp.eq.s32.totalorder %s28, 1
      %p98 = por %p96, %p97
      %p100 = scmp.ne.s32.totalorder %s85, %s99
      %p101 = scmp.eq.s32.totalorder %s28, 0
      %p102 = por %p100, %p101
      %s104 = sadd.s32 %s103, 1
      %p107 = scmp.eq.s32.totalorder %s22, 1
      %p108 = scmp.ne.s32.totalorder %s103, %s105
      %p109 = scmp.eq.s32.totalorder %s22, 0
      %p110 = por %p108, %p109
      %p111 = scmp.ne.s32.totalorder %s103, %s105
      %p112 = scmp.eq.s32.totalorder %s27, 1
      %p113 = por %p111, %p112
      %p114 = scmp.ne.s32.totalorder %s105, %s106
      %p115 = scmp.eq.s32.totalorder %s27, 0
      %p116 = por %p114, %p115
      %p117 = scmp.ne.s32.totalorder %s105, %s106
      %p118 = scmp.eq.s32.totalorder %s28, 1
      %p119 = por %p117, %p118
      %p121 = scmp.ne.s32.totalorder %s106, %s120
      %p122 = scmp.eq.s32.totalorder %s28, 0
      %p123 = por %p121, %p122
      %s125 = sadd.s32 %s124, 1
      %p128 = scmp.eq.s32.totalorder %s22, 1
      %p129 = scmp.ne.s32.totalorder %s124, %s126
      %p130 = scmp.eq.s32.totalorder %s22, 0
      %p131 = por %p129, %p130
      %p132 = scmp.ne.s32.totalorder %s124, %s126
      %p133 = scmp.eq.s32.totalorder %s27, 1
      %p134 = por %p132, %p133
      %p135 = scmp.ne.s32.totalorder %s126, %s127
      %p136 = scmp.eq.s32.totalorder %s27, 0
      %p137 = por %p135, %p136
      %p138 = scmp.ne.s32.totalorder %s126, %s127
      %p139 = scmp.eq.s32.totalorder %s28, 1
      %p140 = por %p138, %p139
      %p142 = scmp.ne.s32.totalorder %s127, %s141
      %p143 = scmp.eq.s32.totalorder %s28, 0
      %p144 = por %p142, %p143
      %s146 = sadd.s32 %s145, 1
      %p149 = scmp.eq.s32.totalorder %s22, 1
      %p150 = scmp.ne.s32.totalorder %s145, %s147
      %p151 = scmp.eq.s32.totalorder %s22, 0
      %p152 = por %p150, %p151
      %p153 = scmp.ne.s32.totalorder %s145, %s147
      %p154 = scmp.eq.s32.totalorder %s27, 1
      %p155 = por %p153, %p154
      %p156 = scmp.ne.s32.totalorder %s147, %s148
      %p157 = scmp.eq.s32.totalorder %s27, 0
      %p158 = por %p156, %p157
      %p159 = scmp.ne.s32.totalorder %s147, %s148
      %p160 = scmp.eq.s32.totalorder %s28, 1
      %p161 = por %p159, %p160
      %p163 = scmp.ne.s32.totalorder %s148, %s162
      %p164 = scmp.eq.s32.totalorder %s28, 0
      %p165 = por %p163, %p164
      %s167 = sadd.s32 %s166, 1
      %p170 = scmp.eq.s32.totalorder %s22, 1
      %p171 = scmp.ne.s32.totalorder %s166, %s168
      %p172 = scmp.eq.s32.totalorder %s22, 0
      %p173 = por %p171, %p172
      %p174 = scmp.ne.s32.totalorder %s166, %s168
      %p175 = scmp.eq.s32.totalorder %s27, 1
      %p176 = por %p174, %p175
      %p177 = scmp.ne.s32.totalorder %s168, %s169
      %p178 = scmp.eq.s32.totalorder %s27, 0
      %p179 = por %p177, %p178
      %p180 = scmp.ne.s32.totalorder %s168, %s169
      %p181 = scmp.eq.s32.totalorder %s28, 1
      %p182 = por %p180, %p181
      %p184 = scmp.ne.s32.totalorder %s169, %s183
      %p185 = scmp.eq.s32.totalorder %s28, 0
      %p186 = por %p184, %p185
      %s188 = sadd.s32 %s187, 1
      %p191 = scmp.eq.s32.totalorder %s22, 1
      %p192 = scmp.ne.s32.totalorder %s187, %s189
      %p193 = scmp.eq.s32.totalorder %s22, 0
      %p194 = por %p192, %p193
      %p195 = scmp.ne.s32.totalorder %s187, %s189
      %p196 = scmp.eq.s32.totalorder %s27, 1
      %p197 = por %p195, %p196
      %p198 = scmp.ne.s32.totalorder %s189, %s190
      %p199 = scmp.eq.s32.totalorder %s27, 0
      %p200 = por %p198, %p199
      %p201 = scmp.ne.s32.totalorder %s189, %s190
      %p202 = scmp.eq.s32.totalorder %s28, 1
      %p203 = por %p201, %p202
      %p205 = scmp.ne.s32.totalorder %s190, %s204
      %p206 = scmp.eq.s32.totalorder %s28, 0
      %p207 = por %p205, %p206
      %s208 = ssub.s32 %s22, %s29
      %p209 = scmp.eq.s32.totalorder %s208, 0
      %s211 = sadd.s32 %s210, 1
      %s212 = scalar_select %p209, %s210, %s211
      %p215 = pneg %p209
      %p216 = scmp.eq.s32.totalorder %s22, 1
      %p217 = por %p215, %p216
      %p218 = scmp.ne.s32.totalorder %s210, %s213
      %p219 = scmp.eq.s32.totalorder %s22, 0
      %p220 = por %p218, %p219
      %p221 = scmp.ne.s32.totalorder %s210, %s213
      %p222 = scmp.eq.s32.totalorder %s27, 1
      %p223 = por %p221, %p222
      %p224 = scmp.ne.s32.totalorder %s213, %s214
      %p225 = scmp.eq.s32.totalorder %s27, 0
      %p226 = por %p224, %p225
      %p227 = scmp.ne.s32.totalorder %s213, %s214
      %p228 = scmp.eq.s32.totalorder %s28, 1
      %p229 = por %p227, %p228
      %p231 = scmp.ne.s32.totalorder %s214, %s230
      %p232 = scmp.eq.s32.totalorder %s28, 0
      %p233 = por %p231, %p232
      %p234 = scmp.le.s32.totalorder 1, %s22
      %p235 = scmp.lt.s32.totalorder %s22, 3
      %p236 = pnand %p234, %p235
      %p237 = pneg %p236
      // Predicated region
      $region9: #{tpu_custom_call.1} parent=5 // pred_check
        _
      $region10: #{tpu_custom_call.1} parent=5 // pred_check_branch
        %239 = sbr.rel (%p236) target = $region12
      $region11: #{tpu_custom_call.1} parent=5 // pred_region
        %s240 = ssub.s32 %s22, 1
        // Predicated region
        $region13: #{tpu_custom_call.1} parent=11 // pred_check
          %p241 = pneg %p95
        $region14: #{tpu_custom_call.1} parent=11 // pred_check_branch
          %243 = sbr.rel (%p241) target = $region16
        $region15: #{tpu_custom_call.1} parent=11 // pred_region
          %s245 = ssub.s32 3072, 3072
          %246 = vsyncadd [#allocation6], %s245
          %s247 = sshll.u32 [#allocation5], 4
          %s248 = int_to_ptr.vmem [resolvable:$true] %s247
          %253 = dma.hbm_to_vmem [thread:$0]  %s2, 3072, %s248, [#allocation6], 128, 128, 8
        $region16: #{tpu_custom_call.1} parent=11 // pred_fallthru
          _
        // Predicated region
        $region17: #{tpu_custom_call.1} parent=11 // pred_check
          %p254 = pneg %p116
        $region18: #{tpu_custom_call.1} parent=11 // pred_check_branch
          %256 = sbr.rel (%p254) target = $region20
        $region19: #{tpu_custom_call.1} parent=11 // pred_region
          _
        $region20: #{tpu_custom_call.1} parent=11 // pred_fallthru
          _
        // Predicated region
        $region21: #{tpu_custom_call.1} parent=11 // pred_check
          %p257 = pneg %p137
        $region22: #{tpu_custom_call.1} parent=11 // pred_check_branch
          %259 = sbr.rel (%p257) target = $region24
        $region23: #{tpu_custom_call.1} parent=11 // pred_region
          %s261 = ssub.s32 1024, 1024
          %262 = vsyncadd [#allocation6], %s261
          %s263 = sshll.u32 [#allocation7], 4
          %s264 = int_to_ptr.vmem [resolvable:$true] %s263
          %269 = dma.hbm_to_vmem [thread:$0]  %s4, 1024, %s264, [#allocation6], 128, 128, 8
        $region24: #{tpu_custom_call.1} parent=11 // pred_fallthru
          _
        // Predicated region
        $region25: #{tpu_custom_call.1} parent=11 // pred_check
          %p270 = pneg %p158
        $region26: #{tpu_custom_call.1} parent=11 // pred_check_branch
          %272 = sbr.rel (%p270) target = $region28
        $region27: #{tpu_custom_call.1} parent=11 // pred_region
          _
        $region28: #{tpu_custom_call.1} parent=11 // pred_fallthru
          _
        // Predicated region
        $region29: #{tpu_custom_call.1} parent=11 // pred_check
          %p273 = pneg %p179
        $region30: #{tpu_custom_call.1} parent=11 // pred_check_branch
          %275 = sbr.rel (%p273) target = $region32
        $region31: #{tpu_custom_call.1} parent=11 // pred_region
          %s277 = ssub.s32 1024, 1024
          %278 = vsyncadd [#allocation9], %s277
          %s279 = sshll.u32 [#allocation8], 4
          %s280 = int_to_ptr.vmem [resolvable:$true] %s279
          %285 = dma.hbm_to_vmem [thread:$0]  %s6, 1024, %s280, [#allocation9], 128, 128, 8
        $region32: #{tpu_custom_call.1} parent=11 // pred_fallthru
          _
        // Predicated region
        $region33: #{tpu_custom_call.1} parent=11 // pred_check
          %p286 = pneg %p200
        $region34: #{tpu_custom_call.1} parent=11 // pred_check_branch
          %288 = sbr.rel (%p286) target = $region36
        $region35: #{tpu_custom_call.1} parent=11 // pred_region
          _
        $region36: #{tpu_custom_call.1} parent=11 // pred_fallthru
          _
      $region12: #{tpu_custom_call.1} parent=5 // pred_fallthru
        _
      %p289 = scmp.lt.s32.totalorder %s22, 2
      // Predicated region
      $region37: #{tpu_custom_call.1} parent=5 // pred_check
        %p290 = pneg %p289
      $region38: #{tpu_custom_call.1} parent=5 // pred_check_branch
        %292 = sbr.rel (%p290) target = $region40
      $region39: #{tpu_custom_call.1} parent=5 // pred_region
        // Predicated region
        $region41: #{tpu_custom_call.1} parent=39 // pred_check
          %p293 = pneg %p42
        $region42: #{tpu_custom_call.1} parent=39 // pred_check_branch
          %295 = sbr.rel (%p293) target = $region44
        $region43: #{tpu_custom_call.1} parent=39 // pred_region
          %p296 = scmp.lt.s32.totalorder %s22, 1
          %s297 = scalar_select %p296, %s22, 1
          %s298 = smul.addr %s297, 16
          %s299 = smul.addr %s298, 8
          %s300 = scalar_lea.vmem %s0, %s299
        $region44: #{tpu_custom_call.1} parent=39 // pred_fallthru
          _
        // Predicated region
        $region45: #{tpu_custom_call.1} parent=39 // pred_check
          %p301 = pneg %p68
        $region46: #{tpu_custom_call.1} parent=39 // pred_check_branch
          %303 = sbr.rel (%p301) target = $region48
        $region47: #{tpu_custom_call.1} parent=39 // pred_region
          %s304 = sand.u32 %s58, 1
          %s305 = scalar_lea.sflag [#allocation3], %s304
          %s306 = sand.u32 %s58, 1
          %s307 = smul.addr %s306, 128
          %s308 = scalar_lea.vmem [#allocation2], %s307
          %s310 = ssub.s32 2048, 2048
          %311 = vsyncadd %s305, %s310
          %s312 = smul.addr %s22, 16
          %s313 = smul.addr %s312, 128
          %s314 = scalar_lea.hbm %s1, %s313
          %s315 = sshll.u32 %s308, 4
          %s316 = int_to_ptr.vmem [resolvable:$true] %s315
          %321 = dma.hbm_to_vmem [thread:$0]  %s314, 2048, %s316, %s305, 256, 256, 16
        $region48: #{tpu_custom_call.1} parent=39 // pred_fallthru
          _
      $region40: #{tpu_custom_call.1} parent=5 // pred_fallthru
        _
      %p322 = scmp.le.s32.totalorder 1, %s22
      %p323 = scmp.lt.s32.totalorder %s22, 3
      %p324 = pnand %p322, %p323
      %p325 = pneg %p324
      // Predicated region
      $region49: #{tpu_custom_call.1} parent=5 // pred_check
        _
      $region50: #{tpu_custom_call.1} parent=5 // pred_check_branch
        %327 = sbr.rel (%p324) target = $region52
      $region51: #{tpu_custom_call.1} parent=5 // pred_region
        %s328 = ssub.s32 %s22, 1
        %s329 = sand.u32 %s61, 1
        %s330 = scalar_lea.sflag [#allocation3], %s329
        %s331 = sand.u32 %s61, 1
        %s332 = smul.addr %s331, 128
        %s333 = scalar_lea.vmem [#allocation2], %s332
        // Predicated region
        $region53: #{tpu_custom_call.1} parent=51 // pred_check
          %p334 = pneg %p74
        $region54: #{tpu_custom_call.1} parent=51 // pred_check_branch
          %336 = sbr.rel (%p334) target = $region56
        $region55: #{tpu_custom_call.1} parent=51 // pred_region
          %337 = dma.done %s330, 2048
        $region56: #{tpu_custom_call.1} parent=51 // pred_fallthru
          _
        // Predicated region
        $region57: #{tpu_custom_call.1} parent=51 // pred_check
          %p338 = pneg %p95
        $region58: #{tpu_custom_call.1} parent=51 // pred_check_branch
          %340 = sbr.rel (%p338) target = $region60
        $region59: #{tpu_custom_call.1} parent=51 // pred_region
          %341 = dma.done [#allocation6], 3072
        $region60: #{tpu_custom_call.1} parent=51 // pred_fallthru
          _
        // Predicated region
        $region61: #{tpu_custom_call.1} parent=51 // pred_check
          %p342 = pneg %p137
        $region62: #{tpu_custom_call.1} parent=51 // pred_check_branch
          %344 = sbr.rel (%p342) target = $region64
        $region63: #{tpu_custom_call.1} parent=51 // pred_region
          %345 = dma.done [#allocation6], 1024
        $region64: #{tpu_custom_call.1} parent=51 // pred_fallthru
          _
        // Predicated region
        $region65: #{tpu_custom_call.1} parent=51 // pred_check
          %p346 = pneg %p179
        $region66: #{tpu_custom_call.1} parent=51 // pred_check_branch
          %348 = sbr.rel (%p346) target = $region68
        $region67: #{tpu_custom_call.1} parent=51 // pred_region
          %349 = dma.done [#allocation9], 1024
        $region68: #{tpu_custom_call.1} parent=51 // pred_fallthru
          _
        %p350 = scmp.lt.s32.totalorder %s27, 1
        %s351 = scalar_select %p350, %s27, 1
        %s352 = smul.addr %s351, 16
        %s353 = smul.addr %s352, 8
        %s354 = scalar_lea.vmem %s0, %s353
        %p355 = pneg %p48
        %p356 = pneg %p45
        %s357 = sand.u32 %s61, 1
        %s358 = scalar_lea.sflag [#allocation3], %s357
        %s359 = sand.u32 %s61, 1
        %s360 = smul.addr %s359, 128
        %s361 = scalar_lea.vmem [#allocation2], %s360
        %p362 = pneg %p74
        %p363 = pneg %p71
        %p364 = pneg %p95
        %p365 = pneg %p92
        %p366 = pneg %p116
        %p367 = pneg %p113
        %p368 = pneg %p137
        %p369 = pneg %p134
        %p370 = pneg %p158
        %p371 = pneg %p155
        %p372 = pneg %p179
        %p373 = pneg %p176
        %p374 = pneg %p200
        %p375 = pneg %p197
        %p376 = pneg %p226
        %p377 = pneg %p223
        %s378 = sand.u32 %s213, 1
        %s379 = scalar_lea.sflag [#allocation4], %s378
        %s380 = sand.u32 %s213, 1
        %s381 = smul.addr %s380, 128
        %s382 = scalar_lea.vmem [#allocation10], %s381
        %p383 = scmp.lt.s32.totalorder %s27, 1
        %s384 = scalar_select %p383, %s27, 1
        %s385 = smul.addr %s384, 16
        %s386 = smul.addr %s385, 8
        %s387 = scalar_lea.vmem %s0, %s386
        %v388 = vld [vmem:[%s387] sm:$0xff]
        %v389 = vld [vmem:[%s387 + $0x8] sm:$0xff]
        %v390 = vld [vmem:[%s387 + $0x10] sm:$0xff]
        %v391 = vld [vmem:[%s387 + $0x18] sm:$0xff]
        %v392 = vld [vmem:[%s387 + $0x20] sm:$0xff]
        %v393 = vld [vmem:[%s387 + $0x28] sm:$0xff]
        %v394 = vld [vmem:[%s387 + $0x30] sm:$0xff]
        %v395 = vld [vmem:[%s387 + $0x38] sm:$0xff]
        %v396 = vld [vmem:[%s387 + $0x40] sm:$0xff]
        %v397 = vld [vmem:[%s387 + $0x48] sm:$0xff]
        %v398 = vld [vmem:[%s387 + $0x50] sm:$0xff]
        %v399 = vld [vmem:[%s387 + $0x58] sm:$0xff]
        %v400 = vld [vmem:[%s387 + $0x60] sm:$0xff]
        %v401 = vld [vmem:[%s387 + $0x68] sm:$0xff]
        %v402 = vld [vmem:[%s387 + $0x70] sm:$0xff]
        %v403 = vld [vmem:[%s387 + $0x78] sm:$0xff]
        %v404 = vld [vmem:[%s333] sm:$0xff]
        %v405 = vld [vmem:[%s333 + $0x8] sm:$0xff]
        %v406 = vld [vmem:[%s333 + $0x10] sm:$0xff]
        %v407 = vld [vmem:[%s333 + $0x18] sm:$0xff]
        %v408 = vld [vmem:[%s333 + $0x20] sm:$0xff]
        %v409 = vld [vmem:[%s333 + $0x28] sm:$0xff]
        %v410 = vld [vmem:[%s333 + $0x30] sm:$0xff]
        %v411 = vld [vmem:[%s333 + $0x38] sm:$0xff]
        %v412 = vld [vmem:[%s333 + $0x40] sm:$0xff]
        %v413 = vld [vmem:[%s333 + $0x48] sm:$0xff]
        %v414 = vld [vmem:[%s333 + $0x50] sm:$0xff]
        %v415 = vld [vmem:[%s333 + $0x58] sm:$0xff]
        %v416 = vld [vmem:[%s333 + $0x60] sm:$0xff]
        %v417 = vld [vmem:[%s333 + $0x68] sm:$0xff]
        %v418 = vld [vmem:[%s333 + $0x70] sm:$0xff]
        %v419 = vld [vmem:[%s333 + $0x78] sm:$0xff]
        %v420 = vld [vmem:[#allocation5] sm:$0xff]
        %v421 = vld [vmem:[#allocation5 + $0x8] sm:$0xff]
        %v422 = vld [vmem:[#allocation5 + $0x10] sm:$0xff]
        %v423 = vld [vmem:[#allocation5 + $0x18] sm:$0xff]
        %v424 = vld [vmem:[#allocation5 + $0x20] sm:$0xff]
        %v425 = vld [vmem:[#allocation5 + $0x28] sm:$0xff]
        %v426 = vld [vmem:[#allocation5 + $0x30] sm:$0xff]
        %v427 = vld [vmem:[#allocation5 + $0x38] sm:$0xff]
        %v428 = vld [vmem:[#allocation5 + $0x40] sm:$0xff]
        %v429 = vld [vmem:[#allocation5 + $0x48] sm:$0xff]
        %v430 = vld [vmem:[#allocation5 + $0x50] sm:$0xff]
        %v431 = vld [vmem:[#allocation5 + $0x58] sm:$0xff]
        %v432 = vld [vmem:[#allocation5 + $0x60] sm:$0xff]
        %v433 = vld [vmem:[#allocation5 + $0x68] sm:$0xff]
        %v434 = vld [vmem:[#allocation5 + $0x70] sm:$0xff]
        %v435 = vld [vmem:[#allocation5 + $0x78] sm:$0xff]
        %v436 = vld [vmem:[#allocation5 + $0x80] sm:$0xff]
        %v437 = vld [vmem:[#allocation5 + $0x88] sm:$0xff]
        %v438 = vld [vmem:[#allocation5 + $0x90] sm:$0xff]
        %v439 = vld [vmem:[#allocation5 + $0x98] sm:$0xff]
        %v440 = vld [vmem:[#allocation5 + $0xa0] sm:$0xff]
        %v441 = vld [vmem:[#allocation5 + $0xa8] sm:$0xff]
        %v442 = vld [vmem:[#allocation5 + $0xb0] sm:$0xff]
        %v443 = vld [vmem:[#allocation5 + $0xb8] sm:$0xff]
        %444 = vmatprep.subr.mxu0 %v389
        %445 = vmatpush1.msra.mxu0 %v388
        %446 = vmatprep.subr.mxu0 %v391
        %447 = vmatpush1.msra.mxu0 %v390
        %448 = vmatprep.subr.mxu0 %v393
        %449 = vmatpush1.msra.mxu0 %v392
        %450 = vmatprep.subr.mxu0 %v395
        %451 = vmatpush1.msra.mxu0 %v394
        %452 = vmatprep.subr.mxu0 %v397
        %453 = vmatpush1.msra.mxu0 %v396
        %454 = vmatprep.subr.mxu0 %v399
        %455 = vmatpush1.msra.mxu0 %v398
        %456 = vmatprep.subr.mxu0 %v401
        %457 = vmatpush1.msra.mxu0 %v400
        %458 = vmatprep.subr.mxu0 %v403
        %459 = vmatpush1.msra.mxu0 %v402
        %460 = vmatprep.subr.mxu0 %v405
        %461 = vmatpush1.msra.mxu0 %v404
        %462 = vmatprep.subr.mxu0 %v407
        %463 = vmatpush1.msra.mxu0 %v406
        %464 = vmatprep.subr.mxu0 %v409
        %465 = vmatpush1.msra.mxu0 %v408
        %466 = vmatprep.subr.mxu0 %v411
        %467 = vmatpush1.msra.mxu0 %v410
        %468 = vmatprep.subr.mxu0 %v413
        %469 = vmatpush1.msra.mxu0 %v412
        %470 = vmatprep.subr.mxu0 %v415
        %471 = vmatpush1.msra.mxu0 %v414
        %472 = vmatprep.subr.mxu0 %v417
        %473 = vmatpush1.msra.mxu0 %v416
        %474 = vmatprep.subr.mxu0 %v419
        %475 = vmatpush1.msra.mxu0 %v418
        %476 = vmatprep.subr.mxu0 0.0
        %477 = vmatpush1.msra.mxu0 0.0
        %478 = vmatprep.subr.mxu0 0.0
        %479 = vmatpush1.msra.mxu0 0.0
        %480 = vmatprep.subr.mxu0 0.0
        %481 = vmatpush1.msra.mxu0 0.0
        %482 = vmatprep.subr.mxu0 0.0
        %483 = vmatpush1.msra.mxu0 0.0
        %484 = vmatprep.subr.mxu0 0.0
        %485 = vmatpush1.msra.mxu0 0.0
        %486 = vmatprep.subr.mxu0 0.0
        %487 = vmatpush1.msra.mxu0 0.0
        %488 = vmatprep.subr.mxu0 0.0
        %489 = vmatpush1.msra.mxu0 0.0
        %490 = vmatprep.subr.mxu0 0.0
        %491 = vmatpush1.msra.mxu0 0.0
        %492 = vmatprep.subr.mxu0 0.0
        %493 = vmatpush1.msra.mxu0 0.0
        %494 = vmatprep.subr.mxu0 0.0
        %495 = vmatpush1.msra.mxu0 0.0
        %496 = vmatprep.subr.mxu0 0.0
        %497 = vmatpush1.msra.mxu0 0.0
        %498 = vmatprep.subr.mxu0 0.0
        %499 = vmatpush1.msra.mxu0 0.0
        %500 = vmatprep.subr.mxu0 0.0
        %501 = vmatpush1.msra.mxu0 0.0
        %502 = vmatprep.subr.mxu0 0.0
        %503 = vmatpush1.msra.mxu0 0.0
        %504 = vmatprep.subr.mxu0 0.0
        %505 = vmatpush1.msra.mxu0 0.0
        %506 = vmatprep.subr.mxu0 0.0
        %507 = vmatpush1.msra.mxu0 0.0
        %508 = vmatprep.mubr.f32.mxu0 0.0
        %509 = vmatmul.mubr.f32.gmra.mrb[0].mxu0 %v420
        %v510 = vpop.f32.mrb[0].mxu0
        %v511 = vadd.f32 0.0, %v510
        %v512 = vpop.f32.mrb[0].mxu0
        %v513 = vadd.f32 0.0, %v512
        %514 = vmatprep.mubr.f32.mxu0 0.0
        %515 = vmatmul.mubr.f32.gmra.mrb[0].mxu0 %v421
        %v516 = vpop.f32.mrb[0].mxu0
        %v517 = vadd.f32 0.0, %v516
        %v518 = vpop.f32.mrb[0].mxu0
        %v519 = vadd.f32 0.0, %v518
        %520 = vmatprep.mubr.f32.mxu0 0.0
        %521 = vmatmul.mubr.f32.gmra.mrb[0].mxu0 %v422
        %v522 = vpop.f32.mrb[0].mxu0
        %v523 = vadd.f32 0.0, %v522
        %v524 = vpop.f32.mrb[0].mxu0
        %v525 = vadd.f32 0.0, %v524
        %526 = vmatprep.mubr.f32.mxu0 0.0
        %527 = vmatmul.mubr.f32.gmra.mrb[0].mxu0 %v423
        %v528 = vpop.f32.mrb[0].mxu0
        %v529 = vadd.f32 0.0, %v528
        %v530 = vpop.f32.mrb[0].mxu0
        %v531 = vadd.f32 0.0, %v530
        %532 = vmatprep.mubr.f32.mxu0 0.0
        %533 = vmatmul.mubr.f32.gmra.mrb[0].mxu0 %v424
        %v534 = vpop.f32.mrb[0].mxu0
        %v535 = vadd.f32 0.0, %v534
        %v536 = vpop.f32.mrb[0].mxu0
        %v537 = vadd.f32 0.0, %v536
        %538 = vmatprep.mubr.f32.mxu0 0.0
        %539 = vmatmul.mubr.f32.gmra.mrb[0].mxu0 %v425
        %v540 = vpop.f32.mrb[0].mxu0
        %v541 = vadd.f32 0.0, %v540
        %v542 = vpop.f32.mrb[0].mxu0
        %v543 = vadd.f32 0.0, %v542
        %544 = vmatprep.mubr.f32.mxu0 0.0
        %545 = vmatmul.mubr.f32.gmra.mrb[0].mxu0 %v426
        %v546 = vpop.f32.mrb[0].mxu0
        %v547 = vadd.f32 0.0, %v546
        %v548 = vpop.f32.mrb[0].mxu0
        %v549 = vadd.f32 0.0, %v548
        %550 = vmatprep.mubr.f32.mxu0 0.0
        %551 = vmatmul.mubr.f32.gmra.mrb[0].mxu0 %v427
        %v552 = vpop.f32.mrb[0].mxu0
        %v553 = vadd.f32 0.0, %v552
        %v554 = vpop.f32.mrb[0].mxu0
        %v555 = vadd.f32 0.0, %v554
        %556 = vmatprep.mubr.f32.mxu0 0.0
        %557 = vmatmul.mubr.f32.gmra.mrb[0].mxu0 %v428
        %v558 = vpop.f32.mrb[0].mxu0
        %v559 = vadd.f32 0.0, %v558
        %v560 = vpop.f32.mrb[0].mxu0
        %v561 = vadd.f32 0.0, %v560
        %562 = vmatprep.mubr.f32.mxu0 0.0
        %563 = vmatmul.mubr.f32.gmra.mrb[0].mxu0 %v429
        %v564 = vpop.f32.mrb[0].mxu0
        %v565 = vadd.f32 0.0, %v564
        %v566 = vpop.f32.mrb[0].mxu0
        %v567 = vadd.f32 0.0, %v566
        %568 = vmatprep.mubr.f32.mxu0 0.0
        %569 = vmatmul.mubr.f32.gmra.mrb[0].mxu0 %v430
        %v570 = vpop.f32.mrb[0].mxu0
        %v571 = vadd.f32 0.0, %v570
        %v572 = vpop.f32.mrb[0].mxu0
        %v573 = vadd.f32 0.0, %v572
        %574 = vmatprep.mubr.f32.mxu0 0.0
        %575 = vmatmul.mubr.f32.gmra.mrb[0].mxu0 %v431
        %v576 = vpop.f32.mrb[0].mxu0
        %v577 = vadd.f32 0.0, %v576
        %v578 = vpop.f32.mrb[0].mxu0
        %v579 = vadd.f32 0.0, %v578
        %580 = vmatprep.mubr.f32.mxu0 0.0
        %581 = vmatmul.mubr.f32.gmra.mrb[0].mxu0 %v432
        %v582 = vpop.f32.mrb[0].mxu0
        %v583 = vadd.f32 0.0, %v582
        %v584 = vpop.f32.mrb[0].mxu0
        %v585 = vadd.f32 0.0, %v584
        %586 = vmatprep.mubr.f32.mxu0 0.0
        %587 = vmatmul.mubr.f32.gmra.mrb[0].mxu0 %v433
        %v588 = vpop.f32.mrb[0].mxu0
        %v589 = vadd.f32 0.0, %v588
        %v590 = vpop.f32.mrb[0].mxu0
        %v591 = vadd.f32 0.0, %v590
        %592 = vmatprep.mubr.f32.mxu0 0.0
        %593 = vmatmul.mubr.f32.gmra.mrb[0].mxu0 %v434
        %v594 = vpop.f32.mrb[0].mxu0
        %v595 = vadd.f32 0.0, %v594
        %v596 = vpop.f32.mrb[0].mxu0
        %v597 = vadd.f32 0.0, %v596
        %598 = vmatprep.mubr.f32.mxu0 0.0
        %599 = vmatmul.mubr.f32.gmra.mrb[0].mxu0 %v435
        %v600 = vpop.f32.mrb[0].mxu0
        %v601 = vadd.f32 0.0, %v600
        %v602 = vpop.f32.mrb[0].mxu0
        %v603 = vadd.f32 0.0, %v602
        %604 = vmatprep.mubr.f32.mxu0 0.0
        %605 = vmatmul.mubr.f32.gmra.mrb[0].mxu0 %v436
        %v606 = vpop.f32.mrb[0].mxu0
        %v607 = vadd.f32 0.0, %v606
        %v608 = vpop.f32.mrb[0].mxu0
        %v609 = vadd.f32 0.0, %v608
        %610 = vmatprep.mubr.f32.mxu0 0.0
        %611 = vmatmul.mubr.f32.gmra.mrb[0].mxu0 %v437
        %v612 = vpop.f32.mrb[0].mxu0
        %v613 = vadd.f32 0.0, %v612
        %v614 = vpop.f32.mrb[0].mxu0
        %v615 = vadd.f32 0.0, %v614
        %616 = vmatprep.mubr.f32.mxu0 0.0
        %617 = vmatmul.mubr.f32.gmra.mrb[0].mxu0 %v438
        %v618 = vpop.f32.mrb[0].mxu0
        %v619 = vadd.f32 0.0, %v618
        %v620 = vpop.f32.mrb[0].mxu0
        %v621 = vadd.f32 0.0, %v620
        %622 = vmatprep.mubr.f32.mxu0 0.0
        %623 = vmatmul.mubr.f32.gmra.mrb[0].mxu0 %v439
        %v624 = vpop.f32.mrb[0].mxu0
        %v625 = vadd.f32 0.0, %v624
        %v626 = vpop.f32.mrb[0].mxu0
        %v627 = vadd.f32 0.0, %v626
        %628 = vmatprep.mubr.f32.mxu0 0.0
        %629 = vmatmul.mubr.f32.gmra.mrb[0].mxu0 %v440
        %v630 = vpop.f32.mrb[0].mxu0
        %v631 = vadd.f32 0.0, %v630
        %v632 = vpop.f32.mrb[0].mxu0
        %v633 = vadd.f32 0.0, %v632
        %634 = vmatprep.mubr.f32.mxu0 0.0
        %635 = vmatmul.mubr.f32.gmra.mrb[0].mxu0 %v441
        %v636 = vpop.f32.mrb[0].mxu0
        %v637 = vadd.f32 0.0, %v636
        %v638 = vpop.f32.mrb[0].mxu0
        %v639 = vadd.f32 0.0, %v638
        %640 = vmatprep.mubr.f32.mxu0 0.0
        %641 = vmatmul.mubr.f32.gmra.mrb[0].mxu0 %v442
        %v642 = vpop.f32.mrb[0].mxu0
        %v643 = vadd.f32 0.0, %v642
        %v644 = vpop.f32.mrb[0].mxu0
        %v645 = vadd.f32 0.0, %v644
        %646 = vmatprep.mubr.f32.mxu0 0.0
        %647 = vmatmul.mubr.f32.gmra.mrb[0].mxu0 %v443
        %v648 = vpop.f32.mrb[0].mxu0
        %v649 = vadd.f32 0.0, %v648
        %v650 = vpop.f32.mrb[0].mxu0
        %v651 = vadd.f32 0.0, %v650
        %652 = vdwg.mxu0
        %v653 = vld [vmem:[%s3] sm:$0xff]
        %v654 = vld [vmem:[%s3 + $0x8] sm:$0xff]
        %v655 = vld [vmem:[%s3 + $0x10] sm:$0xff]
        %v656 = vld [vmem:[%s3 + $0x18] sm:$0xff]
        %v657 = vld [vmem:[%s3 + $0x20] sm:$0xff]
        %v658 = vld [vmem:[%s3 + $0x28] sm:$0xff]
        %v659 = vld [vmem:[%s3 + $0x30] sm:$0xff]
        %v660 = vld [vmem:[%s3 + $0x38] sm:$0xff]
        %v661 = vld [vmem:[%s3 + $0x40] sm:$0xff]
        %v662 = vld [vmem:[%s3 + $0x48] sm:$0xff]
        %v663 = vld [vmem:[%s3 + $0x50] sm:$0xff]
        %v664 = vld [vmem:[%s3 + $0x58] sm:$0xff]
        %v665 = vld [vmem:[%s3 + $0x60] sm:$0xff]
        %v666 = vld [vmem:[%s3 + $0x68] sm:$0xff]
        %v667 = vld [vmem:[%s3 + $0x70] sm:$0xff]
        %v668 = vld [vmem:[%s3 + $0x78] sm:$0xff]
        %v669 = vld [vmem:[%s3 + $0x80] sm:$0xff]
        %v670 = vld [vmem:[%s3 + $0x88] sm:$0xff]
        %v671 = vld [vmem:[%s3 + $0x90] sm:$0xff]
        %v672 = vld [vmem:[%s3 + $0x98] sm:$0xff]
        %v673 = vld [vmem:[%s3 + $0xa0] sm:$0xff]
        %v674 = vld [vmem:[%s3 + $0xa8] sm:$0xff]
        %v675 = vld [vmem:[%s3 + $0xb0] sm:$0xff]
        %v676 = vld [vmem:[%s3 + $0xb8] sm:$0xff]
        %677 = vrot.lane.b32.xlu0 %v511, 1
        %v678 = vpop.permute.xlu0 %677
        %679 = vrot.lane.b32.xlu0 %v517, 1
        %v680 = vpop.permute.xlu0 %679
        %681 = vrot.lane.b32.xlu0 %v523, 1
        %v682 = vpop.permute.xlu0 %681
        %683 = vrot.lane.b32.xlu0 %v529, 1
        %v684 = vpop.permute.xlu0 %683
        %685 = vrot.lane.b32.xlu0 %v535, 1
        %v686 = vpop.permute.xlu0 %685
        %687 = vrot.lane.b32.xlu0 %v541, 1
        %v688 = vpop.permute.xlu0 %687
        %689 = vrot.lane.b32.xlu0 %v547, 1
        %v690 = vpop.permute.xlu0 %689
        %691 = vrot.lane.b32.xlu0 %v553, 1
        %v692 = vpop.permute.xlu0 %691
        %693 = vrot.lane.b32.xlu0 %v559, 1
        %v694 = vpop.permute.xlu0 %693
        %695 = vrot.lane.b32.xlu0 %v565, 1
        %v696 = vpop.permute.xlu0 %695
        %697 = vrot.lane.b32.xlu0 %v571, 1
        %v698 = vpop.permute.xlu0 %697
        %699 = vrot.lane.b32.xlu0 %v577, 1
        %v700 = vpop.permute.xlu0 %699
        %701 = vrot.lane.b32.xlu0 %v583, 1
        %v702 = vpop.permute.xlu0 %701
        %703 = vrot.lane.b32.xlu0 %v589, 1
        %v704 = vpop.permute.xlu0 %703
        %705 = vrot.lane.b32.xlu0 %v595, 1
        %v706 = vpop.permute.xlu0 %705
        %707 = vrot.lane.b32.xlu0 %v601, 1
        %v708 = vpop.permute.xlu0 %707
        %709 = vrot.lane.b32.xlu0 %v607, 1
        %v710 = vpop.permute.xlu0 %709
        %711 = vrot.lane.b32.xlu0 %v613, 1
        %v712 = vpop.permute.xlu0 %711
        %713 = vrot.lane.b32.xlu0 %v619, 1
        %v714 = vpop.permute.xlu0 %713
        %715 = vrot.lane.b32.xlu0 %v625, 1
        %v716 = vpop.permute.xlu0 %715
        %717 = vrot.lane.b32.xlu0 %v631, 1
        %v718 = vpop.permute.xlu0 %717
        %719 = vrot.lane.b32.xlu0 %v637, 1
        %v720 = vpop.permute.xlu0 %719
        %721 = vrot.lane.b32.xlu0 %v643, 1
        %v722 = vpop.permute.xlu0 %721
        %723 = vrot.lane.b32.xlu0 %v649, 1
        %v724 = vpop.permute.xlu0 %723
        %725 = vrot.lane.b32.xlu0 %v513, 1
        %v726 = vpop.permute.xlu0 %725
        %727 = vrot.lane.b32.xlu0 %v519, 1
        %v728 = vpop.permute.xlu0 %727
        %729 = vrot.lane.b32.xlu0 %v525, 1
        %v730 = vpop.permute.xlu0 %729
        %731 = vrot.lane.b32.xlu0 %v531, 1
        %v732 = vpop.permute.xlu0 %731
        %733 = vrot.lane.b32.xlu0 %v537, 1
        %v734 = vpop.permute.xlu0 %733
        %735 = vrot.lane.b32.xlu0 %v543, 1
        %v736 = vpop.permute.xlu0 %735
        %737 = vrot.lane.b32.xlu0 %v549, 1
        %v738 = vpop.permute.xlu0 %737
        %739 = vrot.lane.b32.xlu0 %v555, 1
        %v740 = vpop.permute.xlu0 %739
        %741 = vrot.lane.b32.xlu0 %v561, 1
        %v742 = vpop.permute.xlu0 %741
        %743 = vrot.lane.b32.xlu0 %v567, 1
        %v744 = vpop.permute.xlu0 %743
        %745 = vrot.lane.b32.xlu0 %v573, 1
        %v746 = vpop.permute.xlu0 %745
        %747 = vrot.lane.b32.xlu0 %v579, 1
        %v748 = vpop.permute.xlu0 %747
        %749 = vrot.lane.b32.xlu0 %v585, 1
        %v750 = vpop.permute.xlu0 %749
        %751 = vrot.lane.b32.xlu0 %v591, 1
        %v752 = vpop.permute.xlu0 %751
        %753 = vrot.lane.b32.xlu0 %v597, 1
        %v754 = vpop.permute.xlu0 %753
        %755 = vrot.lane.b32.xlu0 %v603, 1
        %v756 = vpop.permute.xlu0 %755
        %757 = vrot.lane.b32.xlu0 %v609, 1
        %v758 = vpop.permute.xlu0 %757
        %759 = vrot.lane.b32.xlu0 %v615, 1
        %v760 = vpop.permute.xlu0 %759
        %761 = vrot.lane.b32.xlu0 %v621, 1
        %v762 = vpop.permute.xlu0 %761
        %763 = vrot.lane.b32.xlu0 %v627, 1
        %v764 = vpop.permute.xlu0 %763
        %765 = vrot.lane.b32.xlu0 %v633, 1
        %v766 = vpop.permute.xlu0 %765
        %767 = vrot.lane.b32.xlu0 %v639, 1
        %v768 = vpop.permute.xlu0 %767
        %769 = vrot.lane.b32.xlu0 %v645, 1
        %v770 = vpop.permute.xlu0 %769
        %771 = vrot.lane.b32.xlu0 %v651, 1
        %v772 = vpop.permute.xlu0 %771
        %v773 = vlaneseq
        %v774 = vand.u32 %v773, 127
        %vm775 = vcmp.lt.s32.totalorder %v774, 1
        %v776 = vsel %vm775, %v678, %v726
        %v777 = vsel %vm775, %v680, %v728
        %v778 = vsel %vm775, %v682, %v730
        %v779 = vsel %vm775, %v684, %v732
        %v780 = vsel %vm775, %v686, %v734
        %v781 = vsel %vm775, %v688, %v736
        %v782 = vsel %vm775, %v690, %v738
        %v783 = vsel %vm775, %v692, %v740
        %v784 = vsel %vm775, %v694, %v742
        %v785 = vsel %vm775, %v696, %v744
        %v786 = vsel %vm775, %v698, %v746
        %v787 = vsel %vm775, %v700, %v748
        %v788 = vsel %vm775, %v702, %v750
        %v789 = vsel %vm775, %v704, %v752
        %v790 = vsel %vm775, %v706, %v754
        %v791 = vsel %vm775, %v708, %v756
        %v792 = vsel %vm775, %v710, %v758
        %v793 = vsel %vm775, %v712, %v760
        %v794 = vsel %vm775, %v714, %v762
        %v795 = vsel %vm775, %v716, %v764
        %v796 = vsel %vm775, %v718, %v766
        %v797 = vsel %vm775, %v720, %v768
        %v798 = vsel %vm775, %v722, %v770
        %v799 = vsel %vm775, %v724, %v772
        %v800 = vsel %vm775, %v726, %v678
        %v801 = vsel %vm775, %v728, %v680
        %v802 = vsel %vm775, %v730, %v682
        %v803 = vsel %vm775, %v732, %v684
        %v804 = vsel %vm775, %v734, %v686
        %v805 = vsel %vm775, %v736, %v688
        %v806 = vsel %vm775, %v738, %v690
        %v807 = vsel %vm775, %v740, %v692
        %v808 = vsel %vm775, %v742, %v694
        %v809 = vsel %vm775, %v744, %v696
        %v810 = vsel %vm775, %v746, %v698
        %v811 = vsel %vm775, %v748, %v700
        %v812 = vsel %vm775, %v750, %v702
        %v813 = vsel %vm775, %v752, %v704
        %v814 = vsel %vm775, %v754, %v706
        %v815 = vsel %vm775, %v756, %v708
        %v816 = vsel %vm775, %v758, %v710
        %v817 = vsel %vm775, %v760, %v712
        %v818 = vsel %vm775, %v762, %v714
        %v819 = vsel %vm775, %v764, %v716
        %v820 = vsel %vm775, %v766, %v718
        %v821 = vsel %vm775, %v768, %v720
        %v822 = vsel %vm775, %v770, %v722
        %v823 = vsel %vm775, %v772, %v724
        %v824 = vld [vmem:[%s7] ss:$4 sm:$0x3]
        %v826 = vlaneseq
        %v827 = vshrl.u32 %v826, 7
        %v828 = vsub.s32 0, %v827
        %v829 = vrot.slane %v824, %v828
        %v830 = vlaneseq
        %v831 = vshrl.u32 %v830, 7
        %v832 = vsub.s32 1, %v831
        %v833 = vrot.slane %v824, %v832
        %v836 = vmul.f32 %v800, %v829
        %v837 = vmul.f32 %v776, %v833
        %v838 = vmul.f32 %v801, %v829
        %v839 = vmul.f32 %v777, %v833
        %v840 = vmul.f32 %v802, %v829
        %v841 = vmul.f32 %v778, %v833
        %v842 = vmul.f32 %v803, %v829
        %v843 = vmul.f32 %v779, %v833
        %v844 = vmul.f32 %v804, %v829
        %v845 = vmul.f32 %v780, %v833
        %v846 = vmul.f32 %v805, %v829
        %v847 = vmul.f32 %v781, %v833
        %v848 = vmul.f32 %v806, %v829
        %v849 = vmul.f32 %v782, %v833
        %v850 = vmul.f32 %v807, %v829
        %v851 = vmul.f32 %v783, %v833
        %v852 = vmul.f32 %v808, %v829
        %v853 = vmul.f32 %v784, %v833
        %v854 = vmul.f32 %v809, %v829
        %v855 = vmul.f32 %v785, %v833
        %v856 = vmul.f32 %v810, %v829
        %v857 = vmul.f32 %v786, %v833
        %v858 = vmul.f32 %v811, %v829
        %v859 = vmul.f32 %v787, %v833
        %v860 = vmul.f32 %v812, %v829
        %v861 = vmul.f32 %v788, %v833
        %v862 = vmul.f32 %v813, %v829
        %v863 = vmul.f32 %v789, %v833
        %v864 = vmul.f32 %v814, %v829
        %v865 = vmul.f32 %v790, %v833
        %v866 = vmul.f32 %v815, %v829
        %v867 = vmul.f32 %v791, %v833
        %v868 = vmul.f32 %v816, %v829
        %v869 = vmul.f32 %v792, %v833
        %v870 = vmul.f32 %v817, %v829
        %v871 = vmul.f32 %v793, %v833
        %v872 = vmul.f32 %v818, %v829
        %v873 = vmul.f32 %v794, %v833
        %v874 = vmul.f32 %v819, %v829
        %v875 = vmul.f32 %v795, %v833
        %v876 = vmul.f32 %v820, %v829
        %v877 = vmul.f32 %v796, %v833
        %v878 = vmul.f32 %v821, %v829
        %v879 = vmul.f32 %v797, %v833
        %v880 = vmul.f32 %v822, %v829
        %v881 = vmul.f32 %v798, %v833
        %v882 = vmul.f32 %v823, %v829
        %v883 = vmul.f32 %v799, %v833
        %884 = vrot.lane.b32.xlu0 %v511, 127
        %v885 = vpop.permute.xlu0 %884
        %886 = vrot.lane.b32.xlu0 %v517, 127
        %v887 = vpop.permute.xlu0 %886
        %888 = vrot.lane.b32.xlu0 %v523, 127
        %v889 = vpop.permute.xlu0 %888
        %890 = vrot.lane.b32.xlu0 %v529, 127
        %v891 = vpop.permute.xlu0 %890
        %892 = vrot.lane.b32.xlu0 %v535, 127
        %v893 = vpop.permute.xlu0 %892
        %894 = vrot.lane.b32.xlu0 %v541, 127
        %v895 = vpop.permute.xlu0 %894
        %896 = vrot.lane.b32.xlu0 %v547, 127
        %v897 = vpop.permute.xlu0 %896
        %898 = vrot.lane.b32.xlu0 %v553, 127
        %v899 = vpop.permute.xlu0 %898
        %900 = vrot.lane.b32.xlu0 %v559, 127
        %v901 = vpop.permute.xlu0 %900
        %902 = vrot.lane.b32.xlu0 %v565, 127
        %v903 = vpop.permute.xlu0 %902
        %904 = vrot.lane.b32.xlu0 %v571, 127
        %v905 = vpop.permute.xlu0 %904
        %906 = vrot.lane.b32.xlu0 %v577, 127
        %v907 = vpop.permute.xlu0 %906
        %908 = vrot.lane.b32.xlu0 %v583, 127
        %v909 = vpop.permute.xlu0 %908
        %910 = vrot.lane.b32.xlu0 %v589, 127
        %v911 = vpop.permute.xlu0 %910
        %912 = vrot.lane.b32.xlu0 %v595, 127
        %v913 = vpop.permute.xlu0 %912
        %914 = vrot.lane.b32.xlu0 %v601, 127
        %v915 = vpop.permute.xlu0 %914
        %916 = vrot.lane.b32.xlu0 %v607, 127
        %v917 = vpop.permute.xlu0 %916
        %918 = vrot.lane.b32.xlu0 %v613, 127
        %v919 = vpop.permute.xlu0 %918
        %920 = vrot.lane.b32.xlu0 %v619, 127
        %v921 = vpop.permute.xlu0 %920
        %922 = vrot.lane.b32.xlu0 %v625, 127
        %v923 = vpop.permute.xlu0 %922
        %924 = vrot.lane.b32.xlu0 %v631, 127
        %v925 = vpop.permute.xlu0 %924
        %926 = vrot.lane.b32.xlu0 %v637, 127
        %v927 = vpop.permute.xlu0 %926
        %928 = vrot.lane.b32.xlu0 %v643, 127
        %v929 = vpop.permute.xlu0 %928
        %930 = vrot.lane.b32.xlu0 %v649, 127
        %v931 = vpop.permute.xlu0 %930
        %932 = vrot.lane.b32.xlu0 %v513, 127
        %v933 = vpop.permute.xlu0 %932
        %934 = vrot.lane.b32.xlu0 %v519, 127
        %v935 = vpop.permute.xlu0 %934
        %936 = vrot.lane.b32.xlu0 %v525, 127
        %v937 = vpop.permute.xlu0 %936
        %938 = vrot.lane.b32.xlu0 %v531, 127
        %v939 = vpop.permute.xlu0 %938
        %940 = vrot.lane.b32.xlu0 %v537, 127
        %v941 = vpop.permute.xlu0 %940
        %942 = vrot.lane.b32.xlu0 %v543, 127
        %v943 = vpop.permute.xlu0 %942
        %944 = vrot.lane.b32.xlu0 %v549, 127
        %v945 = vpop.permute.xlu0 %944
        %946 = vrot.lane.b32.xlu0 %v555, 127
        %v947 = vpop.permute.xlu0 %946
        %948 = vrot.lane.b32.xlu0 %v561, 127
        %v949 = vpop.permute.xlu0 %948
        %950 = vrot.lane.b32.xlu0 %v567, 127
        %v951 = vpop.permute.xlu0 %950
        %952 = vrot.lane.b32.xlu0 %v573, 127
        %v953 = vpop.permute.xlu0 %952
        %954 = vrot.lane.b32.xlu0 %v579, 127
        %v955 = vpop.permute.xlu0 %954
        %956 = vrot.lane.b32.xlu0 %v585, 127
        %v957 = vpop.permute.xlu0 %956
        %958 = vrot.lane.b32.xlu0 %v591, 127
        %v959 = vpop.permute.xlu0 %958
        %960 = vrot.lane.b32.xlu0 %v597, 127
        %v961 = vpop.permute.xlu0 %960
        %962 = vrot.lane.b32.xlu0 %v603, 127
        %v963 = vpop.permute.xlu0 %962
        %964 = vrot.lane.b32.xlu0 %v609, 127
        %v965 = vpop.permute.xlu0 %964
        %966 = vrot.lane.b32.xlu0 %v615, 127
        %v967 = vpop.permute.xlu0 %966
        %968 = vrot.lane.b32.xlu0 %v621, 127
        %v969 = vpop.permute.xlu0 %968
        %970 = vrot.lane.b32.xlu0 %v627, 127
        %v971 = vpop.permute.xlu0 %970
        %972 = vrot.lane.b32.xlu0 %v633, 127
        %v973 = vpop.permute.xlu0 %972
        %974 = vrot.lane.b32.xlu0 %v639, 127
        %v975 = vpop.permute.xlu0 %974
        %976 = vrot.lane.b32.xlu0 %v645, 127
        %v977 = vpop.permute.xlu0 %976
        %978 = vrot.lane.b32.xlu0 %v651, 127
        %v979 = vpop.permute.xlu0 %978
        %vm980 = vcmp.lt.s32.totalorder %v774, 127
        %v981 = vsel %vm980, %v885, %v933
        %v982 = vsel %vm980, %v887, %v935
        %v983 = vsel %vm980, %v889, %v937
        %v984 = vsel %vm980, %v891, %v939
        %v985 = vsel %vm980, %v893, %v941
        %v986 = vsel %vm980, %v895, %v943
        %v987 = vsel %vm980, %v897, %v945
        %v988 = vsel %vm980, %v899, %v947
        %v989 = vsel %vm980, %v901, %v949
        %v990 = vsel %vm980, %v903, %v951
        %v991 = vsel %vm980, %v905, %v953
        %v992 = vsel %vm980, %v907, %v955
        %v993 = vsel %vm980, %v909, %v957
        %v994 = vsel %vm980, %v911, %v959
        %v995 = vsel %vm980, %v913, %v961
        %v996 = vsel %vm980, %v915, %v963
        %v997 = vsel %vm980, %v917, %v965
        %v998 = vsel %vm980, %v919, %v967
        %v999 = vsel %vm980, %v921, %v969
        %v1000 = vsel %vm980, %v923, %v971
        %v1001 = vsel %vm980, %v925, %v973
        %v1002 = vsel %vm980, %v927, %v975
        %v1003 = vsel %vm980, %v929, %v977
        %v1004 = vsel %vm980, %v931, %v979
        %v1005 = vsel %vm980, %v933, %v885
        %v1006 = vsel %vm980, %v935, %v887
        %v1007 = vsel %vm980, %v937, %v889
        %v1008 = vsel %vm980, %v939, %v891
        %v1009 = vsel %vm980, %v941, %v893
        %v1010 = vsel %vm980, %v943, %v895
        %v1011 = vsel %vm980, %v945, %v897
        %v1012 = vsel %vm980, %v947, %v899
        %v1013 = vsel %vm980, %v949, %v901
        %v1014 = vsel %vm980, %v951, %v903
        %v1015 = vsel %vm980, %v953, %v905
        %v1016 = vsel %vm980, %v955, %v907
        %v1017 = vsel %vm980, %v957, %v909
        %v1018 = vsel %vm980, %v959, %v911
        %v1019 = vsel %vm980, %v961, %v913
        %v1020 = vsel %vm980, %v963, %v915
        %v1021 = vsel %vm980, %v965, %v917
        %v1022 = vsel %vm980, %v967, %v919
        %v1023 = vsel %vm980, %v969, %v921
        %v1024 = vsel %vm980, %v971, %v923
        %v1025 = vsel %vm980, %v973, %v925
        %v1026 = vsel %vm980, %v975, %v927
        %v1027 = vsel %vm980, %v977, %v929
        %v1028 = vsel %vm980, %v979, %v931
        %s1029 = scalar_lea.vmem %s7, 1
        %v1030 = vld [vmem:[%s1029] ss:$4 sm:$0x3]
        %v1032 = vlaneseq
        %v1033 = vshrl.u32 %v1032, 7
        %v1034 = vsub.s32 0, %v1033
        %v1035 = vrot.slane %v1030, %v1034
        %v1036 = vlaneseq
        %v1037 = vshrl.u32 %v1036, 7
        %v1038 = vsub.s32 1, %v1037
        %v1039 = vrot.slane %v1030, %v1038
        %v1042 = vmul.f32 %v981, %v1035
        %v1043 = vmul.f32 %v1005, %v1039
        %v1044 = vmul.f32 %v982, %v1035
        %v1045 = vmul.f32 %v1006, %v1039
        %v1046 = vmul.f32 %v983, %v1035
        %v1047 = vmul.f32 %v1007, %v1039
        %v1048 = vmul.f32 %v984, %v1035
        %v1049 = vmul.f32 %v1008, %v1039
        %v1050 = vmul.f32 %v985, %v1035
        %v1051 = vmul.f32 %v1009, %v1039
        %v1052 = vmul.f32 %v986, %v1035
        %v1053 = vmul.f32 %v1010, %v1039
        %v1054 = vmul.f32 %v987, %v1035
        %v1055 = vmul.f32 %v1011, %v1039
        %v1056 = vmul.f32 %v988, %v1035
        %v1057 = vmul.f32 %v1012, %v1039
        %v1058 = vmul.f32 %v989, %v1035
        %v1059 = vmul.f32 %v1013, %v1039
        %v1060 = vmul.f32 %v990, %v1035
        %v1061 = vmul.f32 %v1014, %v1039
        %v1062 = vmul.f32 %v991, %v1035
        %v1063 = vmul.f32 %v1015, %v1039
        %v1064 = vmul.f32 %v992, %v1035
        %v1065 = vmul.f32 %v1016, %v1039
        %v1066 = vmul.f32 %v993, %v1035
        %v1067 = vmul.f32 %v1017, %v1039
        %v1068 = vmul.f32 %v994, %v1035
        %v1069 = vmul.f32 %v1018, %v1039
        %v1070 = vmul.f32 %v995, %v1035
        %v1071 = vmul.f32 %v1019, %v1039
        %v1072 = vmul.f32 %v996, %v1035
        %v1073 = vmul.f32 %v1020, %v1039
        %v1074 = vmul.f32 %v997, %v1035
        %v1075 = vmul.f32 %v1021, %v1039
        %v1076 = vmul.f32 %v998, %v1035
        %v1077 = vmul.f32 %v1022, %v1039
        %v1078 = vmul.f32 %v999, %v1035
        %v1079 = vmul.f32 %v1023, %v1039
        %v1080 = vmul.f32 %v1000, %v1035
        %v1081 = vmul.f32 %v1024, %v1039
        %v1082 = vmul.f32 %v1001, %v1035
        %v1083 = vmul.f32 %v1025, %v1039
        %v1084 = vmul.f32 %v1002, %v1035
        %v1085 = vmul.f32 %v1026, %v1039
        %v1086 = vmul.f32 %v1003, %v1035
        %v1087 = vmul.f32 %v1027, %v1039
        %v1088 = vmul.f32 %v1004, %v1035
        %v1089 = vmul.f32 %v1028, %v1039
        %1091 = vset.pattern.permute.xlu0 0
        %1092 = vperm.xlu0 %1091, %v653
        %v1093 = vpop.permute.xlu0 %1092
        %1096 = vset.pattern.permute.xlu0 0
        %1097 = vperm.xlu0 %1096, %v654
        %v1098 = vpop.permute.xlu0 %1097
        %1101 = vset.pattern.permute.xlu0 0
        %1102 = vperm.xlu0 %1101, %v655
        %v1103 = vpop.permute.xlu0 %1102
        %1106 = vset.pattern.permute.xlu0 0
        %1107 = vperm.xlu0 %1106, %v656
        %v1108 = vpop.permute.xlu0 %1107
        %1111 = vset.pattern.permute.xlu0 0
        %1112 = vperm.xlu0 %1111, %v657
        %v1113 = vpop.permute.xlu0 %1112
        %1116 = vset.pattern.permute.xlu0 0
        %1117 = vperm.xlu0 %1116, %v658
        %v1118 = vpop.permute.xlu0 %1117
        %1121 = vset.pattern.permute.xlu0 0
        %1122 = vperm.xlu0 %1121, %v659
        %v1123 = vpop.permute.xlu0 %1122
        %1126 = vset.pattern.permute.xlu0 0
        %1127 = vperm.xlu0 %1126, %v660
        %v1128 = vpop.permute.xlu0 %1127
        %1131 = vset.pattern.permute.xlu0 0
        %1132 = vperm.xlu0 %1131, %v661
        %v1133 = vpop.permute.xlu0 %1132
        %1136 = vset.pattern.permute.xlu0 0
        %1137 = vperm.xlu0 %1136, %v662
        %v1138 = vpop.permute.xlu0 %1137
        %1141 = vset.pattern.permute.xlu0 0
        %1142 = vperm.xlu0 %1141, %v663
        %v1143 = vpop.permute.xlu0 %1142
        %1146 = vset.pattern.permute.xlu0 0
        %1147 = vperm.xlu0 %1146, %v664
        %v1148 = vpop.permute.xlu0 %1147
        %1151 = vset.pattern.permute.xlu0 0
        %1152 = vperm.xlu0 %1151, %v665
        %v1153 = vpop.permute.xlu0 %1152
        %1156 = vset.pattern.permute.xlu0 0
        %1157 = vperm.xlu0 %1156, %v666
        %v1158 = vpop.permute.xlu0 %1157
        %1161 = vset.pattern.permute.xlu0 0
        %1162 = vperm.xlu0 %1161, %v667
        %v1163 = vpop.permute.xlu0 %1162
        %1166 = vset.pattern.permute.xlu0 0
        %1167 = vperm.xlu0 %1166, %v668
        %v1168 = vpop.permute.xlu0 %1167
        %1171 = vset.pattern.permute.xlu0 0
        %1172 = vperm.xlu0 %1171, %v669
        %v1173 = vpop.permute.xlu0 %1172
        %1176 = vset.pattern.permute.xlu0 0
        %1177 = vperm.xlu0 %1176, %v670
        %v1178 = vpop.permute.xlu0 %1177
        %1181 = vset.pattern.permute.xlu0 0
        %1182 = vperm.xlu0 %1181, %v671
        %v1183 = vpop.permute.xlu0 %1182
        %1186 = vset.pattern.permute.xlu0 0
        %1187 = vperm.xlu0 %1186, %v672
        %v1188 = vpop.permute.xlu0 %1187
        %1191 = vset.pattern.permute.xlu0 0
        %1192 = vperm.xlu0 %1191, %v673
        %v1193 = vpop.permute.xlu0 %1192
        %1196 = vset.pattern.permute.xlu0 0
        %1197 = vperm.xlu0 %1196, %v674
        %v1198 = vpop.permute.xlu0 %1197
        %1201 = vset.pattern.permute.xlu0 0
        %1202 = vperm.xlu0 %1201, %v675
        %v1203 = vpop.permute.xlu0 %1202
        %1206 = vset.pattern.permute.xlu0 0
        %1207 = vperm.xlu0 %1206, %v676
        %v1208 = vpop.permute.xlu0 %1207
        %v1210 = vmul.f32 %v836, %v1093
        %v1211 = vmul.f32 %v837, %v1093
        %v1212 = vmul.f32 %v838, %v1098
        %v1213 = vmul.f32 %v839, %v1098
        %v1214 = vmul.f32 %v840, %v1103
        %v1215 = vmul.f32 %v841, %v1103
        %v1216 = vmul.f32 %v842, %v1108
        %v1217 = vmul.f32 %v843, %v1108
        %v1218 = vmul.f32 %v844, %v1113
        %v1219 = vmul.f32 %v845, %v1113
        %v1220 = vmul.f32 %v846, %v1118
        %v1221 = vmul.f32 %v847, %v1118
        %v1222 = vmul.f32 %v848, %v1123
        %v1223 = vmul.f32 %v849, %v1123
        %v1224 = vmul.f32 %v850, %v1128
        %v1225 = vmul.f32 %v851, %v1128
        %v1226 = vmul.f32 %v852, %v1133
        %v1227 = vmul.f32 %v853, %v1133
        %v1228 = vmul.f32 %v854, %v1138
        %v1229 = vmul.f32 %v855, %v1138
        %v1230 = vmul.f32 %v856, %v1143
        %v1231 = vmul.f32 %v857, %v1143
        %v1232 = vmul.f32 %v858, %v1148
        %v1233 = vmul.f32 %v859, %v1148
        %v1234 = vmul.f32 %v860, %v1153
        %v1235 = vmul.f32 %v861, %v1153
        %v1236 = vmul.f32 %v862, %v1158
        %v1237 = vmul.f32 %v863, %v1158
        %v1238 = vmul.f32 %v864, %v1163
        %v1239 = vmul.f32 %v865, %v1163
        %v1240 = vmul.f32 %v866, %v1168
        %v1241 = vmul.f32 %v867, %v1168
        %v1242 = vmul.f32 %v868, %v1173
        %v1243 = vmul.f32 %v869, %v1173
        %v1244 = vmul.f32 %v870, %v1178
        %v1245 = vmul.f32 %v871, %v1178
        %v1246 = vmul.f32 %v872, %v1183
        %v1247 = vmul.f32 %v873, %v1183
        %v1248 = vmul.f32 %v874, %v1188
        %v1249 = vmul.f32 %v875, %v1188
        %v1250 = vmul.f32 %v876, %v1193
        %v1251 = vmul.f32 %v877, %v1193
        %v1252 = vmul.f32 %v878, %v1198
        %v1253 = vmul.f32 %v879, %v1198
        %v1254 = vmul.f32 %v880, %v1203
        %v1255 = vmul.f32 %v881, %v1203
        %v1256 = vmul.f32 %v882, %v1208
        %v1257 = vmul.f32 %v883, %v1208
        %1258 = vset.pattern.permute.xlu0 1
        %1259 = vperm.xlu0 %1258, %v653
        %v1260 = vpop.permute.xlu0 %1259
        %1262 = vset.pattern.permute.xlu0 1
        %1263 = vperm.xlu0 %1262, %v654
        %v1264 = vpop.permute.xlu0 %1263
        %1266 = vset.pattern.permute.xlu0 1
        %1267 = vperm.xlu0 %1266, %v655
        %v1268 = vpop.permute.xlu0 %1267
        %1270 = vset.pattern.permute.xlu0 1
        %1271 = vperm.xlu0 %1270, %v656
        %v1272 = vpop.permute.xlu0 %1271
        %1274 = vset.pattern.permute.xlu0 1
        %1275 = vperm.xlu0 %1274, %v657
        %v1276 = vpop.permute.xlu0 %1275
        %1278 = vset.pattern.permute.xlu0 1
        %1279 = vperm.xlu0 %1278, %v658
        %v1280 = vpop.permute.xlu0 %1279
        %1282 = vset.pattern.permute.xlu0 1
        %1283 = vperm.xlu0 %1282, %v659
        %v1284 = vpop.permute.xlu0 %1283
        %1286 = vset.pattern.permute.xlu0 1
        %1287 = vperm.xlu0 %1286, %v660
        %v1288 = vpop.permute.xlu0 %1287
        %1290 = vset.pattern.permute.xlu0 1
        %1291 = vperm.xlu0 %1290, %v661
        %v1292 = vpop.permute.xlu0 %1291
        %1294 = vset.pattern.permute.xlu0 1
        %1295 = vperm.xlu0 %1294, %v662
        %v1296 = vpop.permute.xlu0 %1295
        %1298 = vset.pattern.permute.xlu0 1
        %1299 = vperm.xlu0 %1298, %v663
        %v1300 = vpop.permute.xlu0 %1299
        %1302 = vset.pattern.permute.xlu0 1
        %1303 = vperm.xlu0 %1302, %v664
        %v1304 = vpop.permute.xlu0 %1303
        %1306 = vset.pattern.permute.xlu0 1
        %1307 = vperm.xlu0 %1306, %v665
        %v1308 = vpop.permute.xlu0 %1307
        %1310 = vset.pattern.permute.xlu0 1
        %1311 = vperm.xlu0 %1310, %v666
        %v1312 = vpop.permute.xlu0 %1311
        %1314 = vset.pattern.permute.xlu0 1
        %1315 = vperm.xlu0 %1314, %v667
        %v1316 = vpop.permute.xlu0 %1315
        %1318 = vset.pattern.permute.xlu0 1
        %1319 = vperm.xlu0 %1318, %v668
        %v1320 = vpop.permute.xlu0 %1319
        %1322 = vset.pattern.permute.xlu0 1
        %1323 = vperm.xlu0 %1322, %v669
        %v1324 = vpop.permute.xlu0 %1323
        %1326 = vset.pattern.permute.xlu0 1
        %1327 = vperm.xlu0 %1326, %v670
        %v1328 = vpop.permute.xlu0 %1327
        %1330 = vset.pattern.permute.xlu0 1
        %1331 = vperm.xlu0 %1330, %v671
        %v1332 = vpop.permute.xlu0 %1331
        %1334 = vset.pattern.permute.xlu0 1
        %1335 = vperm.xlu0 %1334, %v672
        %v1336 = vpop.permute.xlu0 %1335
        %1338 = vset.pattern.permute.xlu0 1
        %1339 = vperm.xlu0 %1338, %v673
        %v1340 = vpop.permute.xlu0 %1339
        %1342 = vset.pattern.permute.xlu0 1
        %1343 = vperm.xlu0 %1342, %v674
        %v1344 = vpop.permute.xlu0 %1343
        %1346 = vset.pattern.permute.xlu0 1
        %1347 = vperm.xlu0 %1346, %v675
        %v1348 = vpop.permute.xlu0 %1347
        %1350 = vset.pattern.permute.xlu0 1
        %1351 = vperm.xlu0 %1350, %v676
        %v1352 = vpop.permute.xlu0 %1351
        %v1354 = vmul.f32 %v511, %v1260
        %v1355 = vmul.f32 %v513, %v1260
        %v1356 = vmul.f32 %v517, %v1264
        %v1357 = vmul.f32 %v519, %v1264
        %v1358 = vmul.f32 %v523, %v1268
        %v1359 = vmul.f32 %v525, %v1268
        %v1360 = vmul.f32 %v529, %v1272
        %v1361 = vmul.f32 %v531, %v1272
        %v1362 = vmul.f32 %v535, %v1276
        %v1363 = vmul.f32 %v537, %v1276
        %v1364 = vmul.f32 %v541, %v1280
        %v1365 = vmul.f32 %v543, %v1280
        %v1366 = vmul.f32 %v547, %v1284
        %v1367 = vmul.f32 %v549, %v1284
        %v1368 = vmul.f32 %v553, %v1288
        %v1369 = vmul.f32 %v555, %v1288
        %v1370 = vmul.f32 %v559, %v1292
        %v1371 = vmul.f32 %v561, %v1292
        %v1372 = vmul.f32 %v565, %v1296
        %v1373 = vmul.f32 %v567, %v1296
        %v1374 = vmul.f32 %v571, %v1300
        %v1375 = vmul.f32 %v573, %v1300
        %v1376 = vmul.f32 %v577, %v1304
        %v1377 = vmul.f32 %v579, %v1304
        %v1378 = vmul.f32 %v583, %v1308
        %v1379 = vmul.f32 %v585, %v1308
        %v1380 = vmul.f32 %v589, %v1312
        %v1381 = vmul.f32 %v591, %v1312
        %v1382 = vmul.f32 %v595, %v1316
        %v1383 = vmul.f32 %v597, %v1316
        %v1384 = vmul.f32 %v601, %v1320
        %v1385 = vmul.f32 %v603, %v1320
        %v1386 = vmul.f32 %v607, %v1324
        %v1387 = vmul.f32 %v609, %v1324
        %v1388 = vmul.f32 %v613, %v1328
        %v1389 = vmul.f32 %v615, %v1328
        %v1390 = vmul.f32 %v619, %v1332
        %v1391 = vmul.f32 %v621, %v1332
        %v1392 = vmul.f32 %v625, %v1336
        %v1393 = vmul.f32 %v627, %v1336
        %v1394 = vmul.f32 %v631, %v1340
        %v1395 = vmul.f32 %v633, %v1340
        %v1396 = vmul.f32 %v637, %v1344
        %v1397 = vmul.f32 %v639, %v1344
        %v1398 = vmul.f32 %v643, %v1348
        %v1399 = vmul.f32 %v645, %v1348
        %v1400 = vmul.f32 %v649, %v1352
        %v1401 = vmul.f32 %v651, %v1352
        %v1402 = vadd.f32 %v1210, %v1354
        %v1403 = vadd.f32 %v1211, %v1355
        %v1404 = vadd.f32 %v1212, %v1356
        %v1405 = vadd.f32 %v1213, %v1357
        %v1406 = vadd.f32 %v1214, %v1358
        %v1407 = vadd.f32 %v1215, %v1359
        %v1408 = vadd.f32 %v1216, %v1360
        %v1409 = vadd.f32 %v1217, %v1361
        %v1410 = vadd.f32 %v1218, %v1362
        %v1411 = vadd.f32 %v1219, %v1363
        %v1412 = vadd.f32 %v1220, %v1364
        %v1413 = vadd.f32 %v1221, %v1365
        %v1414 = vadd.f32 %v1222, %v1366
        %v1415 = vadd.f32 %v1223, %v1367
        %v1416 = vadd.f32 %v1224, %v1368
        %v1417 = vadd.f32 %v1225, %v1369
        %v1418 = vadd.f32 %v1226, %v1370
        %v1419 = vadd.f32 %v1227, %v1371
        %v1420 = vadd.f32 %v1228, %v1372
        %v1421 = vadd.f32 %v1229, %v1373
        %v1422 = vadd.f32 %v1230, %v1374
        %v1423 = vadd.f32 %v1231, %v1375
        %v1424 = vadd.f32 %v1232, %v1376
        %v1425 = vadd.f32 %v1233, %v1377
        %v1426 = vadd.f32 %v1234, %v1378
        %v1427 = vadd.f32 %v1235, %v1379
        %v1428 = vadd.f32 %v1236, %v1380
        %v1429 = vadd.f32 %v1237, %v1381
        %v1430 = vadd.f32 %v1238, %v1382
        %v1431 = vadd.f32 %v1239, %v1383
        %v1432 = vadd.f32 %v1240, %v1384
        %v1433 = vadd.f32 %v1241, %v1385
        %v1434 = vadd.f32 %v1242, %v1386
        %v1435 = vadd.f32 %v1243, %v1387
        %v1436 = vadd.f32 %v1244, %v1388
        %v1437 = vadd.f32 %v1245, %v1389
        %v1438 = vadd.f32 %v1246, %v1390
        %v1439 = vadd.f32 %v1247, %v1391
        %v1440 = vadd.f32 %v1248, %v1392
        %v1441 = vadd.f32 %v1249, %v1393
        %v1442 = vadd.f32 %v1250, %v1394
        %v1443 = vadd.f32 %v1251, %v1395
        %v1444 = vadd.f32 %v1252, %v1396
        %v1445 = vadd.f32 %v1253, %v1397
        %v1446 = vadd.f32 %v1254, %v1398
        %v1447 = vadd.f32 %v1255, %v1399
        %v1448 = vadd.f32 %v1256, %v1400
        %v1449 = vadd.f32 %v1257, %v1401
        %1450 = vset.pattern.permute.xlu0 2
        %1451 = vperm.xlu0 %1450, %v653
        %v1452 = vpop.permute.xlu0 %1451
        %1454 = vset.pattern.permute.xlu0 2
        %1455 = vperm.xlu0 %1454, %v654
        %v1456 = vpop.permute.xlu0 %1455
        %1458 = vset.pattern.permute.xlu0 2
        %1459 = vperm.xlu0 %1458, %v655
        %v1460 = vpop.permute.xlu0 %1459
        %1462 = vset.pattern.permute.xlu0 2
        %1463 = vperm.xlu0 %1462, %v656
        %v1464 = vpop.permute.xlu0 %1463
        %1466 = vset.pattern.permute.xlu0 2
        %1467 = vperm.xlu0 %1466, %v657
        %v1468 = vpop.permute.xlu0 %1467
        %1470 = vset.pattern.permute.xlu0 2
        %1471 = vperm.xlu0 %1470, %v658
        %v1472 = vpop.permute.xlu0 %1471
        %1474 = vset.pattern.permute.xlu0 2
        %1475 = vperm.xlu0 %1474, %v659
        %v1476 = vpop.permute.xlu0 %1475
        %1478 = vset.pattern.permute.xlu0 2
        %1479 = vperm.xlu0 %1478, %v660
        %v1480 = vpop.permute.xlu0 %1479
        %1482 = vset.pattern.permute.xlu0 2
        %1483 = vperm.xlu0 %1482, %v661
        %v1484 = vpop.permute.xlu0 %1483
        %1486 = vset.pattern.permute.xlu0 2
        %1487 = vperm.xlu0 %1486, %v662
        %v1488 = vpop.permute.xlu0 %1487
        %1490 = vset.pattern.permute.xlu0 2
        %1491 = vperm.xlu0 %1490, %v663
        %v1492 = vpop.permute.xlu0 %1491
        %1494 = vset.pattern.permute.xlu0 2
        %1495 = vperm.xlu0 %1494, %v664
        %v1496 = vpop.permute.xlu0 %1495
        %1498 = vset.pattern.permute.xlu0 2
        %1499 = vperm.xlu0 %1498, %v665
        %v1500 = vpop.permute.xlu0 %1499
        %1502 = vset.pattern.permute.xlu0 2
        %1503 = vperm.xlu0 %1502, %v666
        %v1504 = vpop.permute.xlu0 %1503
        %1506 = vset.pattern.permute.xlu0 2
        %1507 = vperm.xlu0 %1506, %v667
        %v1508 = vpop.permute.xlu0 %1507
        %1510 = vset.pattern.permute.xlu0 2
        %1511 = vperm.xlu0 %1510, %v668
        %v1512 = vpop.permute.xlu0 %1511
        %1514 = vset.pattern.permute.xlu0 2
        %1515 = vperm.xlu0 %1514, %v669
        %v1516 = vpop.permute.xlu0 %1515
        %1518 = vset.pattern.permute.xlu0 2
        %1519 = vperm.xlu0 %1518, %v670
        %v1520 = vpop.permute.xlu0 %1519
        %1522 = vset.pattern.permute.xlu0 2
        %1523 = vperm.xlu0 %1522, %v671
        %v1524 = vpop.permute.xlu0 %1523
        %1526 = vset.pattern.permute.xlu0 2
        %1527 = vperm.xlu0 %1526, %v672
        %v1528 = vpop.permute.xlu0 %1527
        %1530 = vset.pattern.permute.xlu0 2
        %1531 = vperm.xlu0 %1530, %v673
        %v1532 = vpop.permute.xlu0 %1531
        %1534 = vset.pattern.permute.xlu0 2
        %1535 = vperm.xlu0 %1534, %v674
        %v1536 = vpop.permute.xlu0 %1535
        %1538 = vset.pattern.permute.xlu0 2
        %1539 = vperm.xlu0 %1538, %v675
        %v1540 = vpop.permute.xlu0 %1539
        %1542 = vset.pattern.permute.xlu0 2
        %1543 = vperm.xlu0 %1542, %v676
        %v1544 = vpop.permute.xlu0 %1543
        %v1546 = vmul.f32 %v1042, %v1452
        %v1547 = vmul.f32 %v1043, %v1452
        %v1548 = vmul.f32 %v1044, %v1456
        %v1549 = vmul.f32 %v1045, %v1456
        %v1550 = vmul.f32 %v1046, %v1460
        %v1551 = vmul.f32 %v1047, %v1460
        %v1552 = vmul.f32 %v1048, %v1464
        %v1553 = vmul.f32 %v1049, %v1464
        %v1554 = vmul.f32 %v1050, %v1468
        %v1555 = vmul.f32 %v1051, %v1468
        %v1556 = vmul.f32 %v1052, %v1472
        %v1557 = vmul.f32 %v1053, %v1472
        %v1558 = vmul.f32 %v1054, %v1476
        %v1559 = vmul.f32 %v1055, %v1476
        %v1560 = vmul.f32 %v1056, %v1480
        %v1561 = vmul.f32 %v1057, %v1480
        %v1562 = vmul.f32 %v1058, %v1484
        %v1563 = vmul.f32 %v1059, %v1484
        %v1564 = vmul.f32 %v1060, %v1488
        %v1565 = vmul.f32 %v1061, %v1488
        %v1566 = vmul.f32 %v1062, %v1492
        %v1567 = vmul.f32 %v1063, %v1492
        %v1568 = vmul.f32 %v1064, %v1496
        %v1569 = vmul.f32 %v1065, %v1496
        %v1570 = vmul.f32 %v1066, %v1500
        %v1571 = vmul.f32 %v1067, %v1500
        %v1572 = vmul.f32 %v1068, %v1504
        %v1573 = vmul.f32 %v1069, %v1504
        %v1574 = vmul.f32 %v1070, %v1508
        %v1575 = vmul.f32 %v1071, %v1508
        %v1576 = vmul.f32 %v1072, %v1512
        %v1577 = vmul.f32 %v1073, %v1512
        %v1578 = vmul.f32 %v1074, %v1516
        %v1579 = vmul.f32 %v1075, %v1516
        %v1580 = vmul.f32 %v1076, %v1520
        %v1581 = vmul.f32 %v1077, %v1520
        %v1582 = vmul.f32 %v1078, %v1524
        %v1583 = vmul.f32 %v1079, %v1524
        %v1584 = vmul.f32 %v1080, %v1528
        %v1585 = vmul.f32 %v1081, %v1528
        %v1586 = vmul.f32 %v1082, %v1532
        %v1587 = vmul.f32 %v1083, %v1532
        %v1588 = vmul.f32 %v1084, %v1536
        %v1589 = vmul.f32 %v1085, %v1536
        %v1590 = vmul.f32 %v1086, %v1540
        %v1591 = vmul.f32 %v1087, %v1540
        %v1592 = vmul.f32 %v1088, %v1544
        %v1593 = vmul.f32 %v1089, %v1544
        %v1594 = vadd.f32 %v1402, %v1546
        %v1595 = vadd.f32 %v1403, %v1547
        %v1596 = vadd.f32 %v1404, %v1548
        %v1597 = vadd.f32 %v1405, %v1549
        %v1598 = vadd.f32 %v1406, %v1550
        %v1599 = vadd.f32 %v1407, %v1551
        %v1600 = vadd.f32 %v1408, %v1552
        %v1601 = vadd.f32 %v1409, %v1553
        %v1602 = vadd.f32 %v1410, %v1554
        %v1603 = vadd.f32 %v1411, %v1555
        %v1604 = vadd.f32 %v1412, %v1556
        %v1605 = vadd.f32 %v1413, %v1557
        %v1606 = vadd.f32 %v1414, %v1558
        %v1607 = vadd.f32 %v1415, %v1559
        %v1608 = vadd.f32 %v1416, %v1560
        %v1609 = vadd.f32 %v1417, %v1561
        %v1610 = vadd.f32 %v1418, %v1562
        %v1611 = vadd.f32 %v1419, %v1563
        %v1612 = vadd.f32 %v1420, %v1564
        %v1613 = vadd.f32 %v1421, %v1565
        %v1614 = vadd.f32 %v1422, %v1566
        %v1615 = vadd.f32 %v1423, %v1567
        %v1616 = vadd.f32 %v1424, %v1568
        %v1617 = vadd.f32 %v1425, %v1569
        %v1618 = vadd.f32 %v1426, %v1570
        %v1619 = vadd.f32 %v1427, %v1571
        %v1620 = vadd.f32 %v1428, %v1572
        %v1621 = vadd.f32 %v1429, %v1573
        %v1622 = vadd.f32 %v1430, %v1574
        %v1623 = vadd.f32 %v1431, %v1575
        %v1624 = vadd.f32 %v1432, %v1576
        %v1625 = vadd.f32 %v1433, %v1577
        %v1626 = vadd.f32 %v1434, %v1578
        %v1627 = vadd.f32 %v1435, %v1579
        %v1628 = vadd.f32 %v1436, %v1580
        %v1629 = vadd.f32 %v1437, %v1581
        %v1630 = vadd.f32 %v1438, %v1582
        %v1631 = vadd.f32 %v1439, %v1583
        %v1632 = vadd.f32 %v1440, %v1584
        %v1633 = vadd.f32 %v1441, %v1585
        %v1634 = vadd.f32 %v1442, %v1586
        %v1635 = vadd.f32 %v1443, %v1587
        %v1636 = vadd.f32 %v1444, %v1588
        %v1637 = vadd.f32 %v1445, %v1589
        %v1638 = vadd.f32 %v1446, %v1590
        %v1639 = vadd.f32 %v1447, %v1591
        %v1640 = vadd.f32 %v1448, %v1592
        %v1641 = vadd.f32 %v1449, %v1593
        %1642 = vrot.lane.b32.xlu0 %v1594, 16
        %v1643 = vpop.permute.xlu0 %1642
        %1644 = vrot.lane.b32.xlu0 %v1596, 16
        %v1645 = vpop.permute.xlu0 %1644
        %1646 = vrot.lane.b32.xlu0 %v1598, 16
        %v1647 = vpop.permute.xlu0 %1646
        %1648 = vrot.lane.b32.xlu0 %v1600, 16
        %v1649 = vpop.permute.xlu0 %1648
        %1650 = vrot.lane.b32.xlu0 %v1602, 16
        %v1651 = vpop.permute.xlu0 %1650
        %1652 = vrot.lane.b32.xlu0 %v1604, 16
        %v1653 = vpop.permute.xlu0 %1652
        %1654 = vrot.lane.b32.xlu0 %v1606, 16
        %v1655 = vpop.permute.xlu0 %1654
        %1656 = vrot.lane.b32.xlu0 %v1608, 16
        %v1657 = vpop.permute.xlu0 %1656
        %1658 = vrot.lane.b32.xlu0 %v1610, 16
        %v1659 = vpop.permute.xlu0 %1658
        %1660 = vrot.lane.b32.xlu0 %v1612, 16
        %v1661 = vpop.permute.xlu0 %1660
        %1662 = vrot.lane.b32.xlu0 %v1614, 16
        %v1663 = vpop.permute.xlu0 %1662
        %1664 = vrot.lane.b32.xlu0 %v1616, 16
        %v1665 = vpop.permute.xlu0 %1664
        %1666 = vrot.lane.b32.xlu0 %v1618, 16
        %v1667 = vpop.permute.xlu0 %1666
        %1668 = vrot.lane.b32.xlu0 %v1620, 16
        %v1669 = vpop.permute.xlu0 %1668
        %1670 = vrot.lane.b32.xlu0 %v1622, 16
        %v1671 = vpop.permute.xlu0 %1670
        %1672 = vrot.lane.b32.xlu0 %v1624, 16
        %v1673 = vpop.permute.xlu0 %1672
        %1674 = vrot.lane.b32.xlu0 %v1626, 16
        %v1675 = vpop.permute.xlu0 %1674
        %1676 = vrot.lane.b32.xlu0 %v1628, 16
        %v1677 = vpop.permute.xlu0 %1676
        %1678 = vrot.lane.b32.xlu0 %v1630, 16
        %v1679 = vpop.permute.xlu0 %1678
        %1680 = vrot.lane.b32.xlu0 %v1632, 16
        %v1681 = vpop.permute.xlu0 %1680
        %1682 = vrot.lane.b32.xlu0 %v1634, 16
        %v1683 = vpop.permute.xlu0 %1682
        %1684 = vrot.lane.b32.xlu0 %v1636, 16
        %v1685 = vpop.permute.xlu0 %1684
        %1686 = vrot.lane.b32.xlu0 %v1638, 16
        %v1687 = vpop.permute.xlu0 %1686
        %1688 = vrot.lane.b32.xlu0 %v1640, 16
        %v1689 = vpop.permute.xlu0 %1688
        %1690 = vrot.lane.b32.xlu0 %v1595, 16
        %v1691 = vpop.permute.xlu0 %1690
        %1692 = vrot.lane.b32.xlu0 %v1597, 16
        %v1693 = vpop.permute.xlu0 %1692
        %1694 = vrot.lane.b32.xlu0 %v1599, 16
        %v1695 = vpop.permute.xlu0 %1694
        %1696 = vrot.lane.b32.xlu0 %v1601, 16
        %v1697 = vpop.permute.xlu0 %1696
        %1698 = vrot.lane.b32.xlu0 %v1603, 16
        %v1699 = vpop.permute.xlu0 %1698
        %1700 = vrot.lane.b32.xlu0 %v1605, 16
        %v1701 = vpop.permute.xlu0 %1700
        %1702 = vrot.lane.b32.xlu0 %v1607, 16
        %v1703 = vpop.permute.xlu0 %1702
        %1704 = vrot.lane.b32.xlu0 %v1609, 16
        %v1705 = vpop.permute.xlu0 %1704
        %1706 = vrot.lane.b32.xlu0 %v1611, 16
        %v1707 = vpop.permute.xlu0 %1706
        %1708 = vrot.lane.b32.xlu0 %v1613, 16
        %v1709 = vpop.permute.xlu0 %1708
        %1710 = vrot.lane.b32.xlu0 %v1615, 16
        %v1711 = vpop.permute.xlu0 %1710
        %1712 = vrot.lane.b32.xlu0 %v1617, 16
        %v1713 = vpop.permute.xlu0 %1712
        %1714 = vrot.lane.b32.xlu0 %v1619, 16
        %v1715 = vpop.permute.xlu0 %1714
        %1716 = vrot.lane.b32.xlu0 %v1621, 16
        %v1717 = vpop.permute.xlu0 %1716
        %1718 = vrot.lane.b32.xlu0 %v1623, 16
        %v1719 = vpop.permute.xlu0 %1718
        %1720 = vrot.lane.b32.xlu0 %v1625, 16
        %v1721 = vpop.permute.xlu0 %1720
        %1722 = vrot.lane.b32.xlu0 %v1627, 16
        %v1723 = vpop.permute.xlu0 %1722
        %1724 = vrot.lane.b32.xlu0 %v1629, 16
        %v1725 = vpop.permute.xlu0 %1724
        %1726 = vrot.lane.b32.xlu0 %v1631, 16
        %v1727 = vpop.permute.xlu0 %1726
        %1728 = vrot.lane.b32.xlu0 %v1633, 16
        %v1729 = vpop.permute.xlu0 %1728
        %1730 = vrot.lane.b32.xlu0 %v1635, 16
        %v1731 = vpop.permute.xlu0 %1730
        %1732 = vrot.lane.b32.xlu0 %v1637, 16
        %v1733 = vpop.permute.xlu0 %1732
        %1734 = vrot.lane.b32.xlu0 %v1639, 16
        %v1735 = vpop.permute.xlu0 %1734
        %1736 = vrot.lane.b32.xlu0 %v1641, 16
        %v1737 = vpop.permute.xlu0 %1736
        %vm1738 = vcmp.lt.s32.totalorder %v774, 16
        %v1739 = vsel %vm1738, %v1643, %v1691
        %v1740 = vsel %vm1738, %v1645, %v1693
        %v1741 = vsel %vm1738, %v1647, %v1695
        %v1742 = vsel %vm1738, %v1649, %v1697
        %v1743 = vsel %vm1738, %v1651, %v1699
        %v1744 = vsel %vm1738, %v1653, %v1701
        %v1745 = vsel %vm1738, %v1655, %v1703
        %v1746 = vsel %vm1738, %v1657, %v1705
        %v1747 = vsel %vm1738, %v1659, %v1707
        %v1748 = vsel %vm1738, %v1661, %v1709
        %v1749 = vsel %vm1738, %v1663, %v1711
        %v1750 = vsel %vm1738, %v1665, %v1713
        %v1751 = vsel %vm1738, %v1667, %v1715
        %v1752 = vsel %vm1738, %v1669, %v1717
        %v1753 = vsel %vm1738, %v1671, %v1719
        %v1754 = vsel %vm1738, %v1673, %v1721
        %v1755 = vsel %vm1738, %v1675, %v1723
        %v1756 = vsel %vm1738, %v1677, %v1725
        %v1757 = vsel %vm1738, %v1679, %v1727
        %v1758 = vsel %vm1738, %v1681, %v1729
        %v1759 = vsel %vm1738, %v1683, %v1731
        %v1760 = vsel %vm1738, %v1685, %v1733
        %v1761 = vsel %vm1738, %v1687, %v1735
        %v1762 = vsel %vm1738, %v1689, %v1737
        %v1763 = vsel %vm1738, %v1691, %v1643
        %v1764 = vsel %vm1738, %v1693, %v1645
        %v1765 = vsel %vm1738, %v1695, %v1647
        %v1766 = vsel %vm1738, %v1697, %v1649
        %v1767 = vsel %vm1738, %v1699, %v1651
        %v1768 = vsel %vm1738, %v1701, %v1653
        %v1769 = vsel %vm1738, %v1703, %v1655
        %v1770 = vsel %vm1738, %v1705, %v1657
        %v1771 = vsel %vm1738, %v1707, %v1659
        %v1772 = vsel %vm1738, %v1709, %v1661
        %v1773 = vsel %vm1738, %v1711, %v1663
        %v1774 = vsel %vm1738, %v1713, %v1665
        %v1775 = vsel %vm1738, %v1715, %v1667
        %v1776 = vsel %vm1738, %v1717, %v1669
        %v1777 = vsel %vm1738, %v1719, %v1671
        %v1778 = vsel %vm1738, %v1721, %v1673
        %v1779 = vsel %vm1738, %v1723, %v1675
        %v1780 = vsel %vm1738, %v1725, %v1677
        %v1781 = vsel %vm1738, %v1727, %v1679
        %v1782 = vsel %vm1738, %v1729, %v1681
        %v1783 = vsel %vm1738, %v1731, %v1683
        %v1784 = vsel %vm1738, %v1733, %v1685
        %v1785 = vsel %vm1738, %v1735, %v1687
        %v1786 = vsel %vm1738, %v1737, %v1689
        %s1787 = scalar_lea.vmem %s7, 2
        %v1788 = vld [vmem:[%s1787] ss:$4 sm:$0x3]
        %v1790 = vlaneseq
        %v1791 = vshrl.u32 %v1790, 7
        %v1792 = vsub.s32 0, %v1791
        %v1793 = vrot.slane %v1788, %v1792
        %v1794 = vlaneseq
        %v1795 = vshrl.u32 %v1794, 7
        %v1796 = vsub.s32 1, %v1795
        %v1797 = vrot.slane %v1788, %v1796
        %v1800 = vmul.f32 %v1763, %v1793
        %v1801 = vmul.f32 %v1739, %v1797
        %v1802 = vmul.f32 %v1764, %v1793
        %v1803 = vmul.f32 %v1740, %v1797
        %v1804 = vmul.f32 %v1765, %v1793
        %v1805 = vmul.f32 %v1741, %v1797
        %v1806 = vmul.f32 %v1766, %v1793
        %v1807 = vmul.f32 %v1742, %v1797
        %v1808 = vmul.f32 %v1767, %v1793
        %v1809 = vmul.f32 %v1743, %v1797
        %v1810 = vmul.f32 %v1768, %v1793
        %v1811 = vmul.f32 %v1744, %v1797
        %v1812 = vmul.f32 %v1769, %v1793
        %v1813 = vmul.f32 %v1745, %v1797
        %v1814 = vmul.f32 %v1770, %v1793
        %v1815 = vmul.f32 %v1746, %v1797
        %v1816 = vmul.f32 %v1771, %v1793
        %v1817 = vmul.f32 %v1747, %v1797
        %v1818 = vmul.f32 %v1772, %v1793
        %v1819 = vmul.f32 %v1748, %v1797
        %v1820 = vmul.f32 %v1773, %v1793
        %v1821 = vmul.f32 %v1749, %v1797
        %v1822 = vmul.f32 %v1774, %v1793
        %v1823 = vmul.f32 %v1750, %v1797
        %v1824 = vmul.f32 %v1775, %v1793
        %v1825 = vmul.f32 %v1751, %v1797
        %v1826 = vmul.f32 %v1776, %v1793
        %v1827 = vmul.f32 %v1752, %v1797
        %v1828 = vmul.f32 %v1777, %v1793
        %v1829 = vmul.f32 %v1753, %v1797
        %v1830 = vmul.f32 %v1778, %v1793
        %v1831 = vmul.f32 %v1754, %v1797
        %v1832 = vmul.f32 %v1779, %v1793
        %v1833 = vmul.f32 %v1755, %v1797
        %v1834 = vmul.f32 %v1780, %v1793
        %v1835 = vmul.f32 %v1756, %v1797
        %v1836 = vmul.f32 %v1781, %v1793
        %v1837 = vmul.f32 %v1757, %v1797
        %v1838 = vmul.f32 %v1782, %v1793
        %v1839 = vmul.f32 %v1758, %v1797
        %v1840 = vmul.f32 %v1783, %v1793
        %v1841 = vmul.f32 %v1759, %v1797
        %v1842 = vmul.f32 %v1784, %v1793
        %v1843 = vmul.f32 %v1760, %v1797
        %v1844 = vmul.f32 %v1785, %v1793
        %v1845 = vmul.f32 %v1761, %v1797
        %v1846 = vmul.f32 %v1786, %v1793
        %v1847 = vmul.f32 %v1762, %v1797
        %1848 = vset.pattern.permute.xlu0 3
        %1849 = vperm.xlu0 %1848, %v653
        %v1850 = vpop.permute.xlu0 %1849
        %1852 = vset.pattern.permute.xlu0 3
        %1853 = vperm.xlu0 %1852, %v654
        %v1854 = vpop.permute.xlu0 %1853
        %1856 = vset.pattern.permute.xlu0 3
        %1857 = vperm.xlu0 %1856, %v655
        %v1858 = vpop.permute.xlu0 %1857
        %1860 = vset.pattern.permute.xlu0 3
        %1861 = vperm.xlu0 %1860, %v656
        %v1862 = vpop.permute.xlu0 %1861
        %1864 = vset.pattern.permute.xlu0 3
        %1865 = vperm.xlu0 %1864, %v657
        %v1866 = vpop.permute.xlu0 %1865
        %1868 = vset.pattern.permute.xlu0 3
        %1869 = vperm.xlu0 %1868, %v658
        %v1870 = vpop.permute.xlu0 %1869
        %1872 = vset.pattern.permute.xlu0 3
        %1873 = vperm.xlu0 %1872, %v659
        %v1874 = vpop.permute.xlu0 %1873
        %1876 = vset.pattern.permute.xlu0 3
        %1877 = vperm.xlu0 %1876, %v660
        %v1878 = vpop.permute.xlu0 %1877
        %1880 = vset.pattern.permute.xlu0 3
        %1881 = vperm.xlu0 %1880, %v661
        %v1882 = vpop.permute.xlu0 %1881
        %1884 = vset.pattern.permute.xlu0 3
        %1885 = vperm.xlu0 %1884, %v662
        %v1886 = vpop.permute.xlu0 %1885
        %1888 = vset.pattern.permute.xlu0 3
        %1889 = vperm.xlu0 %1888, %v663
        %v1890 = vpop.permute.xlu0 %1889
        %1892 = vset.pattern.permute.xlu0 3
        %1893 = vperm.xlu0 %1892, %v664
        %v1894 = vpop.permute.xlu0 %1893
        %1896 = vset.pattern.permute.xlu0 3
        %1897 = vperm.xlu0 %1896, %v665
        %v1898 = vpop.permute.xlu0 %1897
        %1900 = vset.pattern.permute.xlu0 3
        %1901 = vperm.xlu0 %1900, %v666
        %v1902 = vpop.permute.xlu0 %1901
        %1904 = vset.pattern.permute.xlu0 3
        %1905 = vperm.xlu0 %1904, %v667
        %v1906 = vpop.permute.xlu0 %1905
        %1908 = vset.pattern.permute.xlu0 3
        %1909 = vperm.xlu0 %1908, %v668
        %v1910 = vpop.permute.xlu0 %1909
        %1912 = vset.pattern.permute.xlu0 3
        %1913 = vperm.xlu0 %1912, %v669
        %v1914 = vpop.permute.xlu0 %1913
        %1916 = vset.pattern.permute.xlu0 3
        %1917 = vperm.xlu0 %1916, %v670
        %v1918 = vpop.permute.xlu0 %1917
        %1920 = vset.pattern.permute.xlu0 3
        %1921 = vperm.xlu0 %1920, %v671
        %v1922 = vpop.permute.xlu0 %1921
        %1924 = vset.pattern.permute.xlu0 3
        %1925 = vperm.xlu0 %1924, %v672
        %v1926 = vpop.permute.xlu0 %1925
        %1928 = vset.pattern.permute.xlu0 3
        %1929 = vperm.xlu0 %1928, %v673
        %v1930 = vpop.permute.xlu0 %1929
        %1932 = vset.pattern.permute.xlu0 3
        %1933 = vperm.xlu0 %1932, %v674
        %v1934 = vpop.permute.xlu0 %1933
        %1936 = vset.pattern.permute.xlu0 3
        %1937 = vperm.xlu0 %1936, %v675
        %v1938 = vpop.permute.xlu0 %1937
        %1940 = vset.pattern.permute.xlu0 3
        %1941 = vperm.xlu0 %1940, %v676
        %v1942 = vpop.permute.xlu0 %1941
        %v1944 = vmul.f32 %v836, %v1850
        %v1945 = vmul.f32 %v837, %v1850
        %v1946 = vmul.f32 %v838, %v1854
        %v1947 = vmul.f32 %v839, %v1854
        %v1948 = vmul.f32 %v840, %v1858
        %v1949 = vmul.f32 %v841, %v1858
        %v1950 = vmul.f32 %v842, %v1862
        %v1951 = vmul.f32 %v843, %v1862
        %v1952 = vmul.f32 %v844, %v1866
        %v1953 = vmul.f32 %v845, %v1866
        %v1954 = vmul.f32 %v846, %v1870
        %v1955 = vmul.f32 %v847, %v1870
        %v1956 = vmul.f32 %v848, %v1874
        %v1957 = vmul.f32 %v849, %v1874
        %v1958 = vmul.f32 %v850, %v1878
        %v1959 = vmul.f32 %v851, %v1878
        %v1960 = vmul.f32 %v852, %v1882
        %v1961 = vmul.f32 %v853, %v1882
        %v1962 = vmul.f32 %v854, %v1886
        %v1963 = vmul.f32 %v855, %v1886
        %v1964 = vmul.f32 %v856, %v1890
        %v1965 = vmul.f32 %v857, %v1890
        %v1966 = vmul.f32 %v858, %v1894
        %v1967 = vmul.f32 %v859, %v1894
        %v1968 = vmul.f32 %v860, %v1898
        %v1969 = vmul.f32 %v861, %v1898
        %v1970 = vmul.f32 %v862, %v1902
        %v1971 = vmul.f32 %v863, %v1902
        %v1972 = vmul.f32 %v864, %v1906
        %v1973 = vmul.f32 %v865, %v1906
        %v1974 = vmul.f32 %v866, %v1910
        %v1975 = vmul.f32 %v867, %v1910
        %v1976 = vmul.f32 %v868, %v1914
        %v1977 = vmul.f32 %v869, %v1914
        %v1978 = vmul.f32 %v870, %v1918
        %v1979 = vmul.f32 %v871, %v1918
        %v1980 = vmul.f32 %v872, %v1922
        %v1981 = vmul.f32 %v873, %v1922
        %v1982 = vmul.f32 %v874, %v1926
        %v1983 = vmul.f32 %v875, %v1926
        %v1984 = vmul.f32 %v876, %v1930
        %v1985 = vmul.f32 %v877, %v1930
        %v1986 = vmul.f32 %v878, %v1934
        %v1987 = vmul.f32 %v879, %v1934
        %v1988 = vmul.f32 %v880, %v1938
        %v1989 = vmul.f32 %v881, %v1938
        %v1990 = vmul.f32 %v882, %v1942
        %v1991 = vmul.f32 %v883, %v1942
        %1992 = vset.pattern.permute.xlu0 4
        %1993 = vperm.xlu0 %1992, %v653
        %v1994 = vpop.permute.xlu0 %1993
        %1996 = vset.pattern.permute.xlu0 4
        %1997 = vperm.xlu0 %1996, %v654
        %v1998 = vpop.permute.xlu0 %1997
        %2000 = vset.pattern.permute.xlu0 4
        %2001 = vperm.xlu0 %2000, %v655
        %v2002 = vpop.permute.xlu0 %2001
        %2004 = vset.pattern.permute.xlu0 4
        %2005 = vperm.xlu0 %2004, %v656
        %v2006 = vpop.permute.xlu0 %2005
        %2008 = vset.pattern.permute.xlu0 4
        %2009 = vperm.xlu0 %2008, %v657
        %v2010 = vpop.permute.xlu0 %2009
        %2012 = vset.pattern.permute.xlu0 4
        %2013 = vperm.xlu0 %2012, %v658
        %v2014 = vpop.permute.xlu0 %2013
        %2016 = vset.pattern.permute.xlu0 4
        %2017 = vperm.xlu0 %2016, %v659
        %v2018 = vpop.permute.xlu0 %2017
        %2020 = vset.pattern.permute.xlu0 4
        %2021 = vperm.xlu0 %2020, %v660
        %v2022 = vpop.permute.xlu0 %2021
        %2024 = vset.pattern.permute.xlu0 4
        %2025 = vperm.xlu0 %2024, %v661
        %v2026 = vpop.permute.xlu0 %2025
        %2028 = vset.pattern.permute.xlu0 4
        %2029 = vperm.xlu0 %2028, %v662
        %v2030 = vpop.permute.xlu0 %2029
        %2032 = vset.pattern.permute.xlu0 4
        %2033 = vperm.xlu0 %2032, %v663
        %v2034 = vpop.permute.xlu0 %2033
        %2036 = vset.pattern.permute.xlu0 4
        %2037 = vperm.xlu0 %2036, %v664
        %v2038 = vpop.permute.xlu0 %2037
        %2040 = vset.pattern.permute.xlu0 4
        %2041 = vperm.xlu0 %2040, %v665
        %v2042 = vpop.permute.xlu0 %2041
        %2044 = vset.pattern.permute.xlu0 4
        %2045 = vperm.xlu0 %2044, %v666
        %v2046 = vpop.permute.xlu0 %2045
        %2048 = vset.pattern.permute.xlu0 4
        %2049 = vperm.xlu0 %2048, %v667
        %v2050 = vpop.permute.xlu0 %2049
        %2052 = vset.pattern.permute.xlu0 4
        %2053 = vperm.xlu0 %2052, %v668
        %v2054 = vpop.permute.xlu0 %2053
        %2056 = vset.pattern.permute.xlu0 4
        %2057 = vperm.xlu0 %2056, %v669
        %v2058 = vpop.permute.xlu0 %2057
        %2060 = vset.pattern.permute.xlu0 4
        %2061 = vperm.xlu0 %2060, %v670
        %v2062 = vpop.permute.xlu0 %2061
        %2064 = vset.pattern.permute.xlu0 4
        %2065 = vperm.xlu0 %2064, %v671
        %v2066 = vpop.permute.xlu0 %2065
        %2068 = vset.pattern.permute.xlu0 4
        %2069 = vperm.xlu0 %2068, %v672
        %v2070 = vpop.permute.xlu0 %2069
        %2072 = vset.pattern.permute.xlu0 4
        %2073 = vperm.xlu0 %2072, %v673
        %v2074 = vpop.permute.xlu0 %2073
        %2076 = vset.pattern.permute.xlu0 4
        %2077 = vperm.xlu0 %2076, %v674
        %v2078 = vpop.permute.xlu0 %2077
        %2080 = vset.pattern.permute.xlu0 4
        %2081 = vperm.xlu0 %2080, %v675
        %v2082 = vpop.permute.xlu0 %2081
        %2084 = vset.pattern.permute.xlu0 4
        %2085 = vperm.xlu0 %2084, %v676
        %v2086 = vpop.permute.xlu0 %2085
        %v2088 = vmul.f32 %v511, %v1994
        %v2089 = vmul.f32 %v513, %v1994
        %v2090 = vmul.f32 %v517, %v1998
        %v2091 = vmul.f32 %v519, %v1998
        %v2092 = vmul.f32 %v523, %v2002
        %v2093 = vmul.f32 %v525, %v2002
        %v2094 = vmul.f32 %v529, %v2006
        %v2095 = vmul.f32 %v531, %v2006
        %v2096 = vmul.f32 %v535, %v2010
        %v2097 = vmul.f32 %v537, %v2010
        %v2098 = vmul.f32 %v541, %v2014
        %v2099 = vmul.f32 %v543, %v2014
        %v2100 = vmul.f32 %v547, %v2018
        %v2101 = vmul.f32 %v549, %v2018
        %v2102 = vmul.f32 %v553, %v2022
        %v2103 = vmul.f32 %v555, %v2022
        %v2104 = vmul.f32 %v559, %v2026
        %v2105 = vmul.f32 %v561, %v2026
        %v2106 = vmul.f32 %v565, %v2030
        %v2107 = vmul.f32 %v567, %v2030
        %v2108 = vmul.f32 %v571, %v2034
        %v2109 = vmul.f32 %v573, %v2034
        %v2110 = vmul.f32 %v577, %v2038
        %v2111 = vmul.f32 %v579, %v2038
        %v2112 = vmul.f32 %v583, %v2042
        %v2113 = vmul.f32 %v585, %v2042
        %v2114 = vmul.f32 %v589, %v2046
        %v2115 = vmul.f32 %v591, %v2046
        %v2116 = vmul.f32 %v595, %v2050
        %v2117 = vmul.f32 %v597, %v2050
        %v2118 = vmul.f32 %v601, %v2054
        %v2119 = vmul.f32 %v603, %v2054
        %v2120 = vmul.f32 %v607, %v2058
        %v2121 = vmul.f32 %v609, %v2058
        %v2122 = vmul.f32 %v613, %v2062
        %v2123 = vmul.f32 %v615, %v2062
        %v2124 = vmul.f32 %v619, %v2066
        %v2125 = vmul.f32 %v621, %v2066
        %v2126 = vmul.f32 %v625, %v2070
        %v2127 = vmul.f32 %v627, %v2070
        %v2128 = vmul.f32 %v631, %v2074
        %v2129 = vmul.f32 %v633, %v2074
        %v2130 = vmul.f32 %v637, %v2078
        %v2131 = vmul.f32 %v639, %v2078
        %v2132 = vmul.f32 %v643, %v2082
        %v2133 = vmul.f32 %v645, %v2082
        %v2134 = vmul.f32 %v649, %v2086
        %v2135 = vmul.f32 %v651, %v2086
        %v2136 = vadd.f32 %v1944, %v2088
        %v2137 = vadd.f32 %v1945, %v2089
        %v2138 = vadd.f32 %v1946, %v2090
        %v2139 = vadd.f32 %v1947, %v2091
        %v2140 = vadd.f32 %v1948, %v2092
        %v2141 = vadd.f32 %v1949, %v2093
        %v2142 = vadd.f32 %v1950, %v2094
        %v2143 = vadd.f32 %v1951, %v2095
        %v2144 = vadd.f32 %v1952, %v2096
        %v2145 = vadd.f32 %v1953, %v2097
        %v2146 = vadd.f32 %v1954, %v2098
        %v2147 = vadd.f32 %v1955, %v2099
        %v2148 = vadd.f32 %v1956, %v2100
        %v2149 = vadd.f32 %v1957, %v2101
        %v2150 = vadd.f32 %v1958, %v2102
        %v2151 = vadd.f32 %v1959, %v2103
        %v2152 = vadd.f32 %v1960, %v2104
        %v2153 = vadd.f32 %v1961, %v2105
        %v2154 = vadd.f32 %v1962, %v2106
        %v2155 = vadd.f32 %v1963, %v2107
        %v2156 = vadd.f32 %v1964, %v2108
        %v2157 = vadd.f32 %v1965, %v2109
        %v2158 = vadd.f32 %v1966, %v2110
        %v2159 = vadd.f32 %v1967, %v2111
        %v2160 = vadd.f32 %v1968, %v2112
        %v2161 = vadd.f32 %v1969, %v2113
        %v2162 = vadd.f32 %v1970, %v2114
        %v2163 = vadd.f32 %v1971, %v2115
        %v2164 = vadd.f32 %v1972, %v2116
        %v2165 = vadd.f32 %v1973, %v2117
        %v2166 = vadd.f32 %v1974, %v2118
        %v2167 = vadd.f32 %v1975, %v2119
        %v2168 = vadd.f32 %v1976, %v2120
        %v2169 = vadd.f32 %v1977, %v2121
        %v2170 = vadd.f32 %v1978, %v2122
        %v2171 = vadd.f32 %v1979, %v2123
        %v2172 = vadd.f32 %v1980, %v2124
        %v2173 = vadd.f32 %v1981, %v2125
        %v2174 = vadd.f32 %v1982, %v2126
        %v2175 = vadd.f32 %v1983, %v2127
        %v2176 = vadd.f32 %v1984, %v2128
        %v2177 = vadd.f32 %v1985, %v2129
        %v2178 = vadd.f32 %v1986, %v2130
        %v2179 = vadd.f32 %v1987, %v2131
        %v2180 = vadd.f32 %v1988, %v2132
        %v2181 = vadd.f32 %v1989, %v2133
        %v2182 = vadd.f32 %v1990, %v2134
        %v2183 = vadd.f32 %v1991, %v2135
        %2184 = vset.pattern.permute.xlu0 5
        %2185 = vperm.xlu0 %2184, %v653
        %v2186 = vpop.permute.xlu0 %2185
        %2188 = vset.pattern.permute.xlu0 5
        %2189 = vperm.xlu0 %2188, %v654
        %v2190 = vpop.permute.xlu0 %2189
        %2192 = vset.pattern.permute.xlu0 5
        %2193 = vperm.xlu0 %2192, %v655
        %v2194 = vpop.permute.xlu0 %2193
        %2196 = vset.pattern.permute.xlu0 5
        %2197 = vperm.xlu0 %2196, %v656
        %v2198 = vpop.permute.xlu0 %2197
        %2200 = vset.pattern.permute.xlu0 5
        %2201 = vperm.xlu0 %2200, %v657
        %v2202 = vpop.permute.xlu0 %2201
        %2204 = vset.pattern.permute.xlu0 5
        %2205 = vperm.xlu0 %2204, %v658
        %v2206 = vpop.permute.xlu0 %2205
        %2208 = vset.pattern.permute.xlu0 5
        %2209 = vperm.xlu0 %2208, %v659
        %v2210 = vpop.permute.xlu0 %2209
        %2212 = vset.pattern.permute.xlu0 5
        %2213 = vperm.xlu0 %2212, %v660
        %v2214 = vpop.permute.xlu0 %2213
        %2216 = vset.pattern.permute.xlu0 5
        %2217 = vperm.xlu0 %2216, %v661
        %v2218 = vpop.permute.xlu0 %2217
        %2220 = vset.pattern.permute.xlu0 5
        %2221 = vperm.xlu0 %2220, %v662
        %v2222 = vpop.permute.xlu0 %2221
        %2224 = vset.pattern.permute.xlu0 5
        %2225 = vperm.xlu0 %2224, %v663
        %v2226 = vpop.permute.xlu0 %2225
        %2228 = vset.pattern.permute.xlu0 5
        %2229 = vperm.xlu0 %2228, %v664
        %v2230 = vpop.permute.xlu0 %2229
        %2232 = vset.pattern.permute.xlu0 5
        %2233 = vperm.xlu0 %2232, %v665
        %v2234 = vpop.permute.xlu0 %2233
        %2236 = vset.pattern.permute.xlu0 5
        %2237 = vperm.xlu0 %2236, %v666
        %v2238 = vpop.permute.xlu0 %2237
        %2240 = vset.pattern.permute.xlu0 5
        %2241 = vperm.xlu0 %2240, %v667
        %v2242 = vpop.permute.xlu0 %2241
        %2244 = vset.pattern.permute.xlu0 5
        %2245 = vperm.xlu0 %2244, %v668
        %v2246 = vpop.permute.xlu0 %2245
        %2248 = vset.pattern.permute.xlu0 5
        %2249 = vperm.xlu0 %2248, %v669
        %v2250 = vpop.permute.xlu0 %2249
        %2252 = vset.pattern.permute.xlu0 5
        %2253 = vperm.xlu0 %2252, %v670
        %v2254 = vpop.permute.xlu0 %2253
        %2256 = vset.pattern.permute.xlu0 5
        %2257 = vperm.xlu0 %2256, %v671
        %v2258 = vpop.permute.xlu0 %2257
        %2260 = vset.pattern.permute.xlu0 5
        %2261 = vperm.xlu0 %2260, %v672
        %v2262 = vpop.permute.xlu0 %2261
        %2264 = vset.pattern.permute.xlu0 5
        %2265 = vperm.xlu0 %2264, %v673
        %v2266 = vpop.permute.xlu0 %2265
        %2268 = vset.pattern.permute.xlu0 5
        %2269 = vperm.xlu0 %2268, %v674
        %v2270 = vpop.permute.xlu0 %2269
        %2272 = vset.pattern.permute.xlu0 5
        %2273 = vperm.xlu0 %2272, %v675
        %v2274 = vpop.permute.xlu0 %2273
        %2276 = vset.pattern.permute.xlu0 5
        %2277 = vperm.xlu0 %2276, %v676
        %v2278 = vpop.permute.xlu0 %2277
        %v2280 = vmul.f32 %v1042, %v2186
        %v2281 = vmul.f32 %v1043, %v2186
        %v2282 = vmul.f32 %v1044, %v2190
        %v2283 = vmul.f32 %v1045, %v2190
        %v2284 = vmul.f32 %v1046, %v2194
        %v2285 = vmul.f32 %v1047, %v2194
        %v2286 = vmul.f32 %v1048, %v2198
        %v2287 = vmul.f32 %v1049, %v2198
        %v2288 = vmul.f32 %v1050, %v2202
        %v2289 = vmul.f32 %v1051, %v2202
        %v2290 = vmul.f32 %v1052, %v2206
        %v2291 = vmul.f32 %v1053, %v2206
        %v2292 = vmul.f32 %v1054, %v2210
        %v2293 = vmul.f32 %v1055, %v2210
        %v2294 = vmul.f32 %v1056, %v2214
        %v2295 = vmul.f32 %v1057, %v2214
        %v2296 = vmul.f32 %v1058, %v2218
        %v2297 = vmul.f32 %v1059, %v2218
        %v2298 = vmul.f32 %v1060, %v2222
        %v2299 = vmul.f32 %v1061, %v2222
        %v2300 = vmul.f32 %v1062, %v2226
        %v2301 = vmul.f32 %v1063, %v2226
        %v2302 = vmul.f32 %v1064, %v2230
        %v2303 = vmul.f32 %v1065, %v2230
        %v2304 = vmul.f32 %v1066, %v2234
        %v2305 = vmul.f32 %v1067, %v2234
        %v2306 = vmul.f32 %v1068, %v2238
        %v2307 = vmul.f32 %v1069, %v2238
        %v2308 = vmul.f32 %v1070, %v2242
        %v2309 = vmul.f32 %v1071, %v2242
        %v2310 = vmul.f32 %v1072, %v2246
        %v2311 = vmul.f32 %v1073, %v2246
        %v2312 = vmul.f32 %v1074, %v2250
        %v2313 = vmul.f32 %v1075, %v2250
        %v2314 = vmul.f32 %v1076, %v2254
        %v2315 = vmul.f32 %v1077, %v2254
        %v2316 = vmul.f32 %v1078, %v2258
        %v2317 = vmul.f32 %v1079, %v2258
        %v2318 = vmul.f32 %v1080, %v2262
        %v2319 = vmul.f32 %v1081, %v2262
        %v2320 = vmul.f32 %v1082, %v2266
        %v2321 = vmul.f32 %v1083, %v2266
        %v2322 = vmul.f32 %v1084, %v2270
        %v2323 = vmul.f32 %v1085, %v2270
        %v2324 = vmul.f32 %v1086, %v2274
        %v2325 = vmul.f32 %v1087, %v2274
        %v2326 = vmul.f32 %v1088, %v2278
        %v2327 = vmul.f32 %v1089, %v2278
        %v2328 = vadd.f32 %v2136, %v2280
        %v2329 = vadd.f32 %v2137, %v2281
        %v2330 = vadd.f32 %v2138, %v2282
        %v2331 = vadd.f32 %v2139, %v2283
        %v2332 = vadd.f32 %v2140, %v2284
        %v2333 = vadd.f32 %v2141, %v2285
        %v2334 = vadd.f32 %v2142, %v2286
        %v2335 = vadd.f32 %v2143, %v2287
        %v2336 = vadd.f32 %v2144, %v2288
        %v2337 = vadd.f32 %v2145, %v2289
        %v2338 = vadd.f32 %v2146, %v2290
        %v2339 = vadd.f32 %v2147, %v2291
        %v2340 = vadd.f32 %v2148, %v2292
        %v2341 = vadd.f32 %v2149, %v2293
        %v2342 = vadd.f32 %v2150, %v2294
        %v2343 = vadd.f32 %v2151, %v2295
        %v2344 = vadd.f32 %v2152, %v2296
        %v2345 = vadd.f32 %v2153, %v2297
        %v2346 = vadd.f32 %v2154, %v2298
        %v2347 = vadd.f32 %v2155, %v2299
        %v2348 = vadd.f32 %v2156, %v2300
        %v2349 = vadd.f32 %v2157, %v2301
        %v2350 = vadd.f32 %v2158, %v2302
        %v2351 = vadd.f32 %v2159, %v2303
        %v2352 = vadd.f32 %v2160, %v2304
        %v2353 = vadd.f32 %v2161, %v2305
        %v2354 = vadd.f32 %v2162, %v2306
        %v2355 = vadd.f32 %v2163, %v2307
        %v2356 = vadd.f32 %v2164, %v2308
        %v2357 = vadd.f32 %v2165, %v2309
        %v2358 = vadd.f32 %v2166, %v2310
        %v2359 = vadd.f32 %v2167, %v2311
        %v2360 = vadd.f32 %v2168, %v2312
        %v2361 = vadd.f32 %v2169, %v2313
        %v2362 = vadd.f32 %v2170, %v2314
        %v2363 = vadd.f32 %v2171, %v2315
        %v2364 = vadd.f32 %v2172, %v2316
        %v2365 = vadd.f32 %v2173, %v2317
        %v2366 = vadd.f32 %v2174, %v2318
        %v2367 = vadd.f32 %v2175, %v2319
        %v2368 = vadd.f32 %v2176, %v2320
        %v2369 = vadd.f32 %v2177, %v2321
        %v2370 = vadd.f32 %v2178, %v2322
        %v2371 = vadd.f32 %v2179, %v2323
        %v2372 = vadd.f32 %v2180, %v2324
        %v2373 = vadd.f32 %v2181, %v2325
        %v2374 = vadd.f32 %v2182, %v2326
        %v2375 = vadd.f32 %v2183, %v2327
        %v2376 = vadd.f32 %v1800, %v2328
        %v2377 = vadd.f32 %v1801, %v2329
        %v2378 = vadd.f32 %v1802, %v2330
        %v2379 = vadd.f32 %v1803, %v2331
        %v2380 = vadd.f32 %v1804, %v2332
        %v2381 = vadd.f32 %v1805, %v2333
        %v2382 = vadd.f32 %v1806, %v2334
        %v2383 = vadd.f32 %v1807, %v2335
        %v2384 = vadd.f32 %v1808, %v2336
        %v2385 = vadd.f32 %v1809, %v2337
        %v2386 = vadd.f32 %v1810, %v2338
        %v2387 = vadd.f32 %v1811, %v2339
        %v2388 = vadd.f32 %v1812, %v2340
        %v2389 = vadd.f32 %v1813, %v2341
        %v2390 = vadd.f32 %v1814, %v2342
        %v2391 = vadd.f32 %v1815, %v2343
        %v2392 = vadd.f32 %v1816, %v2344
        %v2393 = vadd.f32 %v1817, %v2345
        %v2394 = vadd.f32 %v1818, %v2346
        %v2395 = vadd.f32 %v1819, %v2347
        %v2396 = vadd.f32 %v1820, %v2348
        %v2397 = vadd.f32 %v1821, %v2349
        %v2398 = vadd.f32 %v1822, %v2350
        %v2399 = vadd.f32 %v1823, %v2351
        %v2400 = vadd.f32 %v1824, %v2352
        %v2401 = vadd.f32 %v1825, %v2353
        %v2402 = vadd.f32 %v1826, %v2354
        %v2403 = vadd.f32 %v1827, %v2355
        %v2404 = vadd.f32 %v1828, %v2356
        %v2405 = vadd.f32 %v1829, %v2357
        %v2406 = vadd.f32 %v1830, %v2358
        %v2407 = vadd.f32 %v1831, %v2359
        %v2408 = vadd.f32 %v1832, %v2360
        %v2409 = vadd.f32 %v1833, %v2361
        %v2410 = vadd.f32 %v1834, %v2362
        %v2411 = vadd.f32 %v1835, %v2363
        %v2412 = vadd.f32 %v1836, %v2364
        %v2413 = vadd.f32 %v1837, %v2365
        %v2414 = vadd.f32 %v1838, %v2366
        %v2415 = vadd.f32 %v1839, %v2367
        %v2416 = vadd.f32 %v1840, %v2368
        %v2417 = vadd.f32 %v1841, %v2369
        %v2418 = vadd.f32 %v1842, %v2370
        %v2419 = vadd.f32 %v1843, %v2371
        %v2420 = vadd.f32 %v1844, %v2372
        %v2421 = vadd.f32 %v1845, %v2373
        %v2422 = vadd.f32 %v1846, %v2374
        %v2423 = vadd.f32 %v1847, %v2375
        %2424 = vset.pattern.permute.xlu0 6
        %2425 = vperm.xlu0 %2424, %v653
        %v2426 = vpop.permute.xlu0 %2425
        %2428 = vset.pattern.permute.xlu0 6
        %2429 = vperm.xlu0 %2428, %v654
        %v2430 = vpop.permute.xlu0 %2429
        %2432 = vset.pattern.permute.xlu0 6
        %2433 = vperm.xlu0 %2432, %v655
        %v2434 = vpop.permute.xlu0 %2433
        %2436 = vset.pattern.permute.xlu0 6
        %2437 = vperm.xlu0 %2436, %v656
        %v2438 = vpop.permute.xlu0 %2437
        %2440 = vset.pattern.permute.xlu0 6
        %2441 = vperm.xlu0 %2440, %v657
        %v2442 = vpop.permute.xlu0 %2441
        %2444 = vset.pattern.permute.xlu0 6
        %2445 = vperm.xlu0 %2444, %v658
        %v2446 = vpop.permute.xlu0 %2445
        %2448 = vset.pattern.permute.xlu0 6
        %2449 = vperm.xlu0 %2448, %v659
        %v2450 = vpop.permute.xlu0 %2449
        %2452 = vset.pattern.permute.xlu0 6
        %2453 = vperm.xlu0 %2452, %v660
        %v2454 = vpop.permute.xlu0 %2453
        %2456 = vset.pattern.permute.xlu0 6
        %2457 = vperm.xlu0 %2456, %v661
        %v2458 = vpop.permute.xlu0 %2457
        %2460 = vset.pattern.permute.xlu0 6
        %2461 = vperm.xlu0 %2460, %v662
        %v2462 = vpop.permute.xlu0 %2461
        %2464 = vset.pattern.permute.xlu0 6
        %2465 = vperm.xlu0 %2464, %v663
        %v2466 = vpop.permute.xlu0 %2465
        %2468 = vset.pattern.permute.xlu0 6
        %2469 = vperm.xlu0 %2468, %v664
        %v2470 = vpop.permute.xlu0 %2469
        %2472 = vset.pattern.permute.xlu0 6
        %2473 = vperm.xlu0 %2472, %v665
        %v2474 = vpop.permute.xlu0 %2473
        %2476 = vset.pattern.permute.xlu0 6
        %2477 = vperm.xlu0 %2476, %v666
        %v2478 = vpop.permute.xlu0 %2477
        %2480 = vset.pattern.permute.xlu0 6
        %2481 = vperm.xlu0 %2480, %v667
        %v2482 = vpop.permute.xlu0 %2481
        %2484 = vset.pattern.permute.xlu0 6
        %2485 = vperm.xlu0 %2484, %v668
        %v2486 = vpop.permute.xlu0 %2485
        %2488 = vset.pattern.permute.xlu0 6
        %2489 = vperm.xlu0 %2488, %v669
        %v2490 = vpop.permute.xlu0 %2489
        %2492 = vset.pattern.permute.xlu0 6
        %2493 = vperm.xlu0 %2492, %v670
        %v2494 = vpop.permute.xlu0 %2493
        %2496 = vset.pattern.permute.xlu0 6
        %2497 = vperm.xlu0 %2496, %v671
        %v2498 = vpop.permute.xlu0 %2497
        %2500 = vset.pattern.permute.xlu0 6
        %2501 = vperm.xlu0 %2500, %v672
        %v2502 = vpop.permute.xlu0 %2501
        %2504 = vset.pattern.permute.xlu0 6
        %2505 = vperm.xlu0 %2504, %v673
        %v2506 = vpop.permute.xlu0 %2505
        %2508 = vset.pattern.permute.xlu0 6
        %2509 = vperm.xlu0 %2508, %v674
        %v2510 = vpop.permute.xlu0 %2509
        %2512 = vset.pattern.permute.xlu0 6
        %2513 = vperm.xlu0 %2512, %v675
        %v2514 = vpop.permute.xlu0 %2513
        %2516 = vset.pattern.permute.xlu0 6
        %2517 = vperm.xlu0 %2516, %v676
        %v2518 = vpop.permute.xlu0 %2517
        %v2520 = vmul.f32 %v836, %v2426
        %v2521 = vmul.f32 %v837, %v2426
        %v2522 = vmul.f32 %v838, %v2430
        %v2523 = vmul.f32 %v839, %v2430
        %v2524 = vmul.f32 %v840, %v2434
        %v2525 = vmul.f32 %v841, %v2434
        %v2526 = vmul.f32 %v842, %v2438
        %v2527 = vmul.f32 %v843, %v2438
        %v2528 = vmul.f32 %v844, %v2442
        %v2529 = vmul.f32 %v845, %v2442
        %v2530 = vmul.f32 %v846, %v2446
        %v2531 = vmul.f32 %v847, %v2446
        %v2532 = vmul.f32 %v848, %v2450
        %v2533 = vmul.f32 %v849, %v2450
        %v2534 = vmul.f32 %v850, %v2454
        %v2535 = vmul.f32 %v851, %v2454
        %v2536 = vmul.f32 %v852, %v2458
        %v2537 = vmul.f32 %v853, %v2458
        %v2538 = vmul.f32 %v854, %v2462
        %v2539 = vmul.f32 %v855, %v2462
        %v2540 = vmul.f32 %v856, %v2466
        %v2541 = vmul.f32 %v857, %v2466
        %v2542 = vmul.f32 %v858, %v2470
        %v2543 = vmul.f32 %v859, %v2470
        %v2544 = vmul.f32 %v860, %v2474
        %v2545 = vmul.f32 %v861, %v2474
        %v2546 = vmul.f32 %v862, %v2478
        %v2547 = vmul.f32 %v863, %v2478
        %v2548 = vmul.f32 %v864, %v2482
        %v2549 = vmul.f32 %v865, %v2482
        %v2550 = vmul.f32 %v866, %v2486
        %v2551 = vmul.f32 %v867, %v2486
        %v2552 = vmul.f32 %v868, %v2490
        %v2553 = vmul.f32 %v869, %v2490
        %v2554 = vmul.f32 %v870, %v2494
        %v2555 = vmul.f32 %v871, %v2494
        %v2556 = vmul.f32 %v872, %v2498
        %v2557 = vmul.f32 %v873, %v2498
        %v2558 = vmul.f32 %v874, %v2502
        %v2559 = vmul.f32 %v875, %v2502
        %v2560 = vmul.f32 %v876, %v2506
        %v2561 = vmul.f32 %v877, %v2506
        %v2562 = vmul.f32 %v878, %v2510
        %v2563 = vmul.f32 %v879, %v2510
        %v2564 = vmul.f32 %v880, %v2514
        %v2565 = vmul.f32 %v881, %v2514
        %v2566 = vmul.f32 %v882, %v2518
        %v2567 = vmul.f32 %v883, %v2518
        %2568 = vset.pattern.permute.xlu0 7
        %2569 = vperm.xlu0 %2568, %v653
        %v2570 = vpop.permute.xlu0 %2569
        %2572 = vset.pattern.permute.xlu0 7
        %2573 = vperm.xlu0 %2572, %v654
        %v2574 = vpop.permute.xlu0 %2573
        %2576 = vset.pattern.permute.xlu0 7
        %2577 = vperm.xlu0 %2576, %v655
        %v2578 = vpop.permute.xlu0 %2577
        %2580 = vset.pattern.permute.xlu0 7
        %2581 = vperm.xlu0 %2580, %v656
        %v2582 = vpop.permute.xlu0 %2581
        %2584 = vset.pattern.permute.xlu0 7
        %2585 = vperm.xlu0 %2584, %v657
        %v2586 = vpop.permute.xlu0 %2585
        %2588 = vset.pattern.permute.xlu0 7
        %2589 = vperm.xlu0 %2588, %v658
        %v2590 = vpop.permute.xlu0 %2589
        %2592 = vset.pattern.permute.xlu0 7
        %2593 = vperm.xlu0 %2592, %v659
        %v2594 = vpop.permute.xlu0 %2593
        %2596 = vset.pattern.permute.xlu0 7
        %2597 = vperm.xlu0 %2596, %v660
        %v2598 = vpop.permute.xlu0 %2597
        %2600 = vset.pattern.permute.xlu0 7
        %2601 = vperm.xlu0 %2600, %v661
        %v2602 = vpop.permute.xlu0 %2601
        %2604 = vset.pattern.permute.xlu0 7
        %2605 = vperm.xlu0 %2604, %v662
        %v2606 = vpop.permute.xlu0 %2605
        %2608 = vset.pattern.permute.xlu0 7
        %2609 = vperm.xlu0 %2608, %v663
        %v2610 = vpop.permute.xlu0 %2609
        %2612 = vset.pattern.permute.xlu0 7
        %2613 = vperm.xlu0 %2612, %v664
        %v2614 = vpop.permute.xlu0 %2613
        %2616 = vset.pattern.permute.xlu0 7
        %2617 = vperm.xlu0 %2616, %v665
        %v2618 = vpop.permute.xlu0 %2617
        %2620 = vset.pattern.permute.xlu0 7
        %2621 = vperm.xlu0 %2620, %v666
        %v2622 = vpop.permute.xlu0 %2621
        %2624 = vset.pattern.permute.xlu0 7
        %2625 = vperm.xlu0 %2624, %v667
        %v2626 = vpop.permute.xlu0 %2625
        %2628 = vset.pattern.permute.xlu0 7
        %2629 = vperm.xlu0 %2628, %v668
        %v2630 = vpop.permute.xlu0 %2629
        %2632 = vset.pattern.permute.xlu0 7
        %2633 = vperm.xlu0 %2632, %v669
        %v2634 = vpop.permute.xlu0 %2633
        %2636 = vset.pattern.permute.xlu0 7
        %2637 = vperm.xlu0 %2636, %v670
        %v2638 = vpop.permute.xlu0 %2637
        %2640 = vset.pattern.permute.xlu0 7
        %2641 = vperm.xlu0 %2640, %v671
        %v2642 = vpop.permute.xlu0 %2641
        %2644 = vset.pattern.permute.xlu0 7
        %2645 = vperm.xlu0 %2644, %v672
        %v2646 = vpop.permute.xlu0 %2645
        %2648 = vset.pattern.permute.xlu0 7
        %2649 = vperm.xlu0 %2648, %v673
        %v2650 = vpop.permute.xlu0 %2649
        %2652 = vset.pattern.permute.xlu0 7
        %2653 = vperm.xlu0 %2652, %v674
        %v2654 = vpop.permute.xlu0 %2653
        %2656 = vset.pattern.permute.xlu0 7
        %2657 = vperm.xlu0 %2656, %v675
        %v2658 = vpop.permute.xlu0 %2657
        %2660 = vset.pattern.permute.xlu0 7
        %2661 = vperm.xlu0 %2660, %v676
        %v2662 = vpop.permute.xlu0 %2661
        %v2664 = vmul.f32 %v511, %v2570
        %v2665 = vmul.f32 %v513, %v2570
        %v2666 = vmul.f32 %v517, %v2574
        %v2667 = vmul.f32 %v519, %v2574
        %v2668 = vmul.f32 %v523, %v2578
        %v2669 = vmul.f32 %v525, %v2578
        %v2670 = vmul.f32 %v529, %v2582
        %v2671 = vmul.f32 %v531, %v2582
        %v2672 = vmul.f32 %v535, %v2586
        %v2673 = vmul.f32 %v537, %v2586
        %v2674 = vmul.f32 %v541, %v2590
        %v2675 = vmul.f32 %v543, %v2590
        %v2676 = vmul.f32 %v547, %v2594
        %v2677 = vmul.f32 %v549, %v2594
        %v2678 = vmul.f32 %v553, %v2598
        %v2679 = vmul.f32 %v555, %v2598
        %v2680 = vmul.f32 %v559, %v2602
        %v2681 = vmul.f32 %v561, %v2602
        %v2682 = vmul.f32 %v565, %v2606
        %v2683 = vmul.f32 %v567, %v2606
        %v2684 = vmul.f32 %v571, %v2610
        %v2685 = vmul.f32 %v573, %v2610
        %v2686 = vmul.f32 %v577, %v2614
        %v2687 = vmul.f32 %v579, %v2614
        %v2688 = vmul.f32 %v583, %v2618
        %v2689 = vmul.f32 %v585, %v2618
        %v2690 = vmul.f32 %v589, %v2622
        %v2691 = vmul.f32 %v591, %v2622
        %v2692 = vmul.f32 %v595, %v2626
        %v2693 = vmul.f32 %v597, %v2626
        %v2694 = vmul.f32 %v601, %v2630
        %v2695 = vmul.f32 %v603, %v2630
        %v2696 = vmul.f32 %v607, %v2634
        %v2697 = vmul.f32 %v609, %v2634
        %v2698 = vmul.f32 %v613, %v2638
        %v2699 = vmul.f32 %v615, %v2638
        %v2700 = vmul.f32 %v619, %v2642
        %v2701 = vmul.f32 %v621, %v2642
        %v2702 = vmul.f32 %v625, %v2646
        %v2703 = vmul.f32 %v627, %v2646
        %v2704 = vmul.f32 %v631, %v2650
        %v2705 = vmul.f32 %v633, %v2650
        %v2706 = vmul.f32 %v637, %v2654
        %v2707 = vmul.f32 %v639, %v2654
        %v2708 = vmul.f32 %v643, %v2658
        %v2709 = vmul.f32 %v645, %v2658
        %v2710 = vmul.f32 %v649, %v2662
        %v2711 = vmul.f32 %v651, %v2662
        %v2712 = vadd.f32 %v2520, %v2664
        %v2713 = vadd.f32 %v2521, %v2665
        %v2714 = vadd.f32 %v2522, %v2666
        %v2715 = vadd.f32 %v2523, %v2667
        %v2716 = vadd.f32 %v2524, %v2668
        %v2717 = vadd.f32 %v2525, %v2669
        %v2718 = vadd.f32 %v2526, %v2670
        %v2719 = vadd.f32 %v2527, %v2671
        %v2720 = vadd.f32 %v2528, %v2672
        %v2721 = vadd.f32 %v2529, %v2673
        %v2722 = vadd.f32 %v2530, %v2674
        %v2723 = vadd.f32 %v2531, %v2675
        %v2724 = vadd.f32 %v2532, %v2676
        %v2725 = vadd.f32 %v2533, %v2677
        %v2726 = vadd.f32 %v2534, %v2678
        %v2727 = vadd.f32 %v2535, %v2679
        %v2728 = vadd.f32 %v2536, %v2680
        %v2729 = vadd.f32 %v2537, %v2681
        %v2730 = vadd.f32 %v2538, %v2682
        %v2731 = vadd.f32 %v2539, %v2683
        %v2732 = vadd.f32 %v2540, %v2684
        %v2733 = vadd.f32 %v2541, %v2685
        %v2734 = vadd.f32 %v2542, %v2686
        %v2735 = vadd.f32 %v2543, %v2687
        %v2736 = vadd.f32 %v2544, %v2688
        %v2737 = vadd.f32 %v2545, %v2689
        %v2738 = vadd.f32 %v2546, %v2690
        %v2739 = vadd.f32 %v2547, %v2691
        %v2740 = vadd.f32 %v2548, %v2692
        %v2741 = vadd.f32 %v2549, %v2693
        %v2742 = vadd.f32 %v2550, %v2694
        %v2743 = vadd.f32 %v2551, %v2695
        %v2744 = vadd.f32 %v2552, %v2696
        %v2745 = vadd.f32 %v2553, %v2697
        %v2746 = vadd.f32 %v2554, %v2698
        %v2747 = vadd.f32 %v2555, %v2699
        %v2748 = vadd.f32 %v2556, %v2700
        %v2749 = vadd.f32 %v2557, %v2701
        %v2750 = vadd.f32 %v2558, %v2702
        %v2751 = vadd.f32 %v2559, %v2703
        %v2752 = vadd.f32 %v2560, %v2704
        %v2753 = vadd.f32 %v2561, %v2705
        %v2754 = vadd.f32 %v2562, %v2706
        %v2755 = vadd.f32 %v2563, %v2707
        %v2756 = vadd.f32 %v2564, %v2708
        %v2757 = vadd.f32 %v2565, %v2709
        %v2758 = vadd.f32 %v2566, %v2710
        %v2759 = vadd.f32 %v2567, %v2711
        %2760 = vset.pattern.permute.xlu0 8
        %2761 = vperm.xlu0 %2760, %v653
        %v2762 = vpop.permute.xlu0 %2761
        %2764 = vset.pattern.permute.xlu0 8
        %2765 = vperm.xlu0 %2764, %v654
        %v2766 = vpop.permute.xlu0 %2765
        %2768 = vset.pattern.permute.xlu0 8
        %2769 = vperm.xlu0 %2768, %v655
        %v2770 = vpop.permute.xlu0 %2769
        %2772 = vset.pattern.permute.xlu0 8
        %2773 = vperm.xlu0 %2772, %v656
        %v2774 = vpop.permute.xlu0 %2773
        %2776 = vset.pattern.permute.xlu0 8
        %2777 = vperm.xlu0 %2776, %v657
        %v2778 = vpop.permute.xlu0 %2777
        %2780 = vset.pattern.permute.xlu0 8
        %2781 = vperm.xlu0 %2780, %v658
        %v2782 = vpop.permute.xlu0 %2781
        %2784 = vset.pattern.permute.xlu0 8
        %2785 = vperm.xlu0 %2784, %v659
        %v2786 = vpop.permute.xlu0 %2785
        %2788 = vset.pattern.permute.xlu0 8
        %2789 = vperm.xlu0 %2788, %v660
        %v2790 = vpop.permute.xlu0 %2789
        %2792 = vset.pattern.permute.xlu0 8
        %2793 = vperm.xlu0 %2792, %v661
        %v2794 = vpop.permute.xlu0 %2793
        %2796 = vset.pattern.permute.xlu0 8
        %2797 = vperm.xlu0 %2796, %v662
        %v2798 = vpop.permute.xlu0 %2797
        %2800 = vset.pattern.permute.xlu0 8
        %2801 = vperm.xlu0 %2800, %v663
        %v2802 = vpop.permute.xlu0 %2801
        %2804 = vset.pattern.permute.xlu0 8
        %2805 = vperm.xlu0 %2804, %v664
        %v2806 = vpop.permute.xlu0 %2805
        %2808 = vset.pattern.permute.xlu0 8
        %2809 = vperm.xlu0 %2808, %v665
        %v2810 = vpop.permute.xlu0 %2809
        %2812 = vset.pattern.permute.xlu0 8
        %2813 = vperm.xlu0 %2812, %v666
        %v2814 = vpop.permute.xlu0 %2813
        %2816 = vset.pattern.permute.xlu0 8
        %2817 = vperm.xlu0 %2816, %v667
        %v2818 = vpop.permute.xlu0 %2817
        %2820 = vset.pattern.permute.xlu0 8
        %2821 = vperm.xlu0 %2820, %v668
        %v2822 = vpop.permute.xlu0 %2821
        %2824 = vset.pattern.permute.xlu0 8
        %2825 = vperm.xlu0 %2824, %v669
        %v2826 = vpop.permute.xlu0 %2825
        %2828 = vset.pattern.permute.xlu0 8
        %2829 = vperm.xlu0 %2828, %v670
        %v2830 = vpop.permute.xlu0 %2829
        %2832 = vset.pattern.permute.xlu0 8
        %2833 = vperm.xlu0 %2832, %v671
        %v2834 = vpop.permute.xlu0 %2833
        %2836 = vset.pattern.permute.xlu0 8
        %2837 = vperm.xlu0 %2836, %v672
        %v2838 = vpop.permute.xlu0 %2837
        %2840 = vset.pattern.permute.xlu0 8
        %2841 = vperm.xlu0 %2840, %v673
        %v2842 = vpop.permute.xlu0 %2841
        %2844 = vset.pattern.permute.xlu0 8
        %2845 = vperm.xlu0 %2844, %v674
        %v2846 = vpop.permute.xlu0 %2845
        %2848 = vset.pattern.permute.xlu0 8
        %2849 = vperm.xlu0 %2848, %v675
        %v2850 = vpop.permute.xlu0 %2849
        %2852 = vset.pattern.permute.xlu0 8
        %2853 = vperm.xlu0 %2852, %v676
        %v2854 = vpop.permute.xlu0 %2853
        %v2856 = vmul.f32 %v1042, %v2762
        %v2857 = vmul.f32 %v1043, %v2762
        %v2858 = vmul.f32 %v1044, %v2766
        %v2859 = vmul.f32 %v1045, %v2766
        %v2860 = vmul.f32 %v1046, %v2770
        %v2861 = vmul.f32 %v1047, %v2770
        %v2862 = vmul.f32 %v1048, %v2774
        %v2863 = vmul.f32 %v1049, %v2774
        %v2864 = vmul.f32 %v1050, %v2778
        %v2865 = vmul.f32 %v1051, %v2778
        %v2866 = vmul.f32 %v1052, %v2782
        %v2867 = vmul.f32 %v1053, %v2782
        %v2868 = vmul.f32 %v1054, %v2786
        %v2869 = vmul.f32 %v1055, %v2786
        %v2870 = vmul.f32 %v1056, %v2790
        %v2871 = vmul.f32 %v1057, %v2790
        %v2872 = vmul.f32 %v1058, %v2794
        %v2873 = vmul.f32 %v1059, %v2794
        %v2874 = vmul.f32 %v1060, %v2798
        %v2875 = vmul.f32 %v1061, %v2798
        %v2876 = vmul.f32 %v1062, %v2802
        %v2877 = vmul.f32 %v1063, %v2802
        %v2878 = vmul.f32 %v1064, %v2806
        %v2879 = vmul.f32 %v1065, %v2806
        %v2880 = vmul.f32 %v1066, %v2810
        %v2881 = vmul.f32 %v1067, %v2810
        %v2882 = vmul.f32 %v1068, %v2814
        %v2883 = vmul.f32 %v1069, %v2814
        %v2884 = vmul.f32 %v1070, %v2818
        %v2885 = vmul.f32 %v1071, %v2818
        %v2886 = vmul.f32 %v1072, %v2822
        %v2887 = vmul.f32 %v1073, %v2822
        %v2888 = vmul.f32 %v1074, %v2826
        %v2889 = vmul.f32 %v1075, %v2826
        %v2890 = vmul.f32 %v1076, %v2830
        %v2891 = vmul.f32 %v1077, %v2830
        %v2892 = vmul.f32 %v1078, %v2834
        %v2893 = vmul.f32 %v1079, %v2834
        %v2894 = vmul.f32 %v1080, %v2838
        %v2895 = vmul.f32 %v1081, %v2838
        %v2896 = vmul.f32 %v1082, %v2842
        %v2897 = vmul.f32 %v1083, %v2842
        %v2898 = vmul.f32 %v1084, %v2846
        %v2899 = vmul.f32 %v1085, %v2846
        %v2900 = vmul.f32 %v1086, %v2850
        %v2901 = vmul.f32 %v1087, %v2850
        %v2902 = vmul.f32 %v1088, %v2854
        %v2903 = vmul.f32 %v1089, %v2854
        %v2904 = vadd.f32 %v2712, %v2856
        %v2905 = vadd.f32 %v2713, %v2857
        %v2906 = vadd.f32 %v2714, %v2858
        %v2907 = vadd.f32 %v2715, %v2859
        %v2908 = vadd.f32 %v2716, %v2860
        %v2909 = vadd.f32 %v2717, %v2861
        %v2910 = vadd.f32 %v2718, %v2862
        %v2911 = vadd.f32 %v2719, %v2863
        %v2912 = vadd.f32 %v2720, %v2864
        %v2913 = vadd.f32 %v2721, %v2865
        %v2914 = vadd.f32 %v2722, %v2866
        %v2915 = vadd.f32 %v2723, %v2867
        %v2916 = vadd.f32 %v2724, %v2868
        %v2917 = vadd.f32 %v2725, %v2869
        %v2918 = vadd.f32 %v2726, %v2870
        %v2919 = vadd.f32 %v2727, %v2871
        %v2920 = vadd.f32 %v2728, %v2872
        %v2921 = vadd.f32 %v2729, %v2873
        %v2922 = vadd.f32 %v2730, %v2874
        %v2923 = vadd.f32 %v2731, %v2875
        %v2924 = vadd.f32 %v2732, %v2876
        %v2925 = vadd.f32 %v2733, %v2877
        %v2926 = vadd.f32 %v2734, %v2878
        %v2927 = vadd.f32 %v2735, %v2879
        %v2928 = vadd.f32 %v2736, %v2880
        %v2929 = vadd.f32 %v2737, %v2881
        %v2930 = vadd.f32 %v2738, %v2882
        %v2931 = vadd.f32 %v2739, %v2883
        %v2932 = vadd.f32 %v2740, %v2884
        %v2933 = vadd.f32 %v2741, %v2885
        %v2934 = vadd.f32 %v2742, %v2886
        %v2935 = vadd.f32 %v2743, %v2887
        %v2936 = vadd.f32 %v2744, %v2888
        %v2937 = vadd.f32 %v2745, %v2889
        %v2938 = vadd.f32 %v2746, %v2890
        %v2939 = vadd.f32 %v2747, %v2891
        %v2940 = vadd.f32 %v2748, %v2892
        %v2941 = vadd.f32 %v2749, %v2893
        %v2942 = vadd.f32 %v2750, %v2894
        %v2943 = vadd.f32 %v2751, %v2895
        %v2944 = vadd.f32 %v2752, %v2896
        %v2945 = vadd.f32 %v2753, %v2897
        %v2946 = vadd.f32 %v2754, %v2898
        %v2947 = vadd.f32 %v2755, %v2899
        %v2948 = vadd.f32 %v2756, %v2900
        %v2949 = vadd.f32 %v2757, %v2901
        %v2950 = vadd.f32 %v2758, %v2902
        %v2951 = vadd.f32 %v2759, %v2903
        %2952 = vrot.lane.b32.xlu0 %v2904, 112
        %v2953 = vpop.permute.xlu0 %2952
        %2954 = vrot.lane.b32.xlu0 %v2906, 112
        %v2955 = vpop.permute.xlu0 %2954
        %2956 = vrot.lane.b32.xlu0 %v2908, 112
        %v2957 = vpop.permute.xlu0 %2956
        %2958 = vrot.lane.b32.xlu0 %v2910, 112
        %v2959 = vpop.permute.xlu0 %2958
        %2960 = vrot.lane.b32.xlu0 %v2912, 112
        %v2961 = vpop.permute.xlu0 %2960
        %2962 = vrot.lane.b32.xlu0 %v2914, 112
        %v2963 = vpop.permute.xlu0 %2962
        %2964 = vrot.lane.b32.xlu0 %v2916, 112
        %v2965 = vpop.permute.xlu0 %2964
        %2966 = vrot.lane.b32.xlu0 %v2918, 112
        %v2967 = vpop.permute.xlu0 %2966
        %2968 = vrot.lane.b32.xlu0 %v2920, 112
        %v2969 = vpop.permute.xlu0 %2968
        %2970 = vrot.lane.b32.xlu0 %v2922, 112
        %v2971 = vpop.permute.xlu0 %2970
        %2972 = vrot.lane.b32.xlu0 %v2924, 112
        %v2973 = vpop.permute.xlu0 %2972
        %2974 = vrot.lane.b32.xlu0 %v2926, 112
        %v2975 = vpop.permute.xlu0 %2974
        %2976 = vrot.lane.b32.xlu0 %v2928, 112
        %v2977 = vpop.permute.xlu0 %2976
        %2978 = vrot.lane.b32.xlu0 %v2930, 112
        %v2979 = vpop.permute.xlu0 %2978
        %2980 = vrot.lane.b32.xlu0 %v2932, 112
        %v2981 = vpop.permute.xlu0 %2980
        %2982 = vrot.lane.b32.xlu0 %v2934, 112
        %v2983 = vpop.permute.xlu0 %2982
        %2984 = vrot.lane.b32.xlu0 %v2936, 112
        %v2985 = vpop.permute.xlu0 %2984
        %2986 = vrot.lane.b32.xlu0 %v2938, 112
        %v2987 = vpop.permute.xlu0 %2986
        %2988 = vrot.lane.b32.xlu0 %v2940, 112
        %v2989 = vpop.permute.xlu0 %2988
        %2990 = vrot.lane.b32.xlu0 %v2942, 112
        %v2991 = vpop.permute.xlu0 %2990
        %2992 = vrot.lane.b32.xlu0 %v2944, 112
        %v2993 = vpop.permute.xlu0 %2992
        %2994 = vrot.lane.b32.xlu0 %v2946, 112
        %v2995 = vpop.permute.xlu0 %2994
        %2996 = vrot.lane.b32.xlu0 %v2948, 112
        %v2997 = vpop.permute.xlu0 %2996
        %2998 = vrot.lane.b32.xlu0 %v2950, 112
        %v2999 = vpop.permute.xlu0 %2998
        %3000 = vrot.lane.b32.xlu0 %v2905, 112
        %v3001 = vpop.permute.xlu0 %3000
        %3002 = vrot.lane.b32.xlu0 %v2907, 112
        %v3003 = vpop.permute.xlu0 %3002
        %3004 = vrot.lane.b32.xlu0 %v2909, 112
        %v3005 = vpop.permute.xlu0 %3004
        %3006 = vrot.lane.b32.xlu0 %v2911, 112
        %v3007 = vpop.permute.xlu0 %3006
        %3008 = vrot.lane.b32.xlu0 %v2913, 112
        %v3009 = vpop.permute.xlu0 %3008
        %3010 = vrot.lane.b32.xlu0 %v2915, 112
        %v3011 = vpop.permute.xlu0 %3010
        %3012 = vrot.lane.b32.xlu0 %v2917, 112
        %v3013 = vpop.permute.xlu0 %3012
        %3014 = vrot.lane.b32.xlu0 %v2919, 112
        %v3015 = vpop.permute.xlu0 %3014
        %3016 = vrot.lane.b32.xlu0 %v2921, 112
        %v3017 = vpop.permute.xlu0 %3016
        %3018 = vrot.lane.b32.xlu0 %v2923, 112
        %v3019 = vpop.permute.xlu0 %3018
        %3020 = vrot.lane.b32.xlu0 %v2925, 112
        %v3021 = vpop.permute.xlu0 %3020
        %3022 = vrot.lane.b32.xlu0 %v2927, 112
        %v3023 = vpop.permute.xlu0 %3022
        %3024 = vrot.lane.b32.xlu0 %v2929, 112
        %v3025 = vpop.permute.xlu0 %3024
        %3026 = vrot.lane.b32.xlu0 %v2931, 112
        %v3027 = vpop.permute.xlu0 %3026
        %3028 = vrot.lane.b32.xlu0 %v2933, 112
        %v3029 = vpop.permute.xlu0 %3028
        %3030 = vrot.lane.b32.xlu0 %v2935, 112
        %v3031 = vpop.permute.xlu0 %3030
        %3032 = vrot.lane.b32.xlu0 %v2937, 112
        %v3033 = vpop.permute.xlu0 %3032
        %3034 = vrot.lane.b32.xlu0 %v2939, 112
        %v3035 = vpop.permute.xlu0 %3034
        %3036 = vrot.lane.b32.xlu0 %v2941, 112
        %v3037 = vpop.permute.xlu0 %3036
        %3038 = vrot.lane.b32.xlu0 %v2943, 112
        %v3039 = vpop.permute.xlu0 %3038
        %3040 = vrot.lane.b32.xlu0 %v2945, 112
        %v3041 = vpop.permute.xlu0 %3040
        %3042 = vrot.lane.b32.xlu0 %v2947, 112
        %v3043 = vpop.permute.xlu0 %3042
        %3044 = vrot.lane.b32.xlu0 %v2949, 112
        %v3045 = vpop.permute.xlu0 %3044
        %3046 = vrot.lane.b32.xlu0 %v2951, 112
        %v3047 = vpop.permute.xlu0 %3046
        %vm3048 = vcmp.lt.s32.totalorder %v774, 112
        %v3049 = vsel %vm3048, %v2953, %v3001
        %v3050 = vsel %vm3048, %v2955, %v3003
        %v3051 = vsel %vm3048, %v2957, %v3005
        %v3052 = vsel %vm3048, %v2959, %v3007
        %v3053 = vsel %vm3048, %v2961, %v3009
        %v3054 = vsel %vm3048, %v2963, %v3011
        %v3055 = vsel %vm3048, %v2965, %v3013
        %v3056 = vsel %vm3048, %v2967, %v3015
        %v3057 = vsel %vm3048, %v2969, %v3017
        %v3058 = vsel %vm3048, %v2971, %v3019
        %v3059 = vsel %vm3048, %v2973, %v3021
        %v3060 = vsel %vm3048, %v2975, %v3023
        %v3061 = vsel %vm3048, %v2977, %v3025
        %v3062 = vsel %vm3048, %v2979, %v3027
        %v3063 = vsel %vm3048, %v2981, %v3029
        %v3064 = vsel %vm3048, %v2983, %v3031
        %v3065 = vsel %vm3048, %v2985, %v3033
        %v3066 = vsel %vm3048, %v2987, %v3035
        %v3067 = vsel %vm3048, %v2989, %v3037
        %v3068 = vsel %vm3048, %v2991, %v3039
        %v3069 = vsel %vm3048, %v2993, %v3041
        %v3070 = vsel %vm3048, %v2995, %v3043
        %v3071 = vsel %vm3048, %v2997, %v3045
        %v3072 = vsel %vm3048, %v2999, %v3047
        %v3073 = vsel %vm3048, %v3001, %v2953
        %v3074 = vsel %vm3048, %v3003, %v2955
        %v3075 = vsel %vm3048, %v3005, %v2957
        %v3076 = vsel %vm3048, %v3007, %v2959
        %v3077 = vsel %vm3048, %v3009, %v2961
        %v3078 = vsel %vm3048, %v3011, %v2963
        %v3079 = vsel %vm3048, %v3013, %v2965
        %v3080 = vsel %vm3048, %v3015, %v2967
        %v3081 = vsel %vm3048, %v3017, %v2969
        %v3082 = vsel %vm3048, %v3019, %v2971
        %v3083 = vsel %vm3048, %v3021, %v2973
        %v3084 = vsel %vm3048, %v3023, %v2975
        %v3085 = vsel %vm3048, %v3025, %v2977
        %v3086 = vsel %vm3048, %v3027, %v2979
        %v3087 = vsel %vm3048, %v3029, %v2981
        %v3088 = vsel %vm3048, %v3031, %v2983
        %v3089 = vsel %vm3048, %v3033, %v2985
        %v3090 = vsel %vm3048, %v3035, %v2987
        %v3091 = vsel %vm3048, %v3037, %v2989
        %v3092 = vsel %vm3048, %v3039, %v2991
        %v3093 = vsel %vm3048, %v3041, %v2993
        %v3094 = vsel %vm3048, %v3043, %v2995
        %v3095 = vsel %vm3048, %v3045, %v2997
        %v3096 = vsel %vm3048, %v3047, %v2999
        %s3097 = scalar_lea.vmem %s7, 3
        %v3098 = vld [vmem:[%s3097] ss:$4 sm:$0x3]
        %v3100 = vlaneseq
        %v3101 = vshrl.u32 %v3100, 7
        %v3102 = vsub.s32 0, %v3101
        %v3103 = vrot.slane %v3098, %v3102
        %v3104 = vlaneseq
        %v3105 = vshrl.u32 %v3104, 7
        %v3106 = vsub.s32 1, %v3105
        %v3107 = vrot.slane %v3098, %v3106
        %v3110 = vmul.f32 %v3049, %v3103
        %v3111 = vmul.f32 %v3073, %v3107
        %v3112 = vmul.f32 %v3050, %v3103
        %v3113 = vmul.f32 %v3074, %v3107
        %v3114 = vmul.f32 %v3051, %v3103
        %v3115 = vmul.f32 %v3075, %v3107
        %v3116 = vmul.f32 %v3052, %v3103
        %v3117 = vmul.f32 %v3076, %v3107
        %v3118 = vmul.f32 %v3053, %v3103
        %v3119 = vmul.f32 %v3077, %v3107
        %v3120 = vmul.f32 %v3054, %v3103
        %v3121 = vmul.f32 %v3078, %v3107
        %v3122 = vmul.f32 %v3055, %v3103
        %v3123 = vmul.f32 %v3079, %v3107
        %v3124 = vmul.f32 %v3056, %v3103
        %v3125 = vmul.f32 %v3080, %v3107
        %v3126 = vmul.f32 %v3057, %v3103
        %v3127 = vmul.f32 %v3081, %v3107
        %v3128 = vmul.f32 %v3058, %v3103
        %v3129 = vmul.f32 %v3082, %v3107
        %v3130 = vmul.f32 %v3059, %v3103
        %v3131 = vmul.f32 %v3083, %v3107
        %v3132 = vmul.f32 %v3060, %v3103
        %v3133 = vmul.f32 %v3084, %v3107
        %v3134 = vmul.f32 %v3061, %v3103
        %v3135 = vmul.f32 %v3085, %v3107
        %v3136 = vmul.f32 %v3062, %v3103
        %v3137 = vmul.f32 %v3086, %v3107
        %v3138 = vmul.f32 %v3063, %v3103
        %v3139 = vmul.f32 %v3087, %v3107
        %v3140 = vmul.f32 %v3064, %v3103
        %v3141 = vmul.f32 %v3088, %v3107
        %v3142 = vmul.f32 %v3065, %v3103
        %v3143 = vmul.f32 %v3089, %v3107
        %v3144 = vmul.f32 %v3066, %v3103
        %v3145 = vmul.f32 %v3090, %v3107
        %v3146 = vmul.f32 %v3067, %v3103
        %v3147 = vmul.f32 %v3091, %v3107
        %v3148 = vmul.f32 %v3068, %v3103
        %v3149 = vmul.f32 %v3092, %v3107
        %v3150 = vmul.f32 %v3069, %v3103
        %v3151 = vmul.f32 %v3093, %v3107
        %v3152 = vmul.f32 %v3070, %v3103
        %v3153 = vmul.f32 %v3094, %v3107
        %v3154 = vmul.f32 %v3071, %v3103
        %v3155 = vmul.f32 %v3095, %v3107
        %v3156 = vmul.f32 %v3072, %v3103
        %v3157 = vmul.f32 %v3096, %v3107
        %v3158 = vadd.f32 %v2376, %v3110
        %v3159 = vadd.f32 %v2377, %v3111
        %v3160 = vadd.f32 %v2378, %v3112
        %v3161 = vadd.f32 %v2379, %v3113
        %v3162 = vadd.f32 %v2380, %v3114
        %v3163 = vadd.f32 %v2381, %v3115
        %v3164 = vadd.f32 %v2382, %v3116
        %v3165 = vadd.f32 %v2383, %v3117
        %v3166 = vadd.f32 %v2384, %v3118
        %v3167 = vadd.f32 %v2385, %v3119
        %v3168 = vadd.f32 %v2386, %v3120
        %v3169 = vadd.f32 %v2387, %v3121
        %v3170 = vadd.f32 %v2388, %v3122
        %v3171 = vadd.f32 %v2389, %v3123
        %v3172 = vadd.f32 %v2390, %v3124
        %v3173 = vadd.f32 %v2391, %v3125
        %v3174 = vadd.f32 %v2392, %v3126
        %v3175 = vadd.f32 %v2393, %v3127
        %v3176 = vadd.f32 %v2394, %v3128
        %v3177 = vadd.f32 %v2395, %v3129
        %v3178 = vadd.f32 %v2396, %v3130
        %v3179 = vadd.f32 %v2397, %v3131
        %v3180 = vadd.f32 %v2398, %v3132
        %v3181 = vadd.f32 %v2399, %v3133
        %v3182 = vadd.f32 %v2400, %v3134
        %v3183 = vadd.f32 %v2401, %v3135
        %v3184 = vadd.f32 %v2402, %v3136
        %v3185 = vadd.f32 %v2403, %v3137
        %v3186 = vadd.f32 %v2404, %v3138
        %v3187 = vadd.f32 %v2405, %v3139
        %v3188 = vadd.f32 %v2406, %v3140
        %v3189 = vadd.f32 %v2407, %v3141
        %v3190 = vadd.f32 %v2408, %v3142
        %v3191 = vadd.f32 %v2409, %v3143
        %v3192 = vadd.f32 %v2410, %v3144
        %v3193 = vadd.f32 %v2411, %v3145
        %v3194 = vadd.f32 %v2412, %v3146
        %v3195 = vadd.f32 %v2413, %v3147
        %v3196 = vadd.f32 %v2414, %v3148
        %v3197 = vadd.f32 %v2415, %v3149
        %v3198 = vadd.f32 %v2416, %v3150
        %v3199 = vadd.f32 %v2417, %v3151
        %v3200 = vadd.f32 %v2418, %v3152
        %v3201 = vadd.f32 %v2419, %v3153
        %v3202 = vadd.f32 %v2420, %v3154
        %v3203 = vadd.f32 %v2421, %v3155
        %v3204 = vadd.f32 %v2422, %v3156
        %v3205 = vadd.f32 %v2423, %v3157
        %v3206 = vmul.f32 %v3158, %v3158
        %v3207 = vmul.f32 %v3159, %v3159
        %v3208 = vmul.f32 %v3160, %v3160
        %v3209 = vmul.f32 %v3161, %v3161
        %v3210 = vmul.f32 %v3162, %v3162
        %v3211 = vmul.f32 %v3163, %v3163
        %v3212 = vmul.f32 %v3164, %v3164
        %v3213 = vmul.f32 %v3165, %v3165
        %v3214 = vmul.f32 %v3166, %v3166
        %v3215 = vmul.f32 %v3167, %v3167
        %v3216 = vmul.f32 %v3168, %v3168
        %v3217 = vmul.f32 %v3169, %v3169
        %v3218 = vmul.f32 %v3170, %v3170
        %v3219 = vmul.f32 %v3171, %v3171
        %v3220 = vmul.f32 %v3172, %v3172
        %v3221 = vmul.f32 %v3173, %v3173
        %v3222 = vadd.f32 %v3206, %v3207
        %3223 = vadd.xlane.f32.xlu0 %v3222
        %v3224 = vpop.xlane.xlu0 %3223
        %v3225 = vadd.f32 %v3208, %v3209
        %3226 = vadd.xlane.f32.xlu0 %v3225
        %v3227 = vpop.xlane.xlu0 %3226
        %v3228 = vadd.f32 %v3210, %v3211
        %3229 = vadd.xlane.f32.xlu0 %v3228
        %v3230 = vpop.xlane.xlu0 %3229
        %v3231 = vadd.f32 %v3212, %v3213
        %3232 = vadd.xlane.f32.xlu0 %v3231
        %v3233 = vpop.xlane.xlu0 %3232
        %v3234 = vadd.f32 %v3214, %v3215
        %3235 = vadd.xlane.f32.xlu0 %v3234
        %v3236 = vpop.xlane.xlu0 %3235
        %v3237 = vadd.f32 %v3216, %v3217
        %3238 = vadd.xlane.f32.xlu0 %v3237
        %v3239 = vpop.xlane.xlu0 %3238
        %v3240 = vadd.f32 %v3218, %v3219
        %3241 = vadd.xlane.f32.xlu0 %v3240
        %v3242 = vpop.xlane.xlu0 %3241
        %v3243 = vadd.f32 %v3220, %v3221
        %3244 = vadd.xlane.f32.xlu0 %v3243
        %v3245 = vpop.xlane.xlu0 %3244
        %v3246 = vrsqrt.pop %v3224
        %v3247 = vmul.f32 %v3224, %v3246
        %vm3248 = vcmp.eq.f32.partialorder %v3224, inf
        %v3249 = vsel %vm3248, %v3224, %v3247
        %vm3250 = vcmp.eq.f32.partialorder %v3224, 0.0
        %v3251 = vand.u32 %v3224, 2147483648
        %v3252 = vsel %vm3250, %v3251, %v3249
        %v3253 = vrsqrt.pop %v3227
        %v3254 = vmul.f32 %v3227, %v3253
        %vm3255 = vcmp.eq.f32.partialorder %v3227, inf
        %v3256 = vsel %vm3255, %v3227, %v3254
        %vm3257 = vcmp.eq.f32.partialorder %v3227, 0.0
        %v3258 = vand.u32 %v3227, 2147483648
        %v3259 = vsel %vm3257, %v3258, %v3256
        %v3260 = vrsqrt.pop %v3230
        %v3261 = vmul.f32 %v3230, %v3260
        %vm3262 = vcmp.eq.f32.partialorder %v3230, inf
        %v3263 = vsel %vm3262, %v3230, %v3261
        %vm3264 = vcmp.eq.f32.partialorder %v3230, 0.0
        %v3265 = vand.u32 %v3230, 2147483648
        %v3266 = vsel %vm3264, %v3265, %v3263
        %v3267 = vrsqrt.pop %v3233
        %v3268 = vmul.f32 %v3233, %v3267
        %vm3269 = vcmp.eq.f32.partialorder %v3233, inf
        %v3270 = vsel %vm3269, %v3233, %v3268
        %vm3271 = vcmp.eq.f32.partialorder %v3233, 0.0
        %v3272 = vand.u32 %v3233, 2147483648
        %v3273 = vsel %vm3271, %v3272, %v3270
        %v3274 = vrsqrt.pop %v3236
        %v3275 = vmul.f32 %v3236, %v3274
        %vm3276 = vcmp.eq.f32.partialorder %v3236, inf
        %v3277 = vsel %vm3276, %v3236, %v3275
        %vm3278 = vcmp.eq.f32.partialorder %v3236, 0.0
        %v3279 = vand.u32 %v3236, 2147483648
        %v3280 = vsel %vm3278, %v3279, %v3277
        %v3281 = vrsqrt.pop %v3239
        %v3282 = vmul.f32 %v3239, %v3281
        %vm3283 = vcmp.eq.f32.partialorder %v3239, inf
        %v3284 = vsel %vm3283, %v3239, %v3282
        %vm3285 = vcmp.eq.f32.partialorder %v3239, 0.0
        %v3286 = vand.u32 %v3239, 2147483648
        %v3287 = vsel %vm3285, %v3286, %v3284
        %v3288 = vrsqrt.pop %v3242
        %v3289 = vmul.f32 %v3242, %v3288
        %vm3290 = vcmp.eq.f32.partialorder %v3242, inf
        %v3291 = vsel %vm3290, %v3242, %v3289
        %vm3292 = vcmp.eq.f32.partialorder %v3242, 0.0
        %v3293 = vand.u32 %v3242, 2147483648
        %v3294 = vsel %vm3292, %v3293, %v3291
        %v3295 = vrsqrt.pop %v3245
        %v3296 = vmul.f32 %v3245, %v3295
        %vm3297 = vcmp.eq.f32.partialorder %v3245, inf
        %v3298 = vsel %vm3297, %v3245, %v3296
        %vm3299 = vcmp.eq.f32.partialorder %v3245, 0.0
        %v3300 = vand.u32 %v3245, 2147483648
        %v3301 = vsel %vm3299, %v3300, %v3298
        %v3302 = vmax.f32 %v3252, 1e-12
        %v3303 = vmax.f32 %v3259, 1e-12
        %v3304 = vmax.f32 %v3266, 1e-12
        %v3305 = vmax.f32 %v3273, 1e-12
        %v3306 = vmax.f32 %v3280, 1e-12
        %v3307 = vmax.f32 %v3287, 1e-12
        %v3308 = vmax.f32 %v3294, 1e-12
        %v3309 = vmax.f32 %v3301, 1e-12
        %v3310 = vrcp.pop %v3302
        %v3311 = vmul.f32 %v3158, %v3310
        %v3312 = vmul.f32 %v3159, %v3310
        %v3313 = vrcp.pop %v3303
        %v3314 = vmul.f32 %v3160, %v3313
        %v3315 = vmul.f32 %v3161, %v3313
        %v3316 = vrcp.pop %v3304
        %v3317 = vmul.f32 %v3162, %v3316
        %v3318 = vmul.f32 %v3163, %v3316
        %v3319 = vrcp.pop %v3305
        %v3320 = vmul.f32 %v3164, %v3319
        %v3321 = vmul.f32 %v3165, %v3319
        %v3322 = vrcp.pop %v3306
        %v3323 = vmul.f32 %v3166, %v3322
        %v3324 = vmul.f32 %v3167, %v3322
        %v3325 = vrcp.pop %v3307
        %v3326 = vmul.f32 %v3168, %v3325
        %v3327 = vmul.f32 %v3169, %v3325
        %v3328 = vrcp.pop %v3308
        %v3329 = vmul.f32 %v3170, %v3328
        %v3330 = vmul.f32 %v3171, %v3328
        %v3331 = vrcp.pop %v3309
        %v3332 = vmul.f32 %v3172, %v3331
        %v3333 = vmul.f32 %v3173, %v3331
        %v3334 = vmul.f32 %v3174, %v3174
        %v3335 = vmul.f32 %v3175, %v3175
        %v3336 = vmul.f32 %v3176, %v3176
        %v3337 = vmul.f32 %v3177, %v3177
        %v3338 = vmul.f32 %v3178, %v3178
        %v3339 = vmul.f32 %v3179, %v3179
        %v3340 = vmul.f32 %v3180, %v3180
        %v3341 = vmul.f32 %v3181, %v3181
        %v3342 = vmul.f32 %v3182, %v3182
        %v3343 = vmul.f32 %v3183, %v3183
        %v3344 = vmul.f32 %v3184, %v3184
        %v3345 = vmul.f32 %v3185, %v3185
        %v3346 = vmul.f32 %v3186, %v3186
        %v3347 = vmul.f32 %v3187, %v3187
        %v3348 = vmul.f32 %v3188, %v3188
        %v3349 = vmul.f32 %v3189, %v3189
        %v3350 = vadd.f32 %v3334, %v3335
        %3351 = vadd.xlane.f32.xlu0 %v3350
        %v3352 = vpop.xlane.xlu0 %3351
        %v3353 = vadd.f32 %v3336, %v3337
        %3354 = vadd.xlane.f32.xlu0 %v3353
        %v3355 = vpop.xlane.xlu0 %3354
        %v3356 = vadd.f32 %v3338, %v3339
        %3357 = vadd.xlane.f32.xlu0 %v3356
        %v3358 = vpop.xlane.xlu0 %3357
        %v3359 = vadd.f32 %v3340, %v3341
        %3360 = vadd.xlane.f32.xlu0 %v3359
        %v3361 = vpop.xlane.xlu0 %3360
        %v3362 = vadd.f32 %v3342, %v3343
        %3363 = vadd.xlane.f32.xlu0 %v3362
        %v3364 = vpop.xlane.xlu0 %3363
        %v3365 = vadd.f32 %v3344, %v3345
        %3366 = vadd.xlane.f32.xlu0 %v3365
        %v3367 = vpop.xlane.xlu0 %3366
        %v3368 = vadd.f32 %v3346, %v3347
        %3369 = vadd.xlane.f32.xlu0 %v3368
        %v3370 = vpop.xlane.xlu0 %3369
        %v3371 = vadd.f32 %v3348, %v3349
        %3372 = vadd.xlane.f32.xlu0 %v3371
        %v3373 = vpop.xlane.xlu0 %3372
        %v3374 = vrsqrt.pop %v3352
        %v3375 = vmul.f32 %v3352, %v3374
        %vm3376 = vcmp.eq.f32.partialorder %v3352, inf
        %v3377 = vsel %vm3376, %v3352, %v3375
        %vm3378 = vcmp.eq.f32.partialorder %v3352, 0.0
        %v3379 = vand.u32 %v3352, 2147483648
        %v3380 = vsel %vm3378, %v3379, %v3377
        %v3381 = vrsqrt.pop %v3355
        %v3382 = vmul.f32 %v3355, %v3381
        %vm3383 = vcmp.eq.f32.partialorder %v3355, inf
        %v3384 = vsel %vm3383, %v3355, %v3382
        %vm3385 = vcmp.eq.f32.partialorder %v3355, 0.0
        %v3386 = vand.u32 %v3355, 2147483648
        %v3387 = vsel %vm3385, %v3386, %v3384
        %v3388 = vrsqrt.pop %v3358
        %v3389 = vmul.f32 %v3358, %v3388
        %vm3390 = vcmp.eq.f32.partialorder %v3358, inf
        %v3391 = vsel %vm3390, %v3358, %v3389
        %vm3392 = vcmp.eq.f32.partialorder %v3358, 0.0
        %v3393 = vand.u32 %v3358, 2147483648
        %v3394 = vsel %vm3392, %v3393, %v3391
        %v3395 = vrsqrt.pop %v3361
        %v3396 = vmul.f32 %v3361, %v3395
        %vm3397 = vcmp.eq.f32.partialorder %v3361, inf
        %v3398 = vsel %vm3397, %v3361, %v3396
        %vm3399 = vcmp.eq.f32.partialorder %v3361, 0.0
        %v3400 = vand.u32 %v3361, 2147483648
        %v3401 = vsel %vm3399, %v3400, %v3398
        %v3402 = vrsqrt.pop %v3364
        %v3403 = vmul.f32 %v3364, %v3402
        %vm3404 = vcmp.eq.f32.partialorder %v3364, inf
        %v3405 = vsel %vm3404, %v3364, %v3403
        %vm3406 = vcmp.eq.f32.partialorder %v3364, 0.0
        %v3407 = vand.u32 %v3364, 2147483648
        %v3408 = vsel %vm3406, %v3407, %v3405
        %v3409 = vrsqrt.pop %v3367
        %v3410 = vmul.f32 %v3367, %v3409
        %vm3411 = vcmp.eq.f32.partialorder %v3367, inf
        %v3412 = vsel %vm3411, %v3367, %v3410
        %vm3413 = vcmp.eq.f32.partialorder %v3367, 0.0
        %v3414 = vand.u32 %v3367, 2147483648
        %v3415 = vsel %vm3413, %v3414, %v3412
        %v3416 = vrsqrt.pop %v3370
        %v3417 = vmul.f32 %v3370, %v3416
        %vm3418 = vcmp.eq.f32.partialorder %v3370, inf
        %v3419 = vsel %vm3418, %v3370, %v3417
        %vm3420 = vcmp.eq.f32.partialorder %v3370, 0.0
        %v3421 = vand.u32 %v3370, 2147483648
        %v3422 = vsel %vm3420, %v3421, %v3419
        %v3423 = vrsqrt.pop %v3373
        %v3424 = vmul.f32 %v3373, %v3423
        %vm3425 = vcmp.eq.f32.partialorder %v3373, inf
        %v3426 = vsel %vm3425, %v3373, %v3424
        %vm3427 = vcmp.eq.f32.partialorder %v3373, 0.0
        %v3428 = vand.u32 %v3373, 2147483648
        %v3429 = vsel %vm3427, %v3428, %v3426
        %v3430 = vmax.f32 %v3380, 1e-12
        %v3431 = vmax.f32 %v3387, 1e-12
        %v3432 = vmax.f32 %v3394, 1e-12
        %v3433 = vmax.f32 %v3401, 1e-12
        %v3434 = vmax.f32 %v3408, 1e-12
        %v3435 = vmax.f32 %v3415, 1e-12
        %v3436 = vmax.f32 %v3422, 1e-12
        %v3437 = vmax.f32 %v3429, 1e-12
        %v3438 = vrcp.pop %v3430
        %v3439 = vmul.f32 %v3174, %v3438
        %v3440 = vmul.f32 %v3175, %v3438
        %v3441 = vrcp.pop %v3431
        %v3442 = vmul.f32 %v3176, %v3441
        %v3443 = vmul.f32 %v3177, %v3441
        %v3444 = vrcp.pop %v3432
        %v3445 = vmul.f32 %v3178, %v3444
        %v3446 = vmul.f32 %v3179, %v3444
        %v3447 = vrcp.pop %v3433
        %v3448 = vmul.f32 %v3180, %v3447
        %v3449 = vmul.f32 %v3181, %v3447
        %v3450 = vrcp.pop %v3434
        %v3451 = vmul.f32 %v3182, %v3450
        %v3452 = vmul.f32 %v3183, %v3450
        %v3453 = vrcp.pop %v3435
        %v3454 = vmul.f32 %v3184, %v3453
        %v3455 = vmul.f32 %v3185, %v3453
        %v3456 = vrcp.pop %v3436
        %v3457 = vmul.f32 %v3186, %v3456
        %v3458 = vmul.f32 %v3187, %v3456
        %v3459 = vrcp.pop %v3437
        %v3460 = vmul.f32 %v3188, %v3459
        %v3461 = vmul.f32 %v3189, %v3459
        %3462 = vmatprep.subr.mxu0 %v3440
        %3463 = vmatpush1.xpose.msra.mxu0 %v3439
        %3464 = vmatprep.subr.mxu0 %v3443
        %3465 = vmatpush1.xpose.msra.mxu0 %v3442
        %3466 = vmatprep.subr.mxu0 %v3446
        %3467 = vmatpush1.xpose.msra.mxu0 %v3445
        %3468 = vmatprep.subr.mxu0 %v3449
        %3469 = vmatpush1.xpose.msra.mxu0 %v3448
        %3470 = vmatprep.subr.mxu0 %v3452
        %3471 = vmatpush1.xpose.msra.mxu0 %v3451
        %3472 = vmatprep.subr.mxu0 %v3455
        %3473 = vmatpush1.xpose.msra.mxu0 %v3454
        %3474 = vmatprep.subr.mxu0 %v3458
        %3475 = vmatpush1.xpose.msra.mxu0 %v3457
        %3476 = vmatprep.subr.mxu0 %v3461
        %3477 = vmatpush1.xpose.msra.mxu0 %v3460
        %3478 = vmatprep.subr.mxu0 0.0
        %3479 = vmatpush1.xpose.msra.mxu0 0.0
        %3480 = vmatprep.subr.mxu0 0.0
        %3481 = vmatpush1.xpose.msra.mxu0 0.0
        %3482 = vmatprep.subr.mxu0 0.0
        %3483 = vmatpush1.xpose.msra.mxu0 0.0
        %3484 = vmatprep.subr.mxu0 0.0
        %3485 = vmatpush1.xpose.msra.mxu0 0.0
        %3486 = vmatprep.subr.mxu0 0.0
        %3487 = vmatpush1.xpose.msra.mxu0 0.0
        %3488 = vmatprep.subr.mxu0 0.0
        %3489 = vmatpush1.xpose.msra.mxu0 0.0
        %3490 = vmatprep.subr.mxu0 0.0
        %3491 = vmatpush1.xpose.msra.mxu0 0.0
        %3492 = vmatprep.subr.mxu0 0.0
        %3493 = vmatpush1.xpose.msra.mxu0 0.0
        %3494 = vmatprep.subr.mxu0 0.0
        %3495 = vmatpush1.xpose.msra.mxu0 0.0
        %3496 = vmatprep.subr.mxu0 0.0
        %3497 = vmatpush1.xpose.msra.mxu0 0.0
        %3498 = vmatprep.subr.mxu0 0.0
        %3499 = vmatpush1.xpose.msra.mxu0 0.0
        %3500 = vmatprep.subr.mxu0 0.0
        %3501 = vmatpush1.xpose.msra.mxu0 0.0
        %3502 = vmatprep.subr.mxu0 0.0
        %3503 = vmatpush1.xpose.msra.mxu0 0.0
        %3504 = vmatprep.subr.mxu0 0.0
        %3505 = vmatpush1.xpose.msra.mxu0 0.0
        %3506 = vmatprep.subr.mxu0 0.0
        %3507 = vmatpush1.xpose.msra.mxu0 0.0
        %3508 = vmatprep.subr.mxu0 0.0
        %3509 = vmatpush1.xpose.msra.mxu0 0.0
        %3510 = vmatprep.subr.mxu0 0.0
        %3511 = vmatpush1.xpose.msra.mxu0 0.0
        %3512 = vmatprep.subr.mxu0 0.0
        %3513 = vmatpush1.xpose.msra.mxu0 0.0
        %3514 = vmatprep.subr.mxu0 0.0
        %3515 = vmatpush1.xpose.msra.mxu0 0.0
        %3516 = vmatprep.subr.mxu0 0.0
        %3517 = vmatpush1.xpose.msra.mxu0 0.0
        %3518 = vmatprep.subr.mxu0 0.0
        %3519 = vmatpush1.xpose.msra.mxu0 0.0
        %3520 = vmatprep.subr.mxu0 0.0
        %3521 = vmatpush1.xpose.msra.mxu0 0.0
        %3522 = vmatprep.subr.mxu0 0.0
        %3523 = vmatpush1.xpose.msra.mxu0 0.0
        %3524 = vmatprep.subr.mxu0 0.0
        %3525 = vmatpush1.xpose.msra.mxu0 0.0
        %3526 = vmatprep.mubr.f32.mxu0 %v3312
        %3527 = vmatmul.mubr.f32.gmra.mrb[0].mxu0 %v3311
        %v3528 = vpop.f32.mrb[0].mxu0
        %v3529 = vadd.f32 0.0, %v3528
        %v3530 = vpop.f32.mrb[0].mxu0
        %3531 = vmatprep.mubr.f32.mxu0 %v3315
        %3532 = vmatmul.mubr.f32.gmra.mrb[0].mxu0 %v3314
        %v3533 = vpop.f32.mrb[0].mxu0
        %v3534 = vadd.f32 0.0, %v3533
        %v3535 = vpop.f32.mrb[0].mxu0
        %3536 = vmatprep.mubr.f32.mxu0 %v3318
        %3537 = vmatmul.mubr.f32.gmra.mrb[0].mxu0 %v3317
        %v3538 = vpop.f32.mrb[0].mxu0
        %v3539 = vadd.f32 0.0, %v3538
        %v3540 = vpop.f32.mrb[0].mxu0
        %3541 = vmatprep.mubr.f32.mxu0 %v3321
        %3542 = vmatmul.mubr.f32.gmra.mrb[0].mxu0 %v3320
        %v3543 = vpop.f32.mrb[0].mxu0
        %v3544 = vadd.f32 0.0, %v3543
        %v3545 = vpop.f32.mrb[0].mxu0
        %3546 = vmatprep.mubr.f32.mxu0 %v3324
        %3547 = vmatmul.mubr.f32.gmra.mrb[0].mxu0 %v3323
        %v3548 = vpop.f32.mrb[0].mxu0
        %v3549 = vadd.f32 0.0, %v3548
        %v3550 = vpop.f32.mrb[0].mxu0
        %3551 = vmatprep.mubr.f32.mxu0 %v3327
        %3552 = vmatmul.mubr.f32.gmra.mrb[0].mxu0 %v3326
        %v3553 = vpop.f32.mrb[0].mxu0
        %v3554 = vadd.f32 0.0, %v3553
        %v3555 = vpop.f32.mrb[0].mxu0
        %3556 = vmatprep.mubr.f32.mxu0 %v3330
        %3557 = vmatmul.mubr.f32.gmra.mrb[0].mxu0 %v3329
        %v3558 = vpop.f32.mrb[0].mxu0
        %v3559 = vadd.f32 0.0, %v3558
        %v3560 = vpop.f32.mrb[0].mxu0
        %3561 = vmatprep.mubr.f32.mxu0 %v3333
        %3562 = vmatmul.mubr.f32.gmra.mrb[0].mxu0 %v3332
        %v3563 = vpop.f32.mrb[0].mxu0
        %v3564 = vadd.f32 0.0, %v3563
        %v3565 = vpop.f32.mrb[0].mxu0
        %3566 = vdwg.mxu0
        %v3567 = vld [vmem:[%s5] sm:$0xff]
        %v3568 = vld [vmem:[%s5 + $0x8] sm:$0xff]
        %v3569 = vld [vmem:[%s5 + $0x10] sm:$0xff]
        %v3570 = vld [vmem:[%s5 + $0x18] sm:$0xff]
        %v3571 = vld [vmem:[%s5 + $0x20] sm:$0xff]
        %v3572 = vld [vmem:[%s5 + $0x28] sm:$0xff]
        %v3573 = vld [vmem:[%s5 + $0x30] sm:$0xff]
        %v3574 = vld [vmem:[%s5 + $0x38] sm:$0xff]
        %3576 = vset.pattern.permute.xlu0 0
        %3577 = vperm.xlu0 %3576, %v3567
        %v3578 = vpop.permute.xlu0 %3577
        %3581 = vset.pattern.permute.xlu0 0
        %3582 = vperm.xlu0 %3581, %v3568
        %v3583 = vpop.permute.xlu0 %3582
        %3586 = vset.pattern.permute.xlu0 0
        %3587 = vperm.xlu0 %3586, %v3569
        %v3588 = vpop.permute.xlu0 %3587
        %3591 = vset.pattern.permute.xlu0 0
        %3592 = vperm.xlu0 %3591, %v3570
        %v3593 = vpop.permute.xlu0 %3592
        %3596 = vset.pattern.permute.xlu0 0
        %3597 = vperm.xlu0 %3596, %v3571
        %v3598 = vpop.permute.xlu0 %3597
        %3601 = vset.pattern.permute.xlu0 0
        %3602 = vperm.xlu0 %3601, %v3572
        %v3603 = vpop.permute.xlu0 %3602
        %3606 = vset.pattern.permute.xlu0 0
        %3607 = vperm.xlu0 %3606, %v3573
        %v3608 = vpop.permute.xlu0 %3607
        %3611 = vset.pattern.permute.xlu0 0
        %3612 = vperm.xlu0 %3611, %v3574
        %v3613 = vpop.permute.xlu0 %3612
        %v3615 = vmul.f32 %v3529, %v3578
        %v3616 = vmul.f32 %v3534, %v3583
        %v3617 = vmul.f32 %v3539, %v3588
        %v3618 = vmul.f32 %v3544, %v3593
        %v3619 = vmul.f32 %v3549, %v3598
        %v3620 = vmul.f32 %v3554, %v3603
        %v3621 = vmul.f32 %v3559, %v3608
        %v3622 = vmul.f32 %v3564, %v3613
        %v3623 = vld [vmem:[#allocation8] sm:$0xff]
        %v3624 = vld [vmem:[#allocation8 + $0x8] sm:$0xff]
        %v3625 = vld [vmem:[#allocation8 + $0x10] sm:$0xff]
        %v3626 = vld [vmem:[#allocation8 + $0x18] sm:$0xff]
        %v3627 = vld [vmem:[#allocation8 + $0x20] sm:$0xff]
        %v3628 = vld [vmem:[#allocation8 + $0x28] sm:$0xff]
        %v3629 = vld [vmem:[#allocation8 + $0x30] sm:$0xff]
        %v3630 = vld [vmem:[#allocation8 + $0x38] sm:$0xff]
        %vm3631 = vcmp.ne.f32.partialorder %v3623, 0.0
        %vm3632 = vcmp.ne.f32.partialorder %v3624, 0.0
        %vm3633 = vcmp.ne.f32.partialorder %v3625, 0.0
        %vm3634 = vcmp.ne.f32.partialorder %v3626, 0.0
        %vm3635 = vcmp.ne.f32.partialorder %v3627, 0.0
        %vm3636 = vcmp.ne.f32.partialorder %v3628, 0.0
        %vm3637 = vcmp.ne.f32.partialorder %v3629, 0.0
        %vm3638 = vcmp.ne.f32.partialorder %v3630, 0.0
        %v3639 = vsel %vm3631, %v3615, -3.4028235e+38
        %v3640 = vsel %vm3632, %v3616, -3.4028235e+38
        %v3641 = vsel %vm3633, %v3617, -3.4028235e+38
        %v3642 = vsel %vm3634, %v3618, -3.4028235e+38
        %v3643 = vsel %vm3635, %v3619, -3.4028235e+38
        %v3644 = vsel %vm3636, %v3620, -3.4028235e+38
        %v3645 = vsel %vm3637, %v3621, -3.4028235e+38
        %v3646 = vsel %vm3638, %v3622, -3.4028235e+38
        %vm3647 = vcmask 523264
        %v3648 = vsel %vm3647, %v3639, -inf
        %3649 = vmax.xlane.f32.xlu0 %v3648
        %v3650 = vpop.xlane.xlu0 %3649
        %v3651 = vsel %vm3647, %v3640, -inf
        %3652 = vmax.xlane.f32.xlu0 %v3651
        %v3653 = vpop.xlane.xlu0 %3652
        %v3654 = vsel %vm3647, %v3641, -inf
        %3655 = vmax.xlane.f32.xlu0 %v3654
        %v3656 = vpop.xlane.xlu0 %3655
        %v3657 = vsel %vm3647, %v3642, -inf
        %3658 = vmax.xlane.f32.xlu0 %v3657
        %v3659 = vpop.xlane.xlu0 %3658
        %v3660 = vsel %vm3647, %v3643, -inf
        %3661 = vmax.xlane.f32.xlu0 %v3660
        %v3662 = vpop.xlane.xlu0 %3661
        %v3663 = vsel %vm3647, %v3644, -inf
        %3664 = vmax.xlane.f32.xlu0 %v3663
        %v3665 = vpop.xlane.xlu0 %3664
        %v3666 = vsel %vm3647, %v3645, -inf
        %3667 = vmax.xlane.f32.xlu0 %v3666
        %v3668 = vpop.xlane.xlu0 %3667
        %v3669 = vsel %vm3647, %v3646, -inf
        %3670 = vmax.xlane.f32.xlu0 %v3669
        %v3671 = vpop.xlane.xlu0 %3670
        %v3672 = vsub.f32 %v3639, %v3650
        %v3673 = vsub.f32 %v3640, %v3653
        %v3674 = vsub.f32 %v3641, %v3656
        %v3675 = vsub.f32 %v3642, %v3659
        %v3676 = vsub.f32 %v3643, %v3662
        %v3677 = vsub.f32 %v3644, %v3665
        %v3678 = vsub.f32 %v3645, %v3668
        %v3679 = vsub.f32 %v3646, %v3671
        %v3680 = vmul.f32 %v3672, 1.442695
        %v3681 = vpow.pop %v3680
        %v3682 = vmul.f32 %v3673, 1.442695
        %v3683 = vpow.pop %v3682
        %v3684 = vmul.f32 %v3674, 1.442695
        %v3685 = vpow.pop %v3684
        %v3686 = vmul.f32 %v3675, 1.442695
        %v3687 = vpow.pop %v3686
        %v3688 = vmul.f32 %v3676, 1.442695
        %v3689 = vpow.pop %v3688
        %v3690 = vmul.f32 %v3677, 1.442695
        %v3691 = vpow.pop %v3690
        %v3692 = vmul.f32 %v3678, 1.442695
        %v3693 = vpow.pop %v3692
        %v3694 = vmul.f32 %v3679, 1.442695
        %v3695 = vpow.pop %v3694
        %v3696 = vsel %vm3647, %v3681, 0.0
        %3697 = vadd.xlane.f32.xlu0 %v3696
        %v3698 = vpop.xlane.xlu0 %3697
        %v3699 = vsel %vm3647, %v3683, 0.0
        %3700 = vadd.xlane.f32.xlu0 %v3699
        %v3701 = vpop.xlane.xlu0 %3700
        %v3702 = vsel %vm3647, %v3685, 0.0
        %3703 = vadd.xlane.f32.xlu0 %v3702
        %v3704 = vpop.xlane.xlu0 %3703
        %v3705 = vsel %vm3647, %v3687, 0.0
        %3706 = vadd.xlane.f32.xlu0 %v3705
        %v3707 = vpop.xlane.xlu0 %3706
        %v3708 = vsel %vm3647, %v3689, 0.0
        %3709 = vadd.xlane.f32.xlu0 %v3708
        %v3710 = vpop.xlane.xlu0 %3709
        %v3711 = vsel %vm3647, %v3691, 0.0
        %3712 = vadd.xlane.f32.xlu0 %v3711
        %v3713 = vpop.xlane.xlu0 %3712
        %v3714 = vsel %vm3647, %v3693, 0.0
        %3715 = vadd.xlane.f32.xlu0 %v3714
        %v3716 = vpop.xlane.xlu0 %3715
        %v3717 = vsel %vm3647, %v3695, 0.0
        %3718 = vadd.xlane.f32.xlu0 %v3717
        %v3719 = vpop.xlane.xlu0 %3718
        %v3720 = vrcp.pop %v3698
        %v3721 = vmul.f32 %v3681, %v3720
        %v3722 = vrcp.pop %v3701
        %v3723 = vmul.f32 %v3683, %v3722
        %v3724 = vrcp.pop %v3704
        %v3725 = vmul.f32 %v3685, %v3724
        %v3726 = vrcp.pop %v3707
        %v3727 = vmul.f32 %v3687, %v3726
        %v3728 = vrcp.pop %v3710
        %v3729 = vmul.f32 %v3689, %v3728
        %v3730 = vrcp.pop %v3713
        %v3731 = vmul.f32 %v3691, %v3730
        %v3732 = vrcp.pop %v3716
        %v3733 = vmul.f32 %v3693, %v3732
        %v3734 = vrcp.pop %v3719
        %v3735 = vmul.f32 %v3695, %v3734
        %v3736 = vld [vmem:[#allocation7] sm:$0xff]
        %v3737 = vld [vmem:[#allocation7 + $0x8] sm:$0xff]
        %v3738 = vld [vmem:[#allocation7 + $0x10] sm:$0xff]
        %v3739 = vld [vmem:[#allocation7 + $0x18] sm:$0xff]
        %v3740 = vld [vmem:[#allocation7 + $0x20] sm:$0xff]
        %v3741 = vld [vmem:[#allocation7 + $0x28] sm:$0xff]
        %v3742 = vld [vmem:[#allocation7 + $0x30] sm:$0xff]
        %v3743 = vld [vmem:[#allocation7 + $0x38] sm:$0xff]
        %v3745 = vsel %vm3647, %v3736, 0
        %v3748 = vsel %vm3647, %v3737, 0
        %v3751 = vsel %vm3647, %v3738, 0
        %v3754 = vsel %vm3647, %v3739, 0
        %v3757 = vsel %vm3647, %v3740, 0
        %v3760 = vsel %vm3647, %v3741, 0
        %v3763 = vsel %vm3647, %v3742, 0
        %v3766 = vsel %vm3647, %v3743, 0
        %3768 = vmatprep.subr.mxu0 0.0
        %3769 = vmatpush1.msra.mxu0 %v3721
        %3770 = vmatprep.subr.mxu0 0.0
        %3771 = vmatpush1.msra.mxu0 %v3723
        %3772 = vmatprep.subr.mxu0 0.0
        %3773 = vmatpush1.msra.mxu0 %v3725
        %3774 = vmatprep.subr.mxu0 0.0
        %3775 = vmatpush1.msra.mxu0 %v3727
        %3776 = vmatprep.subr.mxu0 0.0
        %3777 = vmatpush1.msra.mxu0 %v3729
        %3778 = vmatprep.subr.mxu0 0.0
        %3779 = vmatpush1.msra.mxu0 %v3731
        %3780 = vmatprep.subr.mxu0 0.0
        %3781 = vmatpush1.msra.mxu0 %v3733
        %3782 = vmatprep.subr.mxu0 0.0
        %3783 = vmatpush1.msra.mxu0 %v3735
        %3784 = vmatprep.subr.mxu0 0.0
        %3785 = vmatpush1.msra.mxu0 0.0
        %3786 = vmatprep.subr.mxu0 0.0
        %3787 = vmatpush1.msra.mxu0 0.0
        %3788 = vmatprep.subr.mxu0 0.0
        %3789 = vmatpush1.msra.mxu0 0.0
        %3790 = vmatprep.subr.mxu0 0.0
        %3791 = vmatpush1.msra.mxu0 0.0
        %3792 = vmatprep.subr.mxu0 0.0
        %3793 = vmatpush1.msra.mxu0 0.0
        %3794 = vmatprep.subr.mxu0 0.0
        %3795 = vmatpush1.msra.mxu0 0.0
        %3796 = vmatprep.subr.mxu0 0.0
        %3797 = vmatpush1.msra.mxu0 0.0
        %3798 = vmatprep.subr.mxu0 0.0
        %3799 = vmatpush1.msra.mxu0 0.0
        %3800 = vmatprep.subr.mxu0 0.0
        %3801 = vmatpush1.msra.mxu0 0.0
        %3802 = vmatprep.subr.mxu0 0.0
        %3803 = vmatpush1.msra.mxu0 0.0
        %3804 = vmatprep.subr.mxu0 0.0
        %3805 = vmatpush1.msra.mxu0 0.0
        %3806 = vmatprep.subr.mxu0 0.0
        %3807 = vmatpush1.msra.mxu0 0.0
        %3808 = vmatprep.subr.mxu0 0.0
        %3809 = vmatpush1.msra.mxu0 0.0
        %3810 = vmatprep.subr.mxu0 0.0
        %3811 = vmatpush1.msra.mxu0 0.0
        %3812 = vmatprep.subr.mxu0 0.0
        %3813 = vmatpush1.msra.mxu0 0.0
        %3814 = vmatprep.subr.mxu0 0.0
        %3815 = vmatpush1.msra.mxu0 0.0
        %3816 = vmatprep.subr.mxu0 0.0
        %3817 = vmatpush1.msra.mxu0 0.0
        %3818 = vmatprep.subr.mxu0 0.0
        %3819 = vmatpush1.msra.mxu0 0.0
        %3820 = vmatprep.subr.mxu0 0.0
        %3821 = vmatpush1.msra.mxu0 0.0
        %3822 = vmatprep.subr.mxu0 0.0
        %3823 = vmatpush1.msra.mxu0 0.0
        %3824 = vmatprep.subr.mxu0 0.0
        %3825 = vmatpush1.msra.mxu0 0.0
        %3826 = vmatprep.subr.mxu0 0.0
        %3827 = vmatpush1.msra.mxu0 0.0
        %3828 = vmatprep.subr.mxu0 0.0
        %3829 = vmatpush1.msra.mxu0 0.0
        %3830 = vmatprep.subr.mxu0 0.0
        %3831 = vmatpush1.msra.mxu0 0.0
        %3832 = vmatprep.mubr.f32.mxu0 0.0
        %3833 = vmatmul.mubr.f32.gmra.mrb[0].mxu0 %v3745
        %v3834 = vpop.f32.mrb[0].mxu0
        %v3835 = vadd.f32 0.0, %v3834
        %v3836 = vpop.f32.mrb[0].mxu0
        %3837 = vmatprep.mubr.f32.mxu0 0.0
        %3838 = vmatmul.mubr.f32.gmra.mrb[0].mxu0 %v3748
        %v3839 = vpop.f32.mrb[0].mxu0
        %v3840 = vadd.f32 0.0, %v3839
        %v3841 = vpop.f32.mrb[0].mxu0
        %3842 = vmatprep.mubr.f32.mxu0 0.0
        %3843 = vmatmul.mubr.f32.gmra.mrb[0].mxu0 %v3751
        %v3844 = vpop.f32.mrb[0].mxu0
        %v3845 = vadd.f32 0.0, %v3844
        %v3846 = vpop.f32.mrb[0].mxu0
        %3847 = vmatprep.mubr.f32.mxu0 0.0
        %3848 = vmatmul.mubr.f32.gmra.mrb[0].mxu0 %v3754
        %v3849 = vpop.f32.mrb[0].mxu0
        %v3850 = vadd.f32 0.0, %v3849
        %v3851 = vpop.f32.mrb[0].mxu0
        %3852 = vmatprep.mubr.f32.mxu0 0.0
        %3853 = vmatmul.mubr.f32.gmra.mrb[0].mxu0 %v3757
        %v3854 = vpop.f32.mrb[0].mxu0
        %v3855 = vadd.f32 0.0, %v3854
        %v3856 = vpop.f32.mrb[0].mxu0
        %3857 = vmatprep.mubr.f32.mxu0 0.0
        %3858 = vmatmul.mubr.f32.gmra.mrb[0].mxu0 %v3760
        %v3859 = vpop.f32.mrb[0].mxu0
        %v3860 = vadd.f32 0.0, %v3859
        %v3861 = vpop.f32.mrb[0].mxu0
        %3862 = vmatprep.mubr.f32.mxu0 0.0
        %3863 = vmatmul.mubr.f32.gmra.mrb[0].mxu0 %v3763
        %v3864 = vpop.f32.mrb[0].mxu0
        %v3865 = vadd.f32 0.0, %v3864
        %v3866 = vpop.f32.mrb[0].mxu0
        %3867 = vmatprep.mubr.f32.mxu0 0.0
        %3868 = vmatmul.mubr.f32.gmra.mrb[0].mxu0 %v3766
        %v3869 = vpop.f32.mrb[0].mxu0
        %v3870 = vadd.f32 0.0, %v3869
        %v3871 = vpop.f32.mrb[0].mxu0
        %3872 = vdwg.mxu0
        %v3874 = vsel %vm3647, %v3835, 0
        %v3877 = vsel %vm3647, %v3840, 0
        %v3880 = vsel %vm3647, %v3845, 0
        %v3883 = vsel %vm3647, %v3850, 0
        %v3886 = vsel %vm3647, %v3855, 0
        %v3889 = vsel %vm3647, %v3860, 0
        %v3892 = vsel %vm3647, %v3865, 0
        %v3895 = vsel %vm3647, %v3870, 0
        %3897 = vmatprep.subr.mxu0 %v3191
        %3898 = vmatpush1.msra.mxu0 %v3190
        %3899 = vmatprep.subr.mxu0 %v3193
        %3900 = vmatpush1.msra.mxu0 %v3192
        %3901 = vmatprep.subr.mxu0 %v3195
        %3902 = vmatpush1.msra.mxu0 %v3194
        %3903 = vmatprep.subr.mxu0 %v3197
        %3904 = vmatpush1.msra.mxu0 %v3196
        %3905 = vmatprep.subr.mxu0 %v3199
        %3906 = vmatpush1.msra.mxu0 %v3198
        %3907 = vmatprep.subr.mxu0 %v3201
        %3908 = vmatpush1.msra.mxu0 %v3200
        %3909 = vmatprep.subr.mxu0 %v3203
        %3910 = vmatpush1.msra.mxu0 %v3202
        %3911 = vmatprep.subr.mxu0 %v3205
        %3912 = vmatpush1.msra.mxu0 %v3204
        %3913 = vmatprep.subr.mxu0 0.0
        %3914 = vmatpush1.msra.mxu0 0.0
        %3915 = vmatprep.subr.mxu0 0.0
        %3916 = vmatpush1.msra.mxu0 0.0
        %3917 = vmatprep.subr.mxu0 0.0
        %3918 = vmatpush1.msra.mxu0 0.0
        %3919 = vmatprep.subr.mxu0 0.0
        %3920 = vmatpush1.msra.mxu0 0.0
        %3921 = vmatprep.subr.mxu0 0.0
        %3922 = vmatpush1.msra.mxu0 0.0
        %3923 = vmatprep.subr.mxu0 0.0
        %3924 = vmatpush1.msra.mxu0 0.0
        %3925 = vmatprep.subr.mxu0 0.0
        %3926 = vmatpush1.msra.mxu0 0.0
        %3927 = vmatprep.subr.mxu0 0.0
        %3928 = vmatpush1.msra.mxu0 0.0
        %3929 = vmatprep.subr.mxu0 0.0
        %3930 = vmatpush1.msra.mxu0 0.0
        %3931 = vmatprep.subr.mxu0 0.0
        %3932 = vmatpush1.msra.mxu0 0.0
        %3933 = vmatprep.subr.mxu0 0.0
        %3934 = vmatpush1.msra.mxu0 0.0
        %3935 = vmatprep.subr.mxu0 0.0
        %3936 = vmatpush1.msra.mxu0 0.0
        %3937 = vmatprep.subr.mxu0 0.0
        %3938 = vmatpush1.msra.mxu0 0.0
        %3939 = vmatprep.subr.mxu0 0.0
        %3940 = vmatpush1.msra.mxu0 0.0
        %3941 = vmatprep.subr.mxu0 0.0
        %3942 = vmatpush1.msra.mxu0 0.0
        %3943 = vmatprep.subr.mxu0 0.0
        %3944 = vmatpush1.msra.mxu0 0.0
        %3945 = vmatprep.subr.mxu0 0.0
        %3946 = vmatpush1.msra.mxu0 0.0
        %3947 = vmatprep.subr.mxu0 0.0
        %3948 = vmatpush1.msra.mxu0 0.0
        %3949 = vmatprep.subr.mxu0 0.0
        %3950 = vmatpush1.msra.mxu0 0.0
        %3951 = vmatprep.subr.mxu0 0.0
        %3952 = vmatpush1.msra.mxu0 0.0
        %3953 = vmatprep.subr.mxu0 0.0
        %3954 = vmatpush1.msra.mxu0 0.0
        %3955 = vmatprep.subr.mxu0 0.0
        %3956 = vmatpush1.msra.mxu0 0.0
        %3957 = vmatprep.subr.mxu0 0.0
        %3958 = vmatpush1.msra.mxu0 0.0
        %3959 = vmatprep.subr.mxu0 0.0
        %3960 = vmatpush1.msra.mxu0 0.0
        %3961 = vmatprep.mubr.f32.mxu0 0.0
        %3962 = vmatmul.mubr.f32.gmra.mrb[0].mxu0 %v3874
        %v3963 = vpop.f32.mrb[0].mxu0
        %v3964 = vadd.f32 0.0, %v3963
        %v3965 = vpop.f32.mrb[0].mxu0
        %v3966 = vadd.f32 0.0, %v3965
        %3967 = vmatprep.mubr.f32.mxu0 0.0
        %3968 = vmatmul.mubr.f32.gmra.mrb[0].mxu0 %v3877
        %v3969 = vpop.f32.mrb[0].mxu0
        %v3970 = vadd.f32 0.0, %v3969
        %v3971 = vpop.f32.mrb[0].mxu0
        %v3972 = vadd.f32 0.0, %v3971
        %3973 = vmatprep.mubr.f32.mxu0 0.0
        %3974 = vmatmul.mubr.f32.gmra.mrb[0].mxu0 %v3880
        %v3975 = vpop.f32.mrb[0].mxu0
        %v3976 = vadd.f32 0.0, %v3975
        %v3977 = vpop.f32.mrb[0].mxu0
        %v3978 = vadd.f32 0.0, %v3977
        %3979 = vmatprep.mubr.f32.mxu0 0.0
        %3980 = vmatmul.mubr.f32.gmra.mrb[0].mxu0 %v3883
        %v3981 = vpop.f32.mrb[0].mxu0
        %v3982 = vadd.f32 0.0, %v3981
        %v3983 = vpop.f32.mrb[0].mxu0
        %v3984 = vadd.f32 0.0, %v3983
        %3985 = vmatprep.mubr.f32.mxu0 0.0
        %3986 = vmatmul.mubr.f32.gmra.mrb[0].mxu0 %v3886
        %v3987 = vpop.f32.mrb[0].mxu0
        %v3988 = vadd.f32 0.0, %v3987
        %v3989 = vpop.f32.mrb[0].mxu0
        %v3990 = vadd.f32 0.0, %v3989
        %3991 = vmatprep.mubr.f32.mxu0 0.0
        %3992 = vmatmul.mubr.f32.gmra.mrb[0].mxu0 %v3889
        %v3993 = vpop.f32.mrb[0].mxu0
        %v3994 = vadd.f32 0.0, %v3993
        %v3995 = vpop.f32.mrb[0].mxu0
        %v3996 = vadd.f32 0.0, %v3995
        %3997 = vmatprep.mubr.f32.mxu0 0.0
        %3998 = vmatmul.mubr.f32.gmra.mrb[0].mxu0 %v3892
        %v3999 = vpop.f32.mrb[0].mxu0
        %v4000 = vadd.f32 0.0, %v3999
        %v4001 = vpop.f32.mrb[0].mxu0
        %v4002 = vadd.f32 0.0, %v4001
        %4003 = vmatprep.mubr.f32.mxu0 0.0
        %4004 = vmatmul.mubr.f32.gmra.mrb[0].mxu0 %v3895
        %v4005 = vpop.f32.mrb[0].mxu0
        %v4006 = vadd.f32 0.0, %v4005
        %v4007 = vpop.f32.mrb[0].mxu0
        %v4008 = vadd.f32 0.0, %v4007
        %4009 = vdwg.mxu0
        %4010 = vst [vmem:[%s382] sm:$0xff] %v3964
        %4011 = vst [vmem:[%s382 + $0x8] sm:$0xff] %v3966
        %4012 = vst [vmem:[%s382 + $0x10] sm:$0xff] %v3970
        %4013 = vst [vmem:[%s382 + $0x18] sm:$0xff] %v3972
        %4014 = vst [vmem:[%s382 + $0x20] sm:$0xff] %v3976
        %4015 = vst [vmem:[%s382 + $0x28] sm:$0xff] %v3978
        %4016 = vst [vmem:[%s382 + $0x30] sm:$0xff] %v3982
        %4017 = vst [vmem:[%s382 + $0x38] sm:$0xff] %v3984
        %4018 = vst [vmem:[%s382 + $0x40] sm:$0xff] %v3988
        %4019 = vst [vmem:[%s382 + $0x48] sm:$0xff] %v3990
        %4020 = vst [vmem:[%s382 + $0x50] sm:$0xff] %v3994
        %4021 = vst [vmem:[%s382 + $0x58] sm:$0xff] %v3996
        %4022 = vst [vmem:[%s382 + $0x60] sm:$0xff] %v4000
        %4023 = vst [vmem:[%s382 + $0x68] sm:$0xff] %v4002
        %4024 = vst [vmem:[%s382 + $0x70] sm:$0xff] %v4006
        %4025 = vst [vmem:[%s382 + $0x78] sm:$0xff] %v4008
        %s4026 = sand.u32 %s213, 1
        %s4027 = scalar_lea.sflag [#allocation4], %s4026
        %s4028 = sand.u32 %s213, 1
        %s4029 = smul.addr %s4028, 128
        %s4030 = scalar_lea.vmem [#allocation10], %s4029
        // Predicated region
        $region69: #{tpu_custom_call.1} parent=51 // pred_check
          %p4031 = pneg %p223
        $region70: #{tpu_custom_call.1} parent=51 // pred_check_branch
          %4033 = sbr.rel (%p4031) target = $region72
        $region71: #{tpu_custom_call.1} parent=51 // pred_region
          %s4035 = ssub.s32 2048, 2048
          %4036 = vsyncadd %s4027, %s4035
          %s4037 = smul.addr %s27, 16
          %s4038 = smul.addr %s4037, 128
          %s4039 = scalar_lea.hbm %s8, %s4038
          %s4040 = sshll.u32 %s4030, 4
          %s4041 = int_to_ptr.vmem [resolvable:$true] %s4040
          %4046 = dma.vmem_to_hbm [thread:$0]  %s4041, 2048, %s4039, %s4027, 256, 256, 16
        $region72: #{tpu_custom_call.1} parent=51 // pred_fallthru
          _
      $region52: #{tpu_custom_call.1} parent=5 // pred_fallthru
        _
      %p4047 = scmp.le.s32.totalorder 2, %s22
      // Predicated region
      $region73: #{tpu_custom_call.1} parent=5 // pred_check
        %p4048 = pneg %p4047
      $region74: #{tpu_custom_call.1} parent=5 // pred_check_branch
        %4050 = sbr.rel (%p4048) target = $region76
      $region75: #{tpu_custom_call.1} parent=5 // pred_region
        %s4051 = ssub.s32 %s22, 2
        // Predicated region
        $region77: #{tpu_custom_call.1} parent=75 // pred_check
          %p4052 = pneg %p229
        $region78: #{tpu_custom_call.1} parent=75 // pred_check_branch
          %4054 = sbr.rel (%p4052) target = $region80
        $region79: #{tpu_custom_call.1} parent=75 // pred_region
          %s4055 = sand.u32 %s214, 1
          %s4056 = scalar_lea.sflag [#allocation4], %s4055
          %s4057 = sand.u32 %s214, 1
          %s4058 = smul.addr %s4057, 128
          %s4059 = scalar_lea.vmem [#allocation10], %s4058
          %4060 = dma.done %s4056, 2048
        $region80: #{tpu_custom_call.1} parent=75 // pred_fallthru
          _
      $region76: #{tpu_custom_call.1} parent=5 // pred_fallthru
        _
    $region6: #{tpu_custom_call.1} parent=1 // loop_footer
      %s26 = sadd.s32 1, %s22
    $region7: #{tpu_custom_call.1} parent=1 // loop_footer_branch
      %21 = sbr.rel target = $region3
    $region8: #{tpu_custom_call.1} parent=1 // loop_exit
      _
    %4061 = vsyncpa [#allocation3], 1
    %s4062 = scalar_lea.sflag [#allocation3], 1
    %4063 = vsyncpa %s4062, 1
    %4064 = vsyncpa [#allocation6], 1
    %4065 = vsyncpa [#allocation9], 1
    %4066 = vsyncpa [#allocation4], 1
    %s4067 = scalar_lea.sflag [#allocation4], 1
    %4068 = vsyncpa %s4067, 1

</llo_original>
